<compile_context>
chip_gen: v7x
topology: tpu7x:2x2x1
jax: 0.10.0
libtpu: 0.0.40
codegen_flags: <defaults>
</compile_context>

<pallas_src>
import functools

import jax
import jax.numpy as jnp
from jax.experimental import pallas as pl
from jax.experimental.pallas import tpu as pltpu

IN_DIM = 28 * 28          # 784
IN_PAD = 896              # 7 * 128 -> lane-dense loads / unmasked stores
HIDDEN = 512
LATENT_PAD = 8            # sublane-padded latent; real latent columns come first


# ----------------------------------------------------------------------------
# Pallas kernel: full VAE forward (encoder + reparameterization + decoder)
# for one batch tile. All matmuls run on the MXU in bf16 with f32 accumulation.
# ----------------------------------------------------------------------------
def vae_kernel(x_ref, w1_ref, b1_ref, wh_ref, bh_ref, eps_ref,
               wd1_ref, bd1_ref, wd2_ref, bd2_ref, out_ref, *, lp):
    # ---- encoder: 896 -> 512, relu ------------------------------------------
    h = jnp.dot(x_ref[...], w1_ref[...],
                preferred_element_type=jnp.float32) + b1_ref[...]
    h = jnp.maximum(h, 0.0).astype(jnp.bfloat16)

    # ---- fused mu/sigma head: single matmul, split columns -------------------
    head = jnp.dot(h, wh_ref[...],
                   preferred_element_type=jnp.float32) + bh_ref[...]
    mu = head[:, :lp]                         # (TB, lp); padded cols are 0
    sigma = jnp.exp(head[:, lp:])             # padded cols -> exp(0) = 1
    # padded eps columns are 0, so padded z columns stay 0
    z = (mu + sigma * eps_ref[...]).astype(jnp.bfloat16)

    # ---- decoder: lp -> 512 relu -> 896 sigmoid ------------------------------
    hd = jnp.dot(z, wd1_ref[...],
                 preferred_element_type=jnp.float32) + bd1_ref[...]
    hd = jnp.maximum(hd, 0.0).astype(jnp.bfloat16)

    logits = jnp.dot(hd, wd2_ref[...],
                     preferred_element_type=jnp.float32) + bd2_ref[...]
    out_ref[...] = jax.nn.sigmoid(logits)     # (TB, 896) lane-dense store


# ----------------------------------------------------------------------------
# Wrapper: batch-tiled grid, weights resident in VMEM across grid steps.
# ----------------------------------------------------------------------------
def vae_forward(x, params, eps, *, batch_tile=None):
    """x: (B, 1, 28, 28) f32, eps: (B, latent_dim) f32 -> (B, 1, 28, 28) f32."""
    B = x.shape[0]
    latent_dim = eps.shape[1]
    lp = params["wd1"].shape[0]               # padded latent width

    if batch_tile is None:
        # 128-row tiles fill the MXU once the batch is real; small demo uses 8.
        batch_tile = 128 if B >= 128 else 8
    BP = pl.cdiv(B, batch_tile) * batch_tile

    x_flat = x.reshape(B, IN_DIM).astype(jnp.bfloat16)
    x_pad = jnp.zeros((BP, IN_PAD), jnp.bfloat16).at[:B, :IN_DIM].set(x_flat)
    eps_pad = jnp.zeros((BP, lp), jnp.float32).at[:B, :latent_dim].set(eps)

    def tiled(last_dim):
        return pl.BlockSpec((batch_tile, last_dim), lambda i: (i, 0))

    def resident(shape):
        # same block index every grid step -> stays resident in VMEM
        return pl.BlockSpec(shape, lambda i: (0, 0))

    args = (x_pad,
            params["w1"], params["b1"],
            params["wh"], params["bh"],
            eps_pad,
            params["wd1"], params["bd1"],
            params["wd2"], params["bd2"])
    in_specs = [
        tiled(IN_PAD),
        resident(params["w1"].shape), resident(params["b1"].shape),
        resident(params["wh"].shape), resident(params["bh"].shape),
        tiled(lp),
        resident(params["wd1"].shape), resident(params["bd1"].shape),
        resident(params["wd2"].shape), resident(params["bd2"].shape),
    ]

    out_pad = pl.pallas_call(
        functools.partial(vae_kernel, lp=lp),
        grid=(BP // batch_tile,),
        in_specs=in_specs,
        out_specs=tiled(IN_PAD),
        out_shape=jax.ShapeDtypeStruct((BP, IN_PAD), jnp.float32),
        compiler_params=pltpu.CompilerParams(
            # batch tiles are independent -> shard across TCs on v7x
            dimension_semantics=("parallel",)),
    )(*args)

    return out_pad[:B, :IN_DIM].reshape(B, 1, 28, 28)


# ----------------------------------------------------------------------------
# Deterministic parameter init (mimics torch.nn.Linear default init ranges).
# Weights are stored transposed (in, out), zero-padded to the kernel's padded
# dims, mu/sigma heads fused, and cast to bf16. Biases stay f32 as (1, out).
# ----------------------------------------------------------------------------
def init_params(key, latent_dim=2, latent_pad=LATENT_PAD):
    def linear(k, fan_in, fan_out):
        kw, kb = jax.random.split(k)
        bound = 1.0 / jnp.sqrt(jnp.float32(fan_in))
        w = jax.random.uniform(kw, (fan_in, fan_out), jnp.float32, -bound, bound)
        b = jax.random.uniform(kb, (fan_out,), jnp.float32, -bound, bound)
        return w, b

    keys = jax.random.split(key, 5)
    w1, b1 = linear(keys[0], IN_DIM, HIDDEN)        # encoder.linear1
    wmu, bmu = linear(keys[1], HIDDEN, latent_dim)  # encoder.mu
    wsig, bsig = linear(keys[2], HIDDEN, latent_dim)  # encoder.sigma
    wd1, bd1 = linear(keys[3], latent_dim, HIDDEN)  # decoder.linear1
    wd2, bd2 = linear(keys[4], HIDDEN, IN_DIM)      # decoder.linear2

    # encoder.linear1: pad K 784 -> 896 (zero rows), bf16
    w1_p = jnp.zeros((IN_PAD, HIDDEN), jnp.float32).at[:IN_DIM].set(w1)
    w1_p = w1_p.astype(jnp.bfloat16)
    b1_p = b1.reshape(1, HIDDEN)

    # fused mu|sigma head: (512, 2*latent_pad), zero-padded columns, bf16
    wh = jnp.zeros((HIDDEN, 2 * latent_pad), jnp.float32)
    wh = wh.at[:, :latent_dim].set(wmu)
    wh = wh.at[:, latent_pad:latent_pad + latent_dim].set(wsig)
    wh = wh.astype(jnp.bfloat16)
    bh = jnp.zeros((1, 2 * latent_pad), jnp.float32)
    bh = bh.at[0, :latent_dim].set(bmu)
    bh = bh.at[0, latent_pad:latent_pad + latent_dim].set(bsig)

    # decoder.linear1: pad K 2 -> 8 (zero rows), bf16
    wd1_p = jnp.zeros((latent_pad, HIDDEN), jnp.float32).at[:latent_dim].set(wd1)
    wd1_p = wd1_p.astype(jnp.bfloat16)
    bd1_p = bd1.reshape(1, HIDDEN)

    # decoder.linear2: pad N 784 -> 896 (zero cols), bf16
    wd2_p = jnp.zeros((HIDDEN, IN_PAD), jnp.float32).at[:, :IN_DIM].set(wd2)
    wd2_p = wd2_p.astype(jnp.bfloat16)
    bd2_p = jnp.zeros((1, IN_PAD), jnp.float32).at[0, :IN_DIM].set(bd2)

    return dict(w1=w1_p, b1=b1_p, wh=wh, bh=bh,
                wd1=wd1_p, bd1=bd1_p, wd2=wd2_p, bd2=bd2_p)


# Pure-JAX reference (same bf16 weights / activation casts) for a sanity check.
def vae_reference(x, params, eps):
    B = x.shape[0]
    latent_dim = eps.shape[1]
    lp = params["wd1"].shape[0]
    xf = x.reshape(B, IN_DIM).astype(jnp.bfloat16).astype(jnp.float32)
    h = jnp.maximum(xf @ params["w1"][:IN_DIM].astype(jnp.float32) + params["b1"], 0.0)
    h = h.astype(jnp.bfloat16).astype(jnp.float32)
    head = h @ params["wh"].astype(jnp.float32) + params["bh"]
    mu = head[:, :latent_dim]
    sigma = jnp.exp(head[:, lp:lp + latent_dim])
    z = (mu + sigma * eps).astype(jnp.bfloat16).astype(jnp.float32)
    hd = jnp.maximum(z @ params["wd1"][:latent_dim].astype(jnp.float32) + params["bd1"], 0.0)
    hd = hd.astype(jnp.bfloat16).astype(jnp.float32)
    logits = hd @ params["wd2"][:, :IN_DIM].astype(jnp.float32) + params["bd2"][:, :IN_DIM]
    return jax.nn.sigmoid(logits).reshape(B, 1, 28, 28)


if __name__ == "__main__":
    latent_dim = 2
    B = 16

    key = jax.random.PRNGKey(0)
    k_params, k_x, k_eps = jax.random.split(key, 3)

    params = init_params(k_params, latent_dim)
    x = jax.random.normal(k_x, (B, 1, 28, 28), jnp.float32)
    # torch samples N(0,1) inside forward (torch.distributions.Normal); we pass
    # the noise in explicitly for determinism.
    eps = jax.random.normal(k_eps, (B, latent_dim), jnp.float32)

    out = jax.block_until_ready(vae_forward(x, params, eps))
    assert out.shape == (B, 1, 28, 28)
    assert bool(jnp.all(jnp.isfinite(out)))
    assert bool(jnp.all((out >= 0.0) & (out <= 1.0)))

    ref = vae_reference(x, params, eps)
    assert bool(jnp.allclose(out, ref, rtol=1e-2, atol=1e-2)), \
        float(jnp.max(jnp.abs(out - ref)))
    print("KERNEL_OK")
</pallas_src>

<mosaic_0001>
module attributes {stable_mosaic.version = 11 : i64} {
  func.func @vae_kernel(%arg0: i32, %arg1: memref<8x896xbf16, #tpu.memory_space<vmem>>, %arg2: memref<896x512xbf16, #tpu.memory_space<vmem>>, %arg3: memref<1x512xf32, #tpu.memory_space<vmem>>, %arg4: memref<512x16xbf16, #tpu.memory_space<vmem>>, %arg5: memref<1x16xf32, #tpu.memory_space<vmem>>, %arg6: memref<8x8xf32, #tpu.memory_space<vmem>>, %arg7: memref<8x512xbf16, #tpu.memory_space<vmem>>, %arg8: memref<1x512xf32, #tpu.memory_space<vmem>>, %arg9: memref<512x896xbf16, #tpu.memory_space<vmem>>, %arg10: memref<1x896xf32, #tpu.memory_space<vmem>>, %arg11: memref<8x896xf32, #tpu.memory_space<vmem>>) attributes {dimension_semantics = [#tpu.dimension_semantics<parallel>], iteration_bounds = array<i64: 2>, scalar_prefetch = 0 : i64, scratch_operands = 0 : i64, tpu.core_type = #tpu.core_type<tc>, window_params = [{transform_indices = @transform_0, window_bounds = array<i64: 8, 896>}, {pipeline_mode = #tpu.pipeline_mode<synchronous>, transform_indices = @transform_1, window_bounds = array<i64: 896, 512>}, {pipeline_mode = #tpu.pipeline_mode<synchronous>, transform_indices = @transform_2, window_bounds = array<i64: 1, 512>}, {pipeline_mode = #tpu.pipeline_mode<synchronous>, transform_indices = @transform_3, window_bounds = array<i64: 512, 16>}, {pipeline_mode = #tpu.pipeline_mode<synchronous>, transform_indices = @transform_4, window_bounds = array<i64: 1, 16>}, {transform_indices = @transform_5, window_bounds = array<i64: 8, 8>}, {pipeline_mode = #tpu.pipeline_mode<synchronous>, transform_indices = @transform_6, window_bounds = array<i64: 8, 512>}, {pipeline_mode = #tpu.pipeline_mode<synchronous>, transform_indices = @transform_7, window_bounds = array<i64: 1, 512>}, {pipeline_mode = #tpu.pipeline_mode<synchronous>, transform_indices = @transform_8, window_bounds = array<i64: 512, 896>}, {pipeline_mode = #tpu.pipeline_mode<synchronous>, transform_indices = @transform_9, window_bounds = array<i64: 1, 896>}, {transform_indices = @transform_10, window_bounds = array<i64: 8, 896>}]} {
    %c0 = arith.constant 0 : index
    %c0_0 = arith.constant 0 : index
    %0 = vector.load %arg1[%c0, %c0_0] : memref<8x896xbf16, #tpu.memory_space<vmem>>, vector<8x896xbf16>
    %c0_1 = arith.constant 0 : index
    %c0_2 = arith.constant 0 : index
    %1 = vector.load %arg2[%c0_1, %c0_2] : memref<896x512xbf16, #tpu.memory_space<vmem>>, vector<896x512xbf16>
    %cst = arith.constant dense<0.000000e+00> : vector<8x512xf32>
    %2 = tpu.matmul %0, %1, %cst {dimension_numbers = #tpu.dot_dimension_numbers<[1], [0], [0], [1], [0, 0, 1, 1], [], []>} : vector<8x896xbf16>, vector<896x512xbf16>, vector<8x512xf32> -> vector<8x512xf32>
    %c0_3 = arith.constant 0 : index
    %c0_4 = arith.constant 0 : index
    %3 = vector.load %arg3[%c0_3, %c0_4] : memref<1x512xf32, #tpu.memory_space<vmem>>, vector<1x512xf32>
    %4 = vector.broadcast %3 : vector<1x512xf32> to vector<8x512xf32>
    %5 = arith.addf %2, %4 : vector<8x512xf32>
    %cst_5 = arith.constant 0.000000e+00 : f32
    %6 = vector.broadcast %cst_5 : f32 to vector<8x512xf32>
    %7 = arith.maximumf %5, %6 : vector<8x512xf32>
    %8 = arith.truncf %7 : vector<8x512xf32> to vector<8x512xbf16>
    %c0_6 = arith.constant 0 : index
    %c0_7 = arith.constant 0 : index
    %9 = vector.load %arg4[%c0_6, %c0_7] : memref<512x16xbf16, #tpu.memory_space<vmem>>, vector<512x16xbf16>
    %cst_8 = arith.constant dense<0.000000e+00> : vector<8x16xf32>
    %10 = tpu.matmul %8, %9, %cst_8 {dimension_numbers = #tpu.dot_dimension_numbers<[1], [0], [0], [1], [0, 0, 1, 1], [], []>} : vector<8x512xbf16>, vector<512x16xbf16>, vector<8x16xf32> -> vector<8x16xf32>
    %c0_9 = arith.constant 0 : index
    %c0_10 = arith.constant 0 : index
    %11 = vector.load %arg5[%c0_9, %c0_10] : memref<1x16xf32, #tpu.memory_space<vmem>>, vector<1x16xf32>
    %12 = vector.broadcast %11 : vector<1x16xf32> to vector<8x16xf32>
    %13 = arith.addf %10, %12 : vector<8x16xf32>
    %14 = vector.extract_strided_slice %13 {offsets = [0, 0], sizes = [8, 8], strides = [1, 1]} : vector<8x16xf32> to vector<8x8xf32>
    %15 = vector.extract_strided_slice %13 {offsets = [0, 8], sizes = [8, 8], strides = [1, 1]} : vector<8x16xf32> to vector<8x8xf32>
    %16 = math.exp %15 : vector<8x8xf32>
    %c0_11 = arith.constant 0 : index
    %c0_12 = arith.constant 0 : index
    %17 = vector.load %arg6[%c0_11, %c0_12] : memref<8x8xf32, #tpu.memory_space<vmem>>, vector<8x8xf32>
    %18 = arith.mulf %16, %17 : vector<8x8xf32>
    %19 = arith.addf %14, %18 : vector<8x8xf32>
    %20 = arith.truncf %19 : vector<8x8xf32> to vector<8x8xbf16>
    %c0_13 = arith.constant 0 : index
    %c0_14 = arith.constant 0 : index
    %21 = vector.load %arg7[%c0_13, %c0_14] : memref<8x512xbf16, #tpu.memory_space<vmem>>, vector<8x512xbf16>
    %cst_15 = arith.constant dense<0.000000e+00> : vector<8x512xf32>
    %22 = tpu.matmul %20, %21, %cst_15 {dimension_numbers = #tpu.dot_dimension_numbers<[1], [0], [0], [1], [0, 0, 1, 1], [], []>} : vector<8x8xbf16>, vector<8x512xbf16>, vector<8x512xf32> -> vector<8x512xf32>
    %c0_16 = arith.constant 0 : index
    %c0_17 = arith.constant 0 : index
    %23 = vector.load %arg8[%c0_16, %c0_17] : memref<1x512xf32, #tpu.memory_space<vmem>>, vector<1x512xf32>
    %24 = vector.broadcast %23 : vector<1x512xf32> to vector<8x512xf32>
    %25 = arith.addf %22, %24 : vector<8x512xf32>
    %cst_18 = arith.constant 0.000000e+00 : f32
    %26 = vector.broadcast %cst_18 : f32 to vector<8x512xf32>
    %27 = arith.maximumf %25, %26 : vector<8x512xf32>
    %28 = arith.truncf %27 : vector<8x512xf32> to vector<8x512xbf16>
    %c0_19 = arith.constant 0 : index
    %c0_20 = arith.constant 0 : index
    %29 = vector.load %arg9[%c0_19, %c0_20] : memref<512x896xbf16, #tpu.memory_space<vmem>>, vector<512x896xbf16>
    %cst_21 = arith.constant dense<0.000000e+00> : vector<8x896xf32>
    %30 = tpu.matmul %28, %29, %cst_21 {dimension_numbers = #tpu.dot_dimension_numbers<[1], [0], [0], [1], [0, 0, 1, 1], [], []>} : vector<8x512xbf16>, vector<512x896xbf16>, vector<8x896xf32> -> vector<8x896xf32>
    %c0_22 = arith.constant 0 : index
    %c0_23 = arith.constant 0 : index
    %31 = vector.load %arg10[%c0_22, %c0_23] : memref<1x896xf32, #tpu.memory_space<vmem>>, vector<1x896xf32>
    %32 = vector.broadcast %31 : vector<1x896xf32> to vector<8x896xf32>
    %33 = arith.addf %30, %32 : vector<8x896xf32>
    %34 = arith.negf %33 : vector<8x896xf32>
    %35 = math.exp %34 : vector<8x896xf32>
    %cst_24 = arith.constant 1.000000e+00 : f32
    %36 = vector.broadcast %cst_24 : f32 to vector<8x896xf32>
    %37 = arith.addf %36, %35 : vector<8x896xf32>
    %38 = arith.divf %36, %37 : vector<8x896xf32>
    %c0_25 = arith.constant 0 : index
    %c0_26 = arith.constant 0 : index
    %39 = vector.load %arg11[%c0_25, %c0_26] : memref<8x896xf32, #tpu.memory_space<vmem>>, vector<8x896xf32>
    tpu.vector_store %arg11[%c0_25, %c0_26], %38 {strides = array<i32>} : memref<8x896xf32, #tpu.memory_space<vmem>>, vector<8x896xf32>,
    return
  }
  func.func @transform_0(%arg0: i32) -> (i32, i32) {
    %c0_i32 = arith.constant 0 : i32
    %c0_i32_0 = arith.constant 0 : i32
    return %arg0, %c0_i32 : i32, i32
  }
  func.func @transform_1(%arg0: i32) -> (i32, i32) {
    %c0_i32 = arith.constant 0 : i32
    %c0_i32_0 = arith.constant 0 : i32
    %c0_i32_1 = arith.constant 0 : i32
    return %c0_i32, %c0_i32_0 : i32, i32
  }
  func.func @transform_2(%arg0: i32) -> (i32, i32) {
    %c0_i32 = arith.constant 0 : i32
    %c0_i32_0 = arith.constant 0 : i32
    %c0_i32_1 = arith.constant 0 : i32
    return %c0_i32, %c0_i32_0 : i32, i32
  }
  func.func @transform_3(%arg0: i32) -> (i32, i32) {
    %c0_i32 = arith.constant 0 : i32
    %c0_i32_0 = arith.constant 0 : i32
    %c0_i32_1 = arith.constant 0 : i32
    return %c0_i32, %c0_i32_0 : i32, i32
  }
  func.func @transform_4(%arg0: i32) -> (i32, i32) {
    %c0_i32 = arith.constant 0 : i32
    %c0_i32_0 = arith.constant 0 : i32
    %c0_i32_1 = arith.constant 0 : i32
    return %c0_i32, %c0_i32_0 : i32, i32
  }
  func.func @transform_5(%arg0: i32) -> (i32, i32) {
    %c0_i32 = arith.constant 0 : i32
    %c0_i32_0 = arith.constant 0 : i32
    return %arg0, %c0_i32 : i32, i32
  }
  func.func @transform_6(%arg0: i32) -> (i32, i32) {
    %c0_i32 = arith.constant 0 : i32
    %c0_i32_0 = arith.constant 0 : i32
    %c0_i32_1 = arith.constant 0 : i32
    return %c0_i32, %c0_i32_0 : i32, i32
  }
  func.func @transform_7(%arg0: i32) -> (i32, i32) {
    %c0_i32 = arith.constant 0 : i32
    %c0_i32_0 = arith.constant 0 : i32
    %c0_i32_1 = arith.constant 0 : i32
    return %c0_i32, %c0_i32_0 : i32, i32
  }
  func.func @transform_8(%arg0: i32) -> (i32, i32) {
    %c0_i32 = arith.constant 0 : i32
    %c0_i32_0 = arith.constant 0 : i32
    %c0_i32_1 = arith.constant 0 : i32
    return %c0_i32, %c0_i32_0 : i32, i32
  }
  func.func @transform_9(%arg0: i32) -> (i32, i32) {
    %c0_i32 = arith.constant 0 : i32
    %c0_i32_0 = arith.constant 0 : i32
    %c0_i32_1 = arith.constant 0 : i32
    return %c0_i32, %c0_i32_0 : i32, i32
  }
  func.func @transform_10(%arg0: i32) -> (i32, i32) {
    %c0_i32 = arith.constant 0 : i32
    %c0_i32_0 = arith.constant 0 : i32
    return %arg0, %c0_i32 : i32, i32
  }
}

</mosaic_0001>

<llo_original>
// kernel: tpu_custom_call.1
$region0: #{tpu_custom_call.1}
  #allocation0 [shape = 'u32[]', space=smem, size = 0x4, offset = 0x4, fixed_abs, tag = 'smem constant byte address 0x4 - core index']
  #allocation1 [shape = 'u32[144,128]{1,0:T(1,128)}', space=vmem, size = 0x12000, scoped, tag = 'internal scratch']
  %s0 = inlined_call_operand.vmem [shape: bf16[16,896], index: 0, kind: input, shape index: {}]
  %s1 = inlined_call_operand.hbm [shape: bf16[896,512], index: 1, kind: input, shape index: {}]
  %s2 = inlined_call_operand.vmem [shape: f32[1,512], index: 2, kind: input, shape index: {}]
  %s3 = inlined_call_operand.vmem [shape: bf16[512,16], index: 3, kind: input, shape index: {}]
  %s4 = inlined_call_operand.vmem [shape: f32[1,16], index: 4, kind: input, shape index: {}]
  %s5 = inlined_call_operand.vmem [shape: f32[16,8], index: 5, kind: input, shape index: {}]
  %s6 = inlined_call_operand.vmem [shape: bf16[8,512], index: 6, kind: input, shape index: {}]
  %s7 = inlined_call_operand.vmem [shape: f32[1,512], index: 7, kind: input, shape index: {}]
  %s8 = inlined_call_operand.hbm [shape: bf16[512,896], index: 8, kind: input, shape index: {}]
  %s9 = inlined_call_operand.vmem [shape: f32[1,896], index: 9, kind: input, shape index: {}]
  %s10 = inlined_call_operand.hbm [shape: f32[16,896], index: 10, kind: output, shape index: {}]
  %s11 = sld [smem:[#allocation0]]
  $region81: #{tpu_custom_call.1} parent=0
    _
  %s13 = ssub.s32 1, %s11
  %s14 = scalar_select 0, %s13, %s11
  $region1: #{tpu_custom_call.1} parent=0
    #allocation2 [shape = 'u8[917504]{0}', space=vmem, size = 0xe0000, scoped, tag = 'input window, operand 1, single buffered']
    #allocation3 [shape = 's32[2]{0}', space=sflag, size = 0x8, scoped, tag = 'scoped memory for tpu_custom_call.1']
    #allocation4 [shape = 's32[2]{0}', space=sflag, size = 0x8, scoped, tag = 'scoped memory for tpu_custom_call.1']
    #allocation5 [shape = 'u8[917504]{0}', space=vmem, size = 0xe0000, scoped, tag = 'input window, operand 8, single buffered']
    #allocation6 [shape = 's32[1]{0}', space=sflag, size = 0x4, scoped, tag = 'scoped memory for tpu_custom_call.1']
    #allocation7 [shape = 'u8[57344]{0}', space=vmem, size = 0xe000, scoped, tag = 'output window, operand 0']
    %15 = vsyncpa [#allocation3], 0
    %16 = vsyncpa [#allocation6], 0
    %17 = vsyncpa [#allocation4], 0
    %s18 = scalar_lea.sflag [#allocation4], 1
    %19 = vsyncpa %s18, 0
    loop: start=0, step=1, limit=4
    $region2: #{tpu_custom_call.1} parent=1 // loop_pre_header
      _
    $region3: #{tpu_custom_call.1} parent=1 // loop_header
      %s21 = sphi 0, %s25
      %p22 = scmp.ge.s32.totalorder %s21, 4
      %s31 = sphi 0, %s33
      %s34 = sphi 0, %s31
      %s35 = sphi 0, %s34
      %s51 = sphi 0, %s35
      %s55 = sphi 0, %s55
      %s57 = sphi 0, %s55
      %s58 = sphi 0, %s57
      %s72 = sphi 0, %s58
      %s76 = sphi 0, %s76
      %s78 = sphi 0, %s76
      %s79 = sphi 0, %s78
      %s93 = sphi 0, %s79
      %s97 = sphi 0, %s97
      %s99 = sphi 0, %s97
      %s100 = sphi 0, %s99
      %s114 = sphi 0, %s100
      %s118 = sphi 0, %s118
      %s120 = sphi 0, %s118
      %s121 = sphi 0, %s120
      %s135 = sphi 0, %s121
      %s141 = sphi 0, %s143
      %s144 = sphi 0, %s141
      %s145 = sphi 0, %s144
      %s161 = sphi 0, %s145
      %s165 = sphi 0, %s165
      %s167 = sphi 0, %s165
      %s168 = sphi 0, %s167
      %s182 = sphi 0, %s168
      %s186 = sphi 0, %s186
      %s188 = sphi 0, %s186
      %s189 = sphi 0, %s188
      %s203 = sphi 0, %s189
      %s207 = sphi 0, %s207
      %s209 = sphi 0, %s207
      %s210 = sphi 0, %s209
      %s224 = sphi 0, %s210
      %s228 = sphi 0, %s228
      %s230 = sphi 0, %s228
      %s231 = sphi 0, %s230
      %s245 = sphi 0, %s231
      %s251 = sphi 0, %s253
      %s254 = sphi 0, %s251
      %s255 = sphi 0, %s254
      %s271 = sphi 0, %s255
    $region4: #{tpu_custom_call.1} parent=1 // loop_header_branch
      %24 = sbr.rel (%p22) target = $region8
    $region5: #{tpu_custom_call.1} parent=1 // loop_body
      %s26 = ssub.s32 %s21, 1
      %s27 = ssub.s32 %s21, 2
      %s28 = sadd.s32 %s21, 1
      %s29 = ssub.s32 %s21, %s28
      %p30 = scmp.eq.s32.totalorder %s29, 0
      %s32 = sadd.s32 %s31, 1
      %s33 = scalar_select %p30, %s31, %s32
      %p36 = pneg %p30
      %p37 = scmp.eq.s32.totalorder %s21, 1
      %p38 = por %p36, %p37
      %p39 = scmp.ne.s32.totalorder %s31, %s34
      %p40 = scmp.eq.s32.totalorder %s21, 0
      %p41 = por %p39, %p40
      %p42 = scmp.ne.s32.totalorder %s31, %s34
      %p43 = scmp.eq.s32.totalorder %s26, 1
      %p44 = por %p42, %p43
      %p45 = scmp.ne.s32.totalorder %s34, %s35
      %p46 = scmp.eq.s32.totalorder %s26, 0
      %p47 = por %p45, %p46
      %p48 = scmp.ne.s32.totalorder %s34, %s35
      %p49 = scmp.eq.s32.totalorder %s27, 1
      %p50 = por %p48, %p49
      %p52 = scmp.ne.s32.totalorder %s35, %s51
      %p53 = scmp.eq.s32.totalorder %s27, 0
      %p54 = por %p52, %p53
      %s56 = sadd.s32 %s55, 1
      %p59 = scmp.eq.s32.totalorder %s21, 1
      %p60 = scmp.ne.s32.totalorder %s55, %s57
      %p61 = scmp.eq.s32.totalorder %s21, 0
      %p62 = por %p60, %p61
      %p63 = scmp.ne.s32.totalorder %s55, %s57
      %p64 = scmp.eq.s32.totalorder %s26, 1
      %p65 = por %p63, %p64
      %p66 = scmp.ne.s32.totalorder %s57, %s58
      %p67 = scmp.eq.s32.totalorder %s26, 0
      %p68 = por %p66, %p67
      %p69 = scmp.ne.s32.totalorder %s57, %s58
      %p70 = scmp.eq.s32.totalorder %s27, 1
      %p71 = por %p69, %p70
      %p73 = scmp.ne.s32.totalorder %s58, %s72
      %p74 = scmp.eq.s32.totalorder %s27, 0
      %p75 = por %p73, %p74
      %s77 = sadd.s32 %s76, 1
      %p80 = scmp.eq.s32.totalorder %s21, 1
      %p81 = scmp.ne.s32.totalorder %s76, %s78
      %p82 = scmp.eq.s32.totalorder %s21, 0
      %p83 = por %p81, %p82
      %p84 = scmp.ne.s32.totalorder %s76, %s78
      %p85 = scmp.eq.s32.totalorder %s26, 1
      %p86 = por %p84, %p85
      %p87 = scmp.ne.s32.totalorder %s78, %s79
      %p88 = scmp.eq.s32.totalorder %s26, 0
      %p89 = por %p87, %p88
      %p90 = scmp.ne.s32.totalorder %s78, %s79
      %p91 = scmp.eq.s32.totalorder %s27, 1
      %p92 = por %p90, %p91
      %p94 = scmp.ne.s32.totalorder %s79, %s93
      %p95 = scmp.eq.s32.totalorder %s27, 0
      %p96 = por %p94, %p95
      %s98 = sadd.s32 %s97, 1
      %p101 = scmp.eq.s32.totalorder %s21, 1
      %p102 = scmp.ne.s32.totalorder %s97, %s99
      %p103 = scmp.eq.s32.totalorder %s21, 0
      %p104 = por %p102, %p103
      %p105 = scmp.ne.s32.totalorder %s97, %s99
      %p106 = scmp.eq.s32.totalorder %s26, 1
      %p107 = por %p105, %p106
      %p108 = scmp.ne.s32.totalorder %s99, %s100
      %p109 = scmp.eq.s32.totalorder %s26, 0
      %p110 = por %p108, %p109
      %p111 = scmp.ne.s32.totalorder %s99, %s100
      %p112 = scmp.eq.s32.totalorder %s27, 1
      %p113 = por %p111, %p112
      %p115 = scmp.ne.s32.totalorder %s100, %s114
      %p116 = scmp.eq.s32.totalorder %s27, 0
      %p117 = por %p115, %p116
      %s119 = sadd.s32 %s118, 1
      %p122 = scmp.eq.s32.totalorder %s21, 1
      %p123 = scmp.ne.s32.totalorder %s118, %s120
      %p124 = scmp.eq.s32.totalorder %s21, 0
      %p125 = por %p123, %p124
      %p126 = scmp.ne.s32.totalorder %s118, %s120
      %p127 = scmp.eq.s32.totalorder %s26, 1
      %p128 = por %p126, %p127
      %p129 = scmp.ne.s32.totalorder %s120, %s121
      %p130 = scmp.eq.s32.totalorder %s26, 0
      %p131 = por %p129, %p130
      %p132 = scmp.ne.s32.totalorder %s120, %s121
      %p133 = scmp.eq.s32.totalorder %s27, 1
      %p134 = por %p132, %p133
      %p136 = scmp.ne.s32.totalorder %s121, %s135
      %p137 = scmp.eq.s32.totalorder %s27, 0
      %p138 = por %p136, %p137
      %s139 = ssub.s32 %s21, %s28
      %p140 = scmp.eq.s32.totalorder %s139, 0
      %s142 = sadd.s32 %s141, 1
      %s143 = scalar_select %p140, %s141, %s142
      %p146 = pneg %p140
      %p147 = scmp.eq.s32.totalorder %s21, 1
      %p148 = por %p146, %p147
      %p149 = scmp.ne.s32.totalorder %s141, %s144
      %p150 = scmp.eq.s32.totalorder %s21, 0
      %p151 = por %p149, %p150
      %p152 = scmp.ne.s32.totalorder %s141, %s144
      %p153 = scmp.eq.s32.totalorder %s26, 1
      %p154 = por %p152, %p153
      %p155 = scmp.ne.s32.totalorder %s144, %s145
      %p156 = scmp.eq.s32.totalorder %s26, 0
      %p157 = por %p155, %p156
      %p158 = scmp.ne.s32.totalorder %s144, %s145
      %p159 = scmp.eq.s32.totalorder %s27, 1
      %p160 = por %p158, %p159
      %p162 = scmp.ne.s32.totalorder %s145, %s161
      %p163 = scmp.eq.s32.totalorder %s27, 0
      %p164 = por %p162, %p163
      %s166 = sadd.s32 %s165, 1
      %p169 = scmp.eq.s32.totalorder %s21, 1
      %p170 = scmp.ne.s32.totalorder %s165, %s167
      %p171 = scmp.eq.s32.totalorder %s21, 0
      %p172 = por %p170, %p171
      %p173 = scmp.ne.s32.totalorder %s165, %s167
      %p174 = scmp.eq.s32.totalorder %s26, 1
      %p175 = por %p173, %p174
      %p176 = scmp.ne.s32.totalorder %s167, %s168
      %p177 = scmp.eq.s32.totalorder %s26, 0
      %p178 = por %p176, %p177
      %p179 = scmp.ne.s32.totalorder %s167, %s168
      %p180 = scmp.eq.s32.totalorder %s27, 1
      %p181 = por %p179, %p180
      %p183 = scmp.ne.s32.totalorder %s168, %s182
      %p184 = scmp.eq.s32.totalorder %s27, 0
      %p185 = por %p183, %p184
      %s187 = sadd.s32 %s186, 1
      %p190 = scmp.eq.s32.totalorder %s21, 1
      %p191 = scmp.ne.s32.totalorder %s186, %s188
      %p192 = scmp.eq.s32.totalorder %s21, 0
      %p193 = por %p191, %p192
      %p194 = scmp.ne.s32.totalorder %s186, %s188
      %p195 = scmp.eq.s32.totalorder %s26, 1
      %p196 = por %p194, %p195
      %p197 = scmp.ne.s32.totalorder %s188, %s189
      %p198 = scmp.eq.s32.totalorder %s26, 0
      %p199 = por %p197, %p198
      %p200 = scmp.ne.s32.totalorder %s188, %s189
      %p201 = scmp.eq.s32.totalorder %s27, 1
      %p202 = por %p200, %p201
      %p204 = scmp.ne.s32.totalorder %s189, %s203
      %p205 = scmp.eq.s32.totalorder %s27, 0
      %p206 = por %p204, %p205
      %s208 = sadd.s32 %s207, 1
      %p211 = scmp.eq.s32.totalorder %s21, 1
      %p212 = scmp.ne.s32.totalorder %s207, %s209
      %p213 = scmp.eq.s32.totalorder %s21, 0
      %p214 = por %p212, %p213
      %p215 = scmp.ne.s32.totalorder %s207, %s209
      %p216 = scmp.eq.s32.totalorder %s26, 1
      %p217 = por %p215, %p216
      %p218 = scmp.ne.s32.totalorder %s209, %s210
      %p219 = scmp.eq.s32.totalorder %s26, 0
      %p220 = por %p218, %p219
      %p221 = scmp.ne.s32.totalorder %s209, %s210
      %p222 = scmp.eq.s32.totalorder %s27, 1
      %p223 = por %p221, %p222
      %p225 = scmp.ne.s32.totalorder %s210, %s224
      %p226 = scmp.eq.s32.totalorder %s27, 0
      %p227 = por %p225, %p226
      %s229 = sadd.s32 %s228, 1
      %p232 = scmp.eq.s32.totalorder %s21, 1
      %p233 = scmp.ne.s32.totalorder %s228, %s230
      %p234 = scmp.eq.s32.totalorder %s21, 0
      %p235 = por %p233, %p234
      %p236 = scmp.ne.s32.totalorder %s228, %s230
      %p237 = scmp.eq.s32.totalorder %s26, 1
      %p238 = por %p236, %p237
      %p239 = scmp.ne.s32.totalorder %s230, %s231
      %p240 = scmp.eq.s32.totalorder %s26, 0
      %p241 = por %p239, %p240
      %p242 = scmp.ne.s32.totalorder %s230, %s231
      %p243 = scmp.eq.s32.totalorder %s27, 1
      %p244 = por %p242, %p243
      %p246 = scmp.ne.s32.totalorder %s231, %s245
      %p247 = scmp.eq.s32.totalorder %s27, 0
      %p248 = por %p246, %p247
      %s249 = ssub.s32 %s21, %s28
      %p250 = scmp.eq.s32.totalorder %s249, 0
      %s252 = sadd.s32 %s251, 1
      %s253 = scalar_select %p250, %s251, %s252
      %p256 = pneg %p250
      %p257 = scmp.eq.s32.totalorder %s21, 1
      %p258 = por %p256, %p257
      %p259 = scmp.ne.s32.totalorder %s251, %s254
      %p260 = scmp.eq.s32.totalorder %s21, 0
      %p261 = por %p259, %p260
      %p262 = scmp.ne.s32.totalorder %s251, %s254
      %p263 = scmp.eq.s32.totalorder %s26, 1
      %p264 = por %p262, %p263
      %p265 = scmp.ne.s32.totalorder %s254, %s255
      %p266 = scmp.eq.s32.totalorder %s26, 0
      %p267 = por %p265, %p266
      %p268 = scmp.ne.s32.totalorder %s254, %s255
      %p269 = scmp.eq.s32.totalorder %s27, 1
      %p270 = por %p268, %p269
      %p272 = scmp.ne.s32.totalorder %s255, %s271
      %p273 = scmp.eq.s32.totalorder %s27, 0
      %p274 = por %p272, %p273
      %p275 = scmp.le.s32.totalorder 1, %s21
      %p276 = scmp.lt.s32.totalorder %s21, 3
      %p277 = pnand %p275, %p276
      %p278 = pneg %p277
      // Predicated region
      $region9: #{tpu_custom_call.1} parent=5 // pred_check
        _
      $region10: #{tpu_custom_call.1} parent=5 // pred_check_branch
        %280 = sbr.rel (%p277) target = $region12
      $region11: #{tpu_custom_call.1} parent=5 // pred_region
        %s281 = ssub.s32 %s21, 1
        // Predicated region
        $region13: #{tpu_custom_call.1} parent=11 // pred_check
          %p282 = pneg %p68
        $region14: #{tpu_custom_call.1} parent=11 // pred_check_branch
          %284 = sbr.rel (%p282) target = $region16
        $region15: #{tpu_custom_call.1} parent=11 // pred_region
          %s286 = ssub.s32 28672, 28672
          %287 = vsyncadd [#allocation3], %s286
          %s288 = sshll.u32 [#allocation2], 4
          %s289 = int_to_ptr.vmem [resolvable:$true] %s288
          %294 = dma.hbm_to_vmem [thread:$0]  %s1, 28672, %s289, [#allocation3], 256, 256, 16
        $region16: #{tpu_custom_call.1} parent=11 // pred_fallthru
          _
        // Predicated region
        $region17: #{tpu_custom_call.1} parent=11 // pred_check
          %p295 = pneg %p89
        $region18: #{tpu_custom_call.1} parent=11 // pred_check_branch
          %297 = sbr.rel (%p295) target = $region20
        $region19: #{tpu_custom_call.1} parent=11 // pred_region
          _
        $region20: #{tpu_custom_call.1} parent=11 // pred_fallthru
          _
        // Predicated region
        $region21: #{tpu_custom_call.1} parent=11 // pred_check
          %p298 = pneg %p110
        $region22: #{tpu_custom_call.1} parent=11 // pred_check_branch
          %300 = sbr.rel (%p298) target = $region24
        $region23: #{tpu_custom_call.1} parent=11 // pred_region
          _
        $region24: #{tpu_custom_call.1} parent=11 // pred_fallthru
          _
        // Predicated region
        $region25: #{tpu_custom_call.1} parent=11 // pred_check
          %p301 = pneg %p131
        $region26: #{tpu_custom_call.1} parent=11 // pred_check_branch
          %303 = sbr.rel (%p301) target = $region28
        $region27: #{tpu_custom_call.1} parent=11 // pred_region
          _
        $region28: #{tpu_custom_call.1} parent=11 // pred_fallthru
          _
        // Predicated region
        $region29: #{tpu_custom_call.1} parent=11 // pred_check
          %p304 = pneg %p178
        $region30: #{tpu_custom_call.1} parent=11 // pred_check_branch
          %306 = sbr.rel (%p304) target = $region32
        $region31: #{tpu_custom_call.1} parent=11 // pred_region
          _
        $region32: #{tpu_custom_call.1} parent=11 // pred_fallthru
          _
        // Predicated region
        $region33: #{tpu_custom_call.1} parent=11 // pred_check
          %p307 = pneg %p199
        $region34: #{tpu_custom_call.1} parent=11 // pred_check_branch
          %309 = sbr.rel (%p307) target = $region36
        $region35: #{tpu_custom_call.1} parent=11 // pred_region
          _
        $region36: #{tpu_custom_call.1} parent=11 // pred_fallthru
          _
        // Predicated region
        $region37: #{tpu_custom_call.1} parent=11 // pred_check
          %p310 = pneg %p220
        $region38: #{tpu_custom_call.1} parent=11 // pred_check_branch
          %312 = sbr.rel (%p310) target = $region40
        $region39: #{tpu_custom_call.1} parent=11 // pred_region
          %s314 = ssub.s32 28672, 28672
          %315 = vsyncadd [#allocation6], %s314
          %s316 = sshll.u32 [#allocation5], 4
          %s317 = int_to_ptr.vmem [resolvable:$true] %s316
          %322 = dma.hbm_to_vmem [thread:$0]  %s8, 28672, %s317, [#allocation6], 448, 448, 28
        $region40: #{tpu_custom_call.1} parent=11 // pred_fallthru
          _
        // Predicated region
        $region41: #{tpu_custom_call.1} parent=11 // pred_check
          %p323 = pneg %p241
        $region42: #{tpu_custom_call.1} parent=11 // pred_check_branch
          %325 = sbr.rel (%p323) target = $region44
        $region43: #{tpu_custom_call.1} parent=11 // pred_region
          _
        $region44: #{tpu_custom_call.1} parent=11 // pred_fallthru
          _
      $region12: #{tpu_custom_call.1} parent=5 // pred_fallthru
        _
      %p326 = scmp.lt.s32.totalorder %s21, 2
      // Predicated region
      $region45: #{tpu_custom_call.1} parent=5 // pred_check
        %p327 = pneg %p326
      $region46: #{tpu_custom_call.1} parent=5 // pred_check_branch
        %329 = sbr.rel (%p327) target = $region48
      $region47: #{tpu_custom_call.1} parent=5 // pred_region
        // Predicated region
        $region49: #{tpu_custom_call.1} parent=47 // pred_check
          %p330 = pneg %p41
        $region50: #{tpu_custom_call.1} parent=47 // pred_check_branch
          %332 = sbr.rel (%p330) target = $region52
        $region51: #{tpu_custom_call.1} parent=47 // pred_region
          %p333 = scmp.lt.s32.totalorder %s21, 1
          %s334 = scalar_select %p333, %s21, 1
          %s335 = smul.addr %s334, 7
          %s336 = smul.addr %s335, 4
          %s337 = scalar_lea.vmem %s0, %s336
        $region52: #{tpu_custom_call.1} parent=47 // pred_fallthru
          _
        // Predicated region
        $region53: #{tpu_custom_call.1} parent=47 // pred_check
          %p338 = pneg %p151
        $region54: #{tpu_custom_call.1} parent=47 // pred_check_branch
          %340 = sbr.rel (%p338) target = $region56
        $region55: #{tpu_custom_call.1} parent=47 // pred_region
          %p341 = scmp.lt.s32.totalorder %s21, 1
          %s342 = scalar_select %p341, %s21, 1
          %s343 = smul.addr %s342, 8
          %s344 = scalar_lea.vmem %s5, %s343
        $region56: #{tpu_custom_call.1} parent=47 // pred_fallthru
          _
      $region48: #{tpu_custom_call.1} parent=5 // pred_fallthru
        _
      %p345 = scmp.le.s32.totalorder 1, %s21
      %p346 = scmp.lt.s32.totalorder %s21, 3
      %p347 = pnand %p345, %p346
      %p348 = pneg %p347
      // Predicated region
      $region57: #{tpu_custom_call.1} parent=5 // pred_check
        _
      $region58: #{tpu_custom_call.1} parent=5 // pred_check_branch
        %350 = sbr.rel (%p347) target = $region60
      $region59: #{tpu_custom_call.1} parent=5 // pred_region
        %s351 = ssub.s32 %s21, 1
        // Predicated region
        $region61: #{tpu_custom_call.1} parent=59 // pred_check
          %p352 = pneg %p68
        $region62: #{tpu_custom_call.1} parent=59 // pred_check_branch
          %354 = sbr.rel (%p352) target = $region64
        $region63: #{tpu_custom_call.1} parent=59 // pred_region
          %355 = dma.done [#allocation3], 28672
        $region64: #{tpu_custom_call.1} parent=59 // pred_fallthru
          _
        // Predicated region
        $region65: #{tpu_custom_call.1} parent=59 // pred_check
          %p356 = pneg %p220
        $region66: #{tpu_custom_call.1} parent=59 // pred_check_branch
          %358 = sbr.rel (%p356) target = $region68
        $region67: #{tpu_custom_call.1} parent=59 // pred_region
          %359 = dma.done [#allocation6], 28672
        $region68: #{tpu_custom_call.1} parent=59 // pred_fallthru
          _
        %p360 = scmp.lt.s32.totalorder %s26, 1
        %s361 = scalar_select %p360, %s26, 1
        %s362 = smul.addr %s361, 7
        %s363 = smul.addr %s362, 4
        %s364 = scalar_lea.vmem %s0, %s363
        %p365 = pneg %p47
        %p366 = pneg %p44
        %p367 = pneg %p68
        %p368 = pneg %p65
        %p369 = pneg %p89
        %p370 = pneg %p86
        %p371 = pneg %p110
        %p372 = pneg %p107
        %p373 = pneg %p131
        %p374 = pneg %p128
        %p375 = scmp.lt.s32.totalorder %s26, 1
        %s376 = scalar_select %p375, %s26, 1
        %s377 = smul.addr %s376, 8
        %s378 = scalar_lea.vmem %s5, %s377
        %p379 = pneg %p157
        %p380 = pneg %p154
        %p381 = pneg %p178
        %p382 = pneg %p175
        %p383 = pneg %p199
        %p384 = pneg %p196
        %p385 = pneg %p220
        %p386 = pneg %p217
        %p387 = pneg %p241
        %p388 = pneg %p238
        %p389 = pneg %p267
        %p390 = pneg %p264
        %s391 = sand.u32 %s254, 1
        %s392 = scalar_lea.sflag [#allocation4], %s391
        %s393 = sand.u32 %s254, 1
        %s394 = smul.addr %s393, 56
        %s395 = scalar_lea.vmem [#allocation7], %s394
        %p396 = scmp.lt.s32.totalorder %s26, 1
        %s397 = scalar_select %p396, %s26, 1
        %s398 = smul.addr %s397, 7
        %s399 = smul.addr %s398, 4
        %s400 = scalar_lea.vmem %s0, %s399
        %p401 = scmp.lt.s32.totalorder %s26, 1
        %s402 = scalar_select %p401, %s26, 1
        %s403 = smul.addr %s402, 8
        %s404 = scalar_lea.vmem %s5, %s403
        %v406 = vld [vmem:[%s400] sm:$0xff]
        %v407 = vld [vmem:[%s400 + $0x8] sm:$0xff]
        %v408 = vld [vmem:[%s400 + $0x10] sm:$0xff]
        %v409 = vld [vmem:[%s400 + $0x18] sm:$0xf]
        %v410 = vld [vmem:[#allocation2] sm:$0xff]
        %v411 = vld [vmem:[#allocation2 + $0x8] sm:$0xff]
        %v412 = vld [vmem:[#allocation2 + $0x10] sm:$0xff]
        %v413 = vld [vmem:[#allocation2 + $0x18] sm:$0xff]
        %v414 = vld [vmem:[#allocation2 + $0x20] sm:$0xff]
        %v415 = vld [vmem:[#allocation2 + $0x28] sm:$0xff]
        %v416 = vld [vmem:[#allocation2 + $0x30] sm:$0xff]
        %v417 = vld [vmem:[#allocation2 + $0x38] sm:$0xff]
        %v418 = vld [vmem:[#allocation2 + $0x40] sm:$0xff]
        %v419 = vld [vmem:[#allocation2 + $0x48] sm:$0xff]
        %v420 = vld [vmem:[#allocation2 + $0x50] sm:$0xff]
        %v421 = vld [vmem:[#allocation2 + $0x58] sm:$0xff]
        %v422 = vld [vmem:[#allocation2 + $0x60] sm:$0xff]
        %v423 = vld [vmem:[#allocation2 + $0x68] sm:$0xff]
        %v424 = vld [vmem:[#allocation2 + $0x70] sm:$0xff]
        %v425 = vld [vmem:[#allocation2 + $0x78] sm:$0xff]
        %v426 = vld [vmem:[#allocation2 + $0x80] sm:$0xff]
        %v427 = vld [vmem:[#allocation2 + $0x88] sm:$0xff]
        %v428 = vld [vmem:[#allocation2 + $0x90] sm:$0xff]
        %v429 = vld [vmem:[#allocation2 + $0x98] sm:$0xff]
        %v430 = vld [vmem:[#allocation2 + $0xa0] sm:$0xff]
        %v431 = vld [vmem:[#allocation2 + $0xa8] sm:$0xff]
        %v432 = vld [vmem:[#allocation2 + $0xb0] sm:$0xff]
        %v433 = vld [vmem:[#allocation2 + $0xb8] sm:$0xff]
        %v434 = vld [vmem:[#allocation2 + $0xc0] sm:$0xff]
        %v435 = vld [vmem:[#allocation2 + $0xc8] sm:$0xff]
        %v436 = vld [vmem:[#allocation2 + $0xd0] sm:$0xff]
        %v437 = vld [vmem:[#allocation2 + $0xd8] sm:$0xff]
        %v438 = vld [vmem:[#allocation2 + $0xe0] sm:$0xff]
        %v439 = vld [vmem:[#allocation2 + $0xe8] sm:$0xff]
        %v440 = vld [vmem:[#allocation2 + $0xf0] sm:$0xff]
        %v441 = vld [vmem:[#allocation2 + $0xf8] sm:$0xff]
        %v442 = vld [vmem:[#allocation2 + $0x100] sm:$0xff]
        %v443 = vld [vmem:[#allocation2 + $0x108] sm:$0xff]
        %v444 = vld [vmem:[#allocation2 + $0x110] sm:$0xff]
        %v445 = vld [vmem:[#allocation2 + $0x118] sm:$0xff]
        %v446 = vld [vmem:[#allocation2 + $0x120] sm:$0xff]
        %v447 = vld [vmem:[#allocation2 + $0x128] sm:$0xff]
        %v448 = vld [vmem:[#allocation2 + $0x130] sm:$0xff]
        %v449 = vld [vmem:[#allocation2 + $0x138] sm:$0xff]
        %v450 = vld [vmem:[#allocation2 + $0x140] sm:$0xff]
        %v451 = vld [vmem:[#allocation2 + $0x148] sm:$0xff]
        %v452 = vld [vmem:[#allocation2 + $0x150] sm:$0xff]
        %v453 = vld [vmem:[#allocation2 + $0x158] sm:$0xff]
        %v454 = vld [vmem:[#allocation2 + $0x160] sm:$0xff]
        %v455 = vld [vmem:[#allocation2 + $0x168] sm:$0xff]
        %v456 = vld [vmem:[#allocation2 + $0x170] sm:$0xff]
        %v457 = vld [vmem:[#allocation2 + $0x178] sm:$0xff]
        %v458 = vld [vmem:[#allocation2 + $0x180] sm:$0xff]
        %v459 = vld [vmem:[#allocation2 + $0x188] sm:$0xff]
        %v460 = vld [vmem:[#allocation2 + $0x190] sm:$0xff]
        %v461 = vld [vmem:[#allocation2 + $0x198] sm:$0xff]
        %v462 = vld [vmem:[#allocation2 + $0x1a0] sm:$0xff]
        %v463 = vld [vmem:[#allocation2 + $0x1a8] sm:$0xff]
        %v464 = vld [vmem:[#allocation2 + $0x1b0] sm:$0xff]
        %v465 = vld [vmem:[#allocation2 + $0x1b8] sm:$0xff]
        %v466 = vld [vmem:[#allocation2 + $0x1c0] sm:$0xff]
        %v467 = vld [vmem:[#allocation2 + $0x1c8] sm:$0xff]
        %v468 = vld [vmem:[#allocation2 + $0x1d0] sm:$0xff]
        %v469 = vld [vmem:[#allocation2 + $0x1d8] sm:$0xff]
        %v470 = vld [vmem:[#allocation2 + $0x1e0] sm:$0xff]
        %v471 = vld [vmem:[#allocation2 + $0x1e8] sm:$0xff]
        %v472 = vld [vmem:[#allocation2 + $0x1f0] sm:$0xff]
        %v473 = vld [vmem:[#allocation2 + $0x1f8] sm:$0xff]
        %v474 = vld [vmem:[#allocation2 + $0x200] sm:$0xff]
        %v475 = vld [vmem:[#allocation2 + $0x208] sm:$0xff]
        %v476 = vld [vmem:[#allocation2 + $0x210] sm:$0xff]
        %v477 = vld [vmem:[#allocation2 + $0x218] sm:$0xff]
        %v478 = vld [vmem:[#allocation2 + $0x220] sm:$0xff]
        %v479 = vld [vmem:[#allocation2 + $0x228] sm:$0xff]
        %v480 = vld [vmem:[#allocation2 + $0x230] sm:$0xff]
        %v481 = vld [vmem:[#allocation2 + $0x238] sm:$0xff]
        %v482 = vld [vmem:[#allocation2 + $0x240] sm:$0xff]
        %v483 = vld [vmem:[#allocation2 + $0x248] sm:$0xff]
        %v484 = vld [vmem:[#allocation2 + $0x250] sm:$0xff]
        %v485 = vld [vmem:[#allocation2 + $0x258] sm:$0xff]
        %v486 = vld [vmem:[#allocation2 + $0x260] sm:$0xff]
        %v487 = vld [vmem:[#allocation2 + $0x268] sm:$0xff]
        %v488 = vld [vmem:[#allocation2 + $0x270] sm:$0xff]
        %v489 = vld [vmem:[#allocation2 + $0x278] sm:$0xff]
        %v490 = vld [vmem:[#allocation2 + $0x280] sm:$0xff]
        %v491 = vld [vmem:[#allocation2 + $0x288] sm:$0xff]
        %v492 = vld [vmem:[#allocation2 + $0x290] sm:$0xff]
        %v493 = vld [vmem:[#allocation2 + $0x298] sm:$0xff]
        %v494 = vld [vmem:[#allocation2 + $0x2a0] sm:$0xff]
        %v495 = vld [vmem:[#allocation2 + $0x2a8] sm:$0xff]
        %v496 = vld [vmem:[#allocation2 + $0x2b0] sm:$0xff]
        %v497 = vld [vmem:[#allocation2 + $0x2b8] sm:$0xff]
        %v498 = vld [vmem:[#allocation2 + $0x2c0] sm:$0xff]
        %v499 = vld [vmem:[#allocation2 + $0x2c8] sm:$0xff]
        %v500 = vld [vmem:[#allocation2 + $0x2d0] sm:$0xff]
        %v501 = vld [vmem:[#allocation2 + $0x2d8] sm:$0xff]
        %v502 = vld [vmem:[#allocation2 + $0x2e0] sm:$0xff]
        %v503 = vld [vmem:[#allocation2 + $0x2e8] sm:$0xff]
        %v504 = vld [vmem:[#allocation2 + $0x2f0] sm:$0xff]
        %v505 = vld [vmem:[#allocation2 + $0x2f8] sm:$0xff]
        %v506 = vld [vmem:[#allocation2 + $0x300] sm:$0xff]
        %v507 = vld [vmem:[#allocation2 + $0x308] sm:$0xff]
        %v508 = vld [vmem:[#allocation2 + $0x310] sm:$0xff]
        %v509 = vld [vmem:[#allocation2 + $0x318] sm:$0xff]
        %v510 = vld [vmem:[#allocation2 + $0x320] sm:$0xff]
        %v511 = vld [vmem:[#allocation2 + $0x328] sm:$0xff]
        %v512 = vld [vmem:[#allocation2 + $0x330] sm:$0xff]
        %v513 = vld [vmem:[#allocation2 + $0x338] sm:$0xff]
        %v514 = vld [vmem:[#allocation2 + $0x340] sm:$0xff]
        %v515 = vld [vmem:[#allocation2 + $0x348] sm:$0xff]
        %v516 = vld [vmem:[#allocation2 + $0x350] sm:$0xff]
        %v517 = vld [vmem:[#allocation2 + $0x358] sm:$0xff]
        %v518 = vld [vmem:[#allocation2 + $0x360] sm:$0xff]
        %v519 = vld [vmem:[#allocation2 + $0x368] sm:$0xff]
        %v520 = vld [vmem:[#allocation2 + $0x370] sm:$0xff]
        %v521 = vld [vmem:[#allocation2 + $0x378] sm:$0xff]
        %v522 = vld [vmem:[#allocation2 + $0x380] sm:$0xff]
        %v523 = vld [vmem:[#allocation2 + $0x388] sm:$0xff]
        %v524 = vld [vmem:[#allocation2 + $0x390] sm:$0xff]
        %v525 = vld [vmem:[#allocation2 + $0x398] sm:$0xff]
        %v526 = vld [vmem:[#allocation2 + $0x3a0] sm:$0xff]
        %v527 = vld [vmem:[#allocation2 + $0x3a8] sm:$0xff]
        %v528 = vld [vmem:[#allocation2 + $0x3b0] sm:$0xff]
        %v529 = vld [vmem:[#allocation2 + $0x3b8] sm:$0xff]
        %v530 = vld [vmem:[#allocation2 + $0x3c0] sm:$0xff]
        %v531 = vld [vmem:[#allocation2 + $0x3c8] sm:$0xff]
        %v532 = vld [vmem:[#allocation2 + $0x3d0] sm:$0xff]
        %v533 = vld [vmem:[#allocation2 + $0x3d8] sm:$0xff]
        %v534 = vld [vmem:[#allocation2 + $0x3e0] sm:$0xff]
        %v535 = vld [vmem:[#allocation2 + $0x3e8] sm:$0xff]
        %v536 = vld [vmem:[#allocation2 + $0x3f0] sm:$0xff]
        %v537 = vld [vmem:[#allocation2 + $0x3f8] sm:$0xff]
        %v538 = vld [vmem:[#allocation2 + $0x400] sm:$0xff]
        %v539 = vld [vmem:[#allocation2 + $0x408] sm:$0xff]
        %v540 = vld [vmem:[#allocation2 + $0x410] sm:$0xff]
        %v541 = vld [vmem:[#allocation2 + $0x418] sm:$0xff]
        %v542 = vld [vmem:[#allocation2 + $0x420] sm:$0xff]
        %v543 = vld [vmem:[#allocation2 + $0x428] sm:$0xff]
        %v544 = vld [vmem:[#allocation2 + $0x430] sm:$0xff]
        %v545 = vld [vmem:[#allocation2 + $0x438] sm:$0xff]
        %v546 = vld [vmem:[#allocation2 + $0x440] sm:$0xff]
        %v547 = vld [vmem:[#allocation2 + $0x448] sm:$0xff]
        %v548 = vld [vmem:[#allocation2 + $0x450] sm:$0xff]
        %v549 = vld [vmem:[#allocation2 + $0x458] sm:$0xff]
        %v550 = vld [vmem:[#allocation2 + $0x460] sm:$0xff]
        %v551 = vld [vmem:[#allocation2 + $0x468] sm:$0xff]
        %v552 = vld [vmem:[#allocation2 + $0x470] sm:$0xff]
        %v553 = vld [vmem:[#allocation2 + $0x478] sm:$0xff]
        %v554 = vld [vmem:[#allocation2 + $0x480] sm:$0xff]
        %v555 = vld [vmem:[#allocation2 + $0x488] sm:$0xff]
        %v556 = vld [vmem:[#allocation2 + $0x490] sm:$0xff]
        %v557 = vld [vmem:[#allocation2 + $0x498] sm:$0xff]
        %v558 = vld [vmem:[#allocation2 + $0x4a0] sm:$0xff]
        %v559 = vld [vmem:[#allocation2 + $0x4a8] sm:$0xff]
        %v560 = vld [vmem:[#allocation2 + $0x4b0] sm:$0xff]
        %v561 = vld [vmem:[#allocation2 + $0x4b8] sm:$0xff]
        %v562 = vld [vmem:[#allocation2 + $0x4c0] sm:$0xff]
        %v563 = vld [vmem:[#allocation2 + $0x4c8] sm:$0xff]
        %v564 = vld [vmem:[#allocation2 + $0x4d0] sm:$0xff]
        %v565 = vld [vmem:[#allocation2 + $0x4d8] sm:$0xff]
        %v566 = vld [vmem:[#allocation2 + $0x4e0] sm:$0xff]
        %v567 = vld [vmem:[#allocation2 + $0x4e8] sm:$0xff]
        %v568 = vld [vmem:[#allocation2 + $0x4f0] sm:$0xff]
        %v569 = vld [vmem:[#allocation2 + $0x4f8] sm:$0xff]
        %v570 = vld [vmem:[#allocation2 + $0x500] sm:$0xff]
        %v571 = vld [vmem:[#allocation2 + $0x508] sm:$0xff]
        %v572 = vld [vmem:[#allocation2 + $0x510] sm:$0xff]
        %v573 = vld [vmem:[#allocation2 + $0x518] sm:$0xff]
        %v574 = vld [vmem:[#allocation2 + $0x520] sm:$0xff]
        %v575 = vld [vmem:[#allocation2 + $0x528] sm:$0xff]
        %v576 = vld [vmem:[#allocation2 + $0x530] sm:$0xff]
        %v577 = vld [vmem:[#allocation2 + $0x538] sm:$0xff]
        %v578 = vld [vmem:[#allocation2 + $0x540] sm:$0xff]
        %v579 = vld [vmem:[#allocation2 + $0x548] sm:$0xff]
        %v580 = vld [vmem:[#allocation2 + $0x550] sm:$0xff]
        %v581 = vld [vmem:[#allocation2 + $0x558] sm:$0xff]
        %v582 = vld [vmem:[#allocation2 + $0x560] sm:$0xff]
        %v583 = vld [vmem:[#allocation2 + $0x568] sm:$0xff]
        %v584 = vld [vmem:[#allocation2 + $0x570] sm:$0xff]
        %v585 = vld [vmem:[#allocation2 + $0x578] sm:$0xff]
        %v586 = vld [vmem:[#allocation2 + $0x580] sm:$0xff]
        %v587 = vld [vmem:[#allocation2 + $0x588] sm:$0xff]
        %v588 = vld [vmem:[#allocation2 + $0x590] sm:$0xff]
        %v589 = vld [vmem:[#allocation2 + $0x598] sm:$0xff]
        %v590 = vld [vmem:[#allocation2 + $0x5a0] sm:$0xff]
        %v591 = vld [vmem:[#allocation2 + $0x5a8] sm:$0xff]
        %v592 = vld [vmem:[#allocation2 + $0x5b0] sm:$0xff]
        %v593 = vld [vmem:[#allocation2 + $0x5b8] sm:$0xff]
        %v594 = vld [vmem:[#allocation2 + $0x5c0] sm:$0xff]
        %v595 = vld [vmem:[#allocation2 + $0x5c8] sm:$0xff]
        %v596 = vld [vmem:[#allocation2 + $0x5d0] sm:$0xff]
        %v597 = vld [vmem:[#allocation2 + $0x5d8] sm:$0xff]
        %v598 = vld [vmem:[#allocation2 + $0x5e0] sm:$0xff]
        %v599 = vld [vmem:[#allocation2 + $0x5e8] sm:$0xff]
        %v600 = vld [vmem:[#allocation2 + $0x5f0] sm:$0xff]
        %v601 = vld [vmem:[#allocation2 + $0x5f8] sm:$0xff]
        %v602 = vld [vmem:[#allocation2 + $0x600] sm:$0xff]
        %v603 = vld [vmem:[#allocation2 + $0x608] sm:$0xff]
        %v604 = vld [vmem:[#allocation2 + $0x610] sm:$0xff]
        %v605 = vld [vmem:[#allocation2 + $0x618] sm:$0xff]
        %v606 = vld [vmem:[#allocation2 + $0x620] sm:$0xff]
        %v607 = vld [vmem:[#allocation2 + $0x628] sm:$0xff]
        %v608 = vld [vmem:[#allocation2 + $0x630] sm:$0xff]
        %v609 = vld [vmem:[#allocation2 + $0x638] sm:$0xff]
        %v610 = vld [vmem:[#allocation2 + $0x640] sm:$0xff]
        %v611 = vld [vmem:[#allocation2 + $0x648] sm:$0xff]
        %v612 = vld [vmem:[#allocation2 + $0x650] sm:$0xff]
        %v613 = vld [vmem:[#allocation2 + $0x658] sm:$0xff]
        %v614 = vld [vmem:[#allocation2 + $0x660] sm:$0xff]
        %v615 = vld [vmem:[#allocation2 + $0x668] sm:$0xff]
        %v616 = vld [vmem:[#allocation2 + $0x670] sm:$0xff]
        %v617 = vld [vmem:[#allocation2 + $0x678] sm:$0xff]
        %v618 = vld [vmem:[#allocation2 + $0x680] sm:$0xff]
        %v619 = vld [vmem:[#allocation2 + $0x688] sm:$0xff]
        %v620 = vld [vmem:[#allocation2 + $0x690] sm:$0xff]
        %v621 = vld [vmem:[#allocation2 + $0x698] sm:$0xff]
        %v622 = vld [vmem:[#allocation2 + $0x6a0] sm:$0xff]
        %v623 = vld [vmem:[#allocation2 + $0x6a8] sm:$0xff]
        %v624 = vld [vmem:[#allocation2 + $0x6b0] sm:$0xff]
        %v625 = vld [vmem:[#allocation2 + $0x6b8] sm:$0xff]
        %v626 = vld [vmem:[#allocation2 + $0x6c0] sm:$0xff]
        %v627 = vld [vmem:[#allocation2 + $0x6c8] sm:$0xff]
        %v628 = vld [vmem:[#allocation2 + $0x6d0] sm:$0xff]
        %v629 = vld [vmem:[#allocation2 + $0x6d8] sm:$0xff]
        %v630 = vld [vmem:[#allocation2 + $0x6e0] sm:$0xff]
        %v631 = vld [vmem:[#allocation2 + $0x6e8] sm:$0xff]
        %v632 = vld [vmem:[#allocation2 + $0x6f0] sm:$0xff]
        %v633 = vld [vmem:[#allocation2 + $0x6f8] sm:$0xff]
        %v634 = vld [vmem:[%s2] sm:$0xf]
        %v636 = vlaneseq
        %v637 = vshrl.u32 %v636, 7
        %v638 = vsub.s32 0, %v637
        %v639 = vrot.slane %v634, %v638
        %v640 = vlaneseq
        %v641 = vshrl.u32 %v640, 7
        %v642 = vsub.s32 1, %v641
        %v643 = vrot.slane %v634, %v642
        %v644 = vlaneseq
        %v645 = vshrl.u32 %v644, 7
        %v646 = vsub.s32 2, %v645
        %v647 = vrot.slane %v634, %v646
        %v648 = vlaneseq
        %v649 = vshrl.u32 %v648, 7
        %v650 = vsub.s32 3, %v649
        %v651 = vrot.slane %v634, %v650
        %v660 = vunpack.c.l.b16 %v406
        %v661 = vunpack.c.h.b16 %v406
        %v662 = vunpack.c.l.b16 %v407
        %v663 = vunpack.c.h.b16 %v407
        %v664 = vunpack.c.l.b16 %v408
        %v665 = vunpack.c.h.b16 %v408
        %v666 = vunpack.c.l.b16 %v409
        %v667 = vpack.c.b16 %v660, %v660
        %v668 = vpack.c.b16 %v661, %v661
        %v669 = vpack.c.b16 %v662, %v662
        %v670 = vpack.c.b16 %v663, %v663
        %v671 = vpack.c.b16 %v664, %v664
        %v672 = vpack.c.b16 %v665, %v665
        %v673 = vpack.c.b16 %v666, %v666
        %v905 = vunpack.c.l.b16 %v410
        %v906 = vunpack.c.h.b16 %v410
        %v907 = vunpack.c.l.b16 %v411
        %v908 = vunpack.c.h.b16 %v411
        %v909 = vunpack.c.l.b16 %v412
        %v910 = vunpack.c.h.b16 %v412
        %v911 = vunpack.c.l.b16 %v413
        %v912 = vunpack.c.h.b16 %v413
        %v913 = vunpack.c.l.b16 %v414
        %v914 = vunpack.c.h.b16 %v414
        %v915 = vunpack.c.l.b16 %v415
        %v916 = vunpack.c.h.b16 %v415
        %v917 = vunpack.c.l.b16 %v416
        %v918 = vunpack.c.h.b16 %v416
        %v919 = vunpack.c.l.b16 %v417
        %v920 = vunpack.c.h.b16 %v417
        %v921 = vunpack.c.l.b16 %v418
        %v922 = vunpack.c.h.b16 %v418
        %v923 = vunpack.c.l.b16 %v419
        %v924 = vunpack.c.h.b16 %v419
        %v925 = vunpack.c.l.b16 %v420
        %v926 = vunpack.c.h.b16 %v420
        %v927 = vunpack.c.l.b16 %v421
        %v928 = vunpack.c.h.b16 %v421
        %v929 = vunpack.c.l.b16 %v422
        %v930 = vunpack.c.h.b16 %v422
        %v931 = vunpack.c.l.b16 %v423
        %v932 = vunpack.c.h.b16 %v423
        %v933 = vunpack.c.l.b16 %v424
        %v934 = vunpack.c.h.b16 %v424
        %v935 = vunpack.c.l.b16 %v425
        %v936 = vunpack.c.h.b16 %v425
        %v937 = vunpack.c.l.b16 %v426
        %v938 = vunpack.c.h.b16 %v426
        %v939 = vunpack.c.l.b16 %v427
        %v940 = vunpack.c.h.b16 %v427
        %v941 = vunpack.c.l.b16 %v428
        %v942 = vunpack.c.h.b16 %v428
        %v943 = vunpack.c.l.b16 %v429
        %v944 = vunpack.c.h.b16 %v429
        %v945 = vunpack.c.l.b16 %v430
        %v946 = vunpack.c.h.b16 %v430
        %v947 = vunpack.c.l.b16 %v431
        %v948 = vunpack.c.h.b16 %v431
        %v949 = vunpack.c.l.b16 %v432
        %v950 = vunpack.c.h.b16 %v432
        %v951 = vunpack.c.l.b16 %v433
        %v952 = vunpack.c.h.b16 %v433
        %v953 = vunpack.c.l.b16 %v434
        %v954 = vunpack.c.h.b16 %v434
        %v955 = vunpack.c.l.b16 %v435
        %v956 = vunpack.c.h.b16 %v435
        %v957 = vunpack.c.l.b16 %v436
        %v958 = vunpack.c.h.b16 %v436
        %v959 = vunpack.c.l.b16 %v437
        %v960 = vunpack.c.h.b16 %v437
        %v961 = vunpack.c.l.b16 %v438
        %v962 = vunpack.c.h.b16 %v438
        %v963 = vunpack.c.l.b16 %v439
        %v964 = vunpack.c.h.b16 %v439
        %v965 = vunpack.c.l.b16 %v440
        %v966 = vunpack.c.h.b16 %v440
        %v967 = vunpack.c.l.b16 %v441
        %v968 = vunpack.c.h.b16 %v441
        %v969 = vunpack.c.l.b16 %v442
        %v970 = vunpack.c.h.b16 %v442
        %v971 = vunpack.c.l.b16 %v443
        %v972 = vunpack.c.h.b16 %v443
        %v973 = vunpack.c.l.b16 %v444
        %v974 = vunpack.c.h.b16 %v444
        %v975 = vunpack.c.l.b16 %v445
        %v976 = vunpack.c.h.b16 %v445
        %v977 = vunpack.c.l.b16 %v446
        %v978 = vunpack.c.h.b16 %v446
        %v979 = vunpack.c.l.b16 %v447
        %v980 = vunpack.c.h.b16 %v447
        %v981 = vunpack.c.l.b16 %v448
        %v982 = vunpack.c.h.b16 %v448
        %v983 = vunpack.c.l.b16 %v449
        %v984 = vunpack.c.h.b16 %v449
        %v985 = vunpack.c.l.b16 %v450
        %v986 = vunpack.c.h.b16 %v450
        %v987 = vunpack.c.l.b16 %v451
        %v988 = vunpack.c.h.b16 %v451
        %v989 = vunpack.c.l.b16 %v452
        %v990 = vunpack.c.h.b16 %v452
        %v991 = vunpack.c.l.b16 %v453
        %v992 = vunpack.c.h.b16 %v453
        %v993 = vunpack.c.l.b16 %v454
        %v994 = vunpack.c.h.b16 %v454
        %v995 = vunpack.c.l.b16 %v455
        %v996 = vunpack.c.h.b16 %v455
        %v997 = vunpack.c.l.b16 %v456
        %v998 = vunpack.c.h.b16 %v456
        %v999 = vunpack.c.l.b16 %v457
        %v1000 = vunpack.c.h.b16 %v457
        %v1001 = vunpack.c.l.b16 %v458
        %v1002 = vunpack.c.h.b16 %v458
        %v1003 = vunpack.c.l.b16 %v459
        %v1004 = vunpack.c.h.b16 %v459
        %v1005 = vunpack.c.l.b16 %v460
        %v1006 = vunpack.c.h.b16 %v460
        %v1007 = vunpack.c.l.b16 %v461
        %v1008 = vunpack.c.h.b16 %v461
        %v1009 = vunpack.c.l.b16 %v462
        %v1010 = vunpack.c.h.b16 %v462
        %v1011 = vunpack.c.l.b16 %v463
        %v1012 = vunpack.c.h.b16 %v463
        %v1013 = vunpack.c.l.b16 %v464
        %v1014 = vunpack.c.h.b16 %v464
        %v1015 = vunpack.c.l.b16 %v465
        %v1016 = vunpack.c.h.b16 %v465
        %v1017 = vunpack.c.l.b16 %v466
        %v1018 = vunpack.c.h.b16 %v466
        %v1019 = vunpack.c.l.b16 %v467
        %v1020 = vunpack.c.h.b16 %v467
        %v1021 = vunpack.c.l.b16 %v468
        %v1022 = vunpack.c.h.b16 %v468
        %v1023 = vunpack.c.l.b16 %v469
        %v1024 = vunpack.c.h.b16 %v469
        %v1025 = vunpack.c.l.b16 %v470
        %v1026 = vunpack.c.h.b16 %v470
        %v1027 = vunpack.c.l.b16 %v471
        %v1028 = vunpack.c.h.b16 %v471
        %v1029 = vunpack.c.l.b16 %v472
        %v1030 = vunpack.c.h.b16 %v472
        %v1031 = vunpack.c.l.b16 %v473
        %v1032 = vunpack.c.h.b16 %v473
        %v1033 = vunpack.c.l.b16 %v474
        %v1034 = vunpack.c.h.b16 %v474
        %v1035 = vunpack.c.l.b16 %v475
        %v1036 = vunpack.c.h.b16 %v475
        %v1037 = vunpack.c.l.b16 %v476
        %v1038 = vunpack.c.h.b16 %v476
        %v1039 = vunpack.c.l.b16 %v477
        %v1040 = vunpack.c.h.b16 %v477
        %v1041 = vunpack.c.l.b16 %v478
        %v1042 = vunpack.c.h.b16 %v478
        %v1043 = vunpack.c.l.b16 %v479
        %v1044 = vunpack.c.h.b16 %v479
        %v1045 = vunpack.c.l.b16 %v480
        %v1046 = vunpack.c.h.b16 %v480
        %v1047 = vunpack.c.l.b16 %v481
        %v1048 = vunpack.c.h.b16 %v481
        %v1049 = vunpack.c.l.b16 %v482
        %v1050 = vunpack.c.h.b16 %v482
        %v1051 = vunpack.c.l.b16 %v483
        %v1052 = vunpack.c.h.b16 %v483
        %v1053 = vunpack.c.l.b16 %v484
        %v1054 = vunpack.c.h.b16 %v484
        %v1055 = vunpack.c.l.b16 %v485
        %v1056 = vunpack.c.h.b16 %v485
        %v1057 = vunpack.c.l.b16 %v486
        %v1058 = vunpack.c.h.b16 %v486
        %v1059 = vunpack.c.l.b16 %v487
        %v1060 = vunpack.c.h.b16 %v487
        %v1061 = vunpack.c.l.b16 %v488
        %v1062 = vunpack.c.h.b16 %v488
        %v1063 = vunpack.c.l.b16 %v489
        %v1064 = vunpack.c.h.b16 %v489
        %v1065 = vunpack.c.l.b16 %v490
        %v1066 = vunpack.c.h.b16 %v490
        %v1067 = vunpack.c.l.b16 %v491
        %v1068 = vunpack.c.h.b16 %v491
        %v1069 = vunpack.c.l.b16 %v492
        %v1070 = vunpack.c.h.b16 %v492
        %v1071 = vunpack.c.l.b16 %v493
        %v1072 = vunpack.c.h.b16 %v493
        %v1073 = vunpack.c.l.b16 %v494
        %v1074 = vunpack.c.h.b16 %v494
        %v1075 = vunpack.c.l.b16 %v495
        %v1076 = vunpack.c.h.b16 %v495
        %v1077 = vunpack.c.l.b16 %v496
        %v1078 = vunpack.c.h.b16 %v496
        %v1079 = vunpack.c.l.b16 %v497
        %v1080 = vunpack.c.h.b16 %v497
        %v1081 = vunpack.c.l.b16 %v498
        %v1082 = vunpack.c.h.b16 %v498
        %v1083 = vunpack.c.l.b16 %v499
        %v1084 = vunpack.c.h.b16 %v499
        %v1085 = vunpack.c.l.b16 %v500
        %v1086 = vunpack.c.h.b16 %v500
        %v1087 = vunpack.c.l.b16 %v501
        %v1088 = vunpack.c.h.b16 %v501
        %v1089 = vunpack.c.l.b16 %v502
        %v1090 = vunpack.c.h.b16 %v502
        %v1091 = vunpack.c.l.b16 %v503
        %v1092 = vunpack.c.h.b16 %v503
        %v1093 = vunpack.c.l.b16 %v504
        %v1094 = vunpack.c.h.b16 %v504
        %v1095 = vunpack.c.l.b16 %v505
        %v1096 = vunpack.c.h.b16 %v505
        %v1097 = vunpack.c.l.b16 %v506
        %v1098 = vunpack.c.h.b16 %v506
        %v1099 = vunpack.c.l.b16 %v507
        %v1100 = vunpack.c.h.b16 %v507
        %v1101 = vunpack.c.l.b16 %v508
        %v1102 = vunpack.c.h.b16 %v508
        %v1103 = vunpack.c.l.b16 %v509
        %v1104 = vunpack.c.h.b16 %v509
        %v1105 = vunpack.c.l.b16 %v510
        %v1106 = vunpack.c.h.b16 %v510
        %v1107 = vunpack.c.l.b16 %v511
        %v1108 = vunpack.c.h.b16 %v511
        %v1109 = vunpack.c.l.b16 %v512
        %v1110 = vunpack.c.h.b16 %v512
        %v1111 = vunpack.c.l.b16 %v513
        %v1112 = vunpack.c.h.b16 %v513
        %v1113 = vunpack.c.l.b16 %v514
        %v1114 = vunpack.c.h.b16 %v514
        %v1115 = vunpack.c.l.b16 %v515
        %v1116 = vunpack.c.h.b16 %v515
        %v1117 = vunpack.c.l.b16 %v516
        %v1118 = vunpack.c.h.b16 %v516
        %v1119 = vunpack.c.l.b16 %v517
        %v1120 = vunpack.c.h.b16 %v517
        %v1121 = vunpack.c.l.b16 %v518
        %v1122 = vunpack.c.h.b16 %v518
        %v1123 = vunpack.c.l.b16 %v519
        %v1124 = vunpack.c.h.b16 %v519
        %v1125 = vunpack.c.l.b16 %v520
        %v1126 = vunpack.c.h.b16 %v520
        %v1127 = vunpack.c.l.b16 %v521
        %v1128 = vunpack.c.h.b16 %v521
        %v1129 = vunpack.c.l.b16 %v522
        %v1130 = vunpack.c.h.b16 %v522
        %v1131 = vunpack.c.l.b16 %v523
        %v1132 = vunpack.c.h.b16 %v523
        %v1133 = vunpack.c.l.b16 %v524
        %v1134 = vunpack.c.h.b16 %v524
        %v1135 = vunpack.c.l.b16 %v525
        %v1136 = vunpack.c.h.b16 %v525
        %v1137 = vunpack.c.l.b16 %v526
        %v1138 = vunpack.c.h.b16 %v526
        %v1139 = vunpack.c.l.b16 %v527
        %v1140 = vunpack.c.h.b16 %v527
        %v1141 = vunpack.c.l.b16 %v528
        %v1142 = vunpack.c.h.b16 %v528
        %v1143 = vunpack.c.l.b16 %v529
        %v1144 = vunpack.c.h.b16 %v529
        %v1145 = vunpack.c.l.b16 %v530
        %v1146 = vunpack.c.h.b16 %v530
        %v1147 = vunpack.c.l.b16 %v531
        %v1148 = vunpack.c.h.b16 %v531
        %v1149 = vunpack.c.l.b16 %v532
        %v1150 = vunpack.c.h.b16 %v532
        %v1151 = vunpack.c.l.b16 %v533
        %v1152 = vunpack.c.h.b16 %v533
        %v1153 = vunpack.c.l.b16 %v534
        %v1154 = vunpack.c.h.b16 %v534
        %v1155 = vunpack.c.l.b16 %v535
        %v1156 = vunpack.c.h.b16 %v535
        %v1157 = vunpack.c.l.b16 %v536
        %v1158 = vunpack.c.h.b16 %v536
        %v1159 = vunpack.c.l.b16 %v537
        %v1160 = vunpack.c.h.b16 %v537
        %v1161 = vunpack.c.l.b16 %v538
        %v1162 = vunpack.c.h.b16 %v538
        %v1163 = vunpack.c.l.b16 %v539
        %v1164 = vunpack.c.h.b16 %v539
        %v1165 = vunpack.c.l.b16 %v540
        %v1166 = vunpack.c.h.b16 %v540
        %v1167 = vunpack.c.l.b16 %v541
        %v1168 = vunpack.c.h.b16 %v541
        %v1169 = vunpack.c.l.b16 %v542
        %v1170 = vunpack.c.h.b16 %v542
        %v1171 = vunpack.c.l.b16 %v543
        %v1172 = vunpack.c.h.b16 %v543
        %v1173 = vunpack.c.l.b16 %v544
        %v1174 = vunpack.c.h.b16 %v544
        %v1175 = vunpack.c.l.b16 %v545
        %v1176 = vunpack.c.h.b16 %v545
        %v1177 = vunpack.c.l.b16 %v546
        %v1178 = vunpack.c.h.b16 %v546
        %v1179 = vunpack.c.l.b16 %v547
        %v1180 = vunpack.c.h.b16 %v547
        %v1181 = vunpack.c.l.b16 %v548
        %v1182 = vunpack.c.h.b16 %v548
        %v1183 = vunpack.c.l.b16 %v549
        %v1184 = vunpack.c.h.b16 %v549
        %v1185 = vunpack.c.l.b16 %v550
        %v1186 = vunpack.c.h.b16 %v550
        %v1187 = vunpack.c.l.b16 %v551
        %v1188 = vunpack.c.h.b16 %v551
        %v1189 = vunpack.c.l.b16 %v552
        %v1190 = vunpack.c.h.b16 %v552
        %v1191 = vunpack.c.l.b16 %v553
        %v1192 = vunpack.c.h.b16 %v553
        %v1193 = vunpack.c.l.b16 %v554
        %v1194 = vunpack.c.h.b16 %v554
        %v1195 = vunpack.c.l.b16 %v555
        %v1196 = vunpack.c.h.b16 %v555
        %v1197 = vunpack.c.l.b16 %v556
        %v1198 = vunpack.c.h.b16 %v556
        %v1199 = vunpack.c.l.b16 %v557
        %v1200 = vunpack.c.h.b16 %v557
        %v1201 = vunpack.c.l.b16 %v558
        %v1202 = vunpack.c.h.b16 %v558
        %v1203 = vunpack.c.l.b16 %v559
        %v1204 = vunpack.c.h.b16 %v559
        %v1205 = vunpack.c.l.b16 %v560
        %v1206 = vunpack.c.h.b16 %v560
        %v1207 = vunpack.c.l.b16 %v561
        %v1208 = vunpack.c.h.b16 %v561
        %v1209 = vunpack.c.l.b16 %v562
        %v1210 = vunpack.c.h.b16 %v562
        %v1211 = vunpack.c.l.b16 %v563
        %v1212 = vunpack.c.h.b16 %v563
        %v1213 = vunpack.c.l.b16 %v564
        %v1214 = vunpack.c.h.b16 %v564
        %v1215 = vunpack.c.l.b16 %v565
        %v1216 = vunpack.c.h.b16 %v565
        %v1217 = vunpack.c.l.b16 %v566
        %v1218 = vunpack.c.h.b16 %v566
        %v1219 = vunpack.c.l.b16 %v567
        %v1220 = vunpack.c.h.b16 %v567
        %v1221 = vunpack.c.l.b16 %v568
        %v1222 = vunpack.c.h.b16 %v568
        %v1223 = vunpack.c.l.b16 %v569
        %v1224 = vunpack.c.h.b16 %v569
        %v1225 = vunpack.c.l.b16 %v570
        %v1226 = vunpack.c.h.b16 %v570
        %v1227 = vunpack.c.l.b16 %v571
        %v1228 = vunpack.c.h.b16 %v571
        %v1229 = vunpack.c.l.b16 %v572
        %v1230 = vunpack.c.h.b16 %v572
        %v1231 = vunpack.c.l.b16 %v573
        %v1232 = vunpack.c.h.b16 %v573
        %v1233 = vunpack.c.l.b16 %v574
        %v1234 = vunpack.c.h.b16 %v574
        %v1235 = vunpack.c.l.b16 %v575
        %v1236 = vunpack.c.h.b16 %v575
        %v1237 = vunpack.c.l.b16 %v576
        %v1238 = vunpack.c.h.b16 %v576
        %v1239 = vunpack.c.l.b16 %v577
        %v1240 = vunpack.c.h.b16 %v577
        %v1241 = vunpack.c.l.b16 %v578
        %v1242 = vunpack.c.h.b16 %v578
        %v1243 = vunpack.c.l.b16 %v579
        %v1244 = vunpack.c.h.b16 %v579
        %v1245 = vunpack.c.l.b16 %v580
        %v1246 = vunpack.c.h.b16 %v580
        %v1247 = vunpack.c.l.b16 %v581
        %v1248 = vunpack.c.h.b16 %v581
        %v1249 = vunpack.c.l.b16 %v582
        %v1250 = vunpack.c.h.b16 %v582
        %v1251 = vunpack.c.l.b16 %v583
        %v1252 = vunpack.c.h.b16 %v583
        %v1253 = vunpack.c.l.b16 %v584
        %v1254 = vunpack.c.h.b16 %v584
        %v1255 = vunpack.c.l.b16 %v585
        %v1256 = vunpack.c.h.b16 %v585
        %v1257 = vunpack.c.l.b16 %v586
        %v1258 = vunpack.c.h.b16 %v586
        %v1259 = vunpack.c.l.b16 %v587
        %v1260 = vunpack.c.h.b16 %v587
        %v1261 = vunpack.c.l.b16 %v588
        %v1262 = vunpack.c.h.b16 %v588
        %v1263 = vunpack.c.l.b16 %v589
        %v1264 = vunpack.c.h.b16 %v589
        %v1265 = vunpack.c.l.b16 %v590
        %v1266 = vunpack.c.h.b16 %v590
        %v1267 = vunpack.c.l.b16 %v591
        %v1268 = vunpack.c.h.b16 %v591
        %v1269 = vunpack.c.l.b16 %v592
        %v1270 = vunpack.c.h.b16 %v592
        %v1271 = vunpack.c.l.b16 %v593
        %v1272 = vunpack.c.h.b16 %v593
        %v1273 = vunpack.c.l.b16 %v594
        %v1274 = vunpack.c.h.b16 %v594
        %v1275 = vunpack.c.l.b16 %v595
        %v1276 = vunpack.c.h.b16 %v595
        %v1277 = vunpack.c.l.b16 %v596
        %v1278 = vunpack.c.h.b16 %v596
        %v1279 = vunpack.c.l.b16 %v597
        %v1280 = vunpack.c.h.b16 %v597
        %v1281 = vunpack.c.l.b16 %v598
        %v1282 = vunpack.c.h.b16 %v598
        %v1283 = vunpack.c.l.b16 %v599
        %v1284 = vunpack.c.h.b16 %v599
        %v1285 = vunpack.c.l.b16 %v600
        %v1286 = vunpack.c.h.b16 %v600
        %v1287 = vunpack.c.l.b16 %v601
        %v1288 = vunpack.c.h.b16 %v601
        %v1289 = vunpack.c.l.b16 %v602
        %v1290 = vunpack.c.h.b16 %v602
        %v1291 = vunpack.c.l.b16 %v603
        %v1292 = vunpack.c.h.b16 %v603
        %v1293 = vunpack.c.l.b16 %v604
        %v1294 = vunpack.c.h.b16 %v604
        %v1295 = vunpack.c.l.b16 %v605
        %v1296 = vunpack.c.h.b16 %v605
        %v1297 = vunpack.c.l.b16 %v606
        %v1298 = vunpack.c.h.b16 %v606
        %v1299 = vunpack.c.l.b16 %v607
        %v1300 = vunpack.c.h.b16 %v607
        %v1301 = vunpack.c.l.b16 %v608
        %v1302 = vunpack.c.h.b16 %v608
        %v1303 = vunpack.c.l.b16 %v609
        %v1304 = vunpack.c.h.b16 %v609
        %v1305 = vunpack.c.l.b16 %v610
        %v1306 = vunpack.c.h.b16 %v610
        %v1307 = vunpack.c.l.b16 %v611
        %v1308 = vunpack.c.h.b16 %v611
        %v1309 = vunpack.c.l.b16 %v612
        %v1310 = vunpack.c.h.b16 %v612
        %v1311 = vunpack.c.l.b16 %v613
        %v1312 = vunpack.c.h.b16 %v613
        %v1313 = vunpack.c.l.b16 %v614
        %v1314 = vunpack.c.h.b16 %v614
        %v1315 = vunpack.c.l.b16 %v615
        %v1316 = vunpack.c.h.b16 %v615
        %v1317 = vunpack.c.l.b16 %v616
        %v1318 = vunpack.c.h.b16 %v616
        %v1319 = vunpack.c.l.b16 %v617
        %v1320 = vunpack.c.h.b16 %v617
        %v1321 = vunpack.c.l.b16 %v618
        %v1322 = vunpack.c.h.b16 %v618
        %v1323 = vunpack.c.l.b16 %v619
        %v1324 = vunpack.c.h.b16 %v619
        %v1325 = vunpack.c.l.b16 %v620
        %v1326 = vunpack.c.h.b16 %v620
        %v1327 = vunpack.c.l.b16 %v621
        %v1328 = vunpack.c.h.b16 %v621
        %v1329 = vunpack.c.l.b16 %v622
        %v1330 = vunpack.c.h.b16 %v622
        %v1331 = vunpack.c.l.b16 %v623
        %v1332 = vunpack.c.h.b16 %v623
        %v1333 = vunpack.c.l.b16 %v624
        %v1334 = vunpack.c.h.b16 %v624
        %v1335 = vunpack.c.l.b16 %v625
        %v1336 = vunpack.c.h.b16 %v625
        %v1337 = vunpack.c.l.b16 %v626
        %v1338 = vunpack.c.h.b16 %v626
        %v1339 = vunpack.c.l.b16 %v627
        %v1340 = vunpack.c.h.b16 %v627
        %v1341 = vunpack.c.l.b16 %v628
        %v1342 = vunpack.c.h.b16 %v628
        %v1343 = vunpack.c.l.b16 %v629
        %v1344 = vunpack.c.h.b16 %v629
        %v1345 = vunpack.c.l.b16 %v630
        %v1346 = vunpack.c.h.b16 %v630
        %v1347 = vunpack.c.l.b16 %v631
        %v1348 = vunpack.c.h.b16 %v631
        %v1349 = vunpack.c.l.b16 %v632
        %v1350 = vunpack.c.h.b16 %v632
        %v1351 = vunpack.c.l.b16 %v633
        %v1352 = vunpack.c.h.b16 %v633
        %v1353 = vpack.c.b16 %v909, %v905
        %v1354 = vpack.c.b16 %v910, %v906
        %v1355 = vpack.c.b16 %v911, %v907
        %v1356 = vpack.c.b16 %v912, %v908
        %v1357 = vpack.c.b16 %v917, %v913
        %v1358 = vpack.c.b16 %v918, %v914
        %v1359 = vpack.c.b16 %v919, %v915
        %v1360 = vpack.c.b16 %v920, %v916
        %v1361 = vpack.c.b16 %v925, %v921
        %v1362 = vpack.c.b16 %v926, %v922
        %v1363 = vpack.c.b16 %v927, %v923
        %v1364 = vpack.c.b16 %v928, %v924
        %v1365 = vpack.c.b16 %v933, %v929
        %v1366 = vpack.c.b16 %v934, %v930
        %v1367 = vpack.c.b16 %v935, %v931
        %v1368 = vpack.c.b16 %v936, %v932
        %v1369 = vpack.c.b16 %v941, %v937
        %v1370 = vpack.c.b16 %v942, %v938
        %v1371 = vpack.c.b16 %v943, %v939
        %v1372 = vpack.c.b16 %v944, %v940
        %v1373 = vpack.c.b16 %v949, %v945
        %v1374 = vpack.c.b16 %v950, %v946
        %v1375 = vpack.c.b16 %v951, %v947
        %v1376 = vpack.c.b16 %v952, %v948
        %v1377 = vpack.c.b16 %v957, %v953
        %v1378 = vpack.c.b16 %v958, %v954
        %v1379 = vpack.c.b16 %v959, %v955
        %v1380 = vpack.c.b16 %v960, %v956
        %v1381 = vpack.c.b16 %v965, %v961
        %v1382 = vpack.c.b16 %v966, %v962
        %v1383 = vpack.c.b16 %v967, %v963
        %v1384 = vpack.c.b16 %v968, %v964
        %v1385 = vpack.c.b16 %v973, %v969
        %v1386 = vpack.c.b16 %v974, %v970
        %v1387 = vpack.c.b16 %v975, %v971
        %v1388 = vpack.c.b16 %v976, %v972
        %v1389 = vpack.c.b16 %v981, %v977
        %v1390 = vpack.c.b16 %v982, %v978
        %v1391 = vpack.c.b16 %v983, %v979
        %v1392 = vpack.c.b16 %v984, %v980
        %v1393 = vpack.c.b16 %v989, %v985
        %v1394 = vpack.c.b16 %v990, %v986
        %v1395 = vpack.c.b16 %v991, %v987
        %v1396 = vpack.c.b16 %v992, %v988
        %v1397 = vpack.c.b16 %v997, %v993
        %v1398 = vpack.c.b16 %v998, %v994
        %v1399 = vpack.c.b16 %v999, %v995
        %v1400 = vpack.c.b16 %v1000, %v996
        %v1401 = vpack.c.b16 %v1005, %v1001
        %v1402 = vpack.c.b16 %v1006, %v1002
        %v1403 = vpack.c.b16 %v1007, %v1003
        %v1404 = vpack.c.b16 %v1008, %v1004
        %v1405 = vpack.c.b16 %v1013, %v1009
        %v1406 = vpack.c.b16 %v1014, %v1010
        %v1407 = vpack.c.b16 %v1015, %v1011
        %v1408 = vpack.c.b16 %v1016, %v1012
        %v1409 = vpack.c.b16 %v1021, %v1017
        %v1410 = vpack.c.b16 %v1022, %v1018
        %v1411 = vpack.c.b16 %v1023, %v1019
        %v1412 = vpack.c.b16 %v1024, %v1020
        %v1413 = vpack.c.b16 %v1029, %v1025
        %v1414 = vpack.c.b16 %v1030, %v1026
        %v1415 = vpack.c.b16 %v1031, %v1027
        %v1416 = vpack.c.b16 %v1032, %v1028
        %v1417 = vpack.c.b16 %v1037, %v1033
        %v1418 = vpack.c.b16 %v1038, %v1034
        %v1419 = vpack.c.b16 %v1039, %v1035
        %v1420 = vpack.c.b16 %v1040, %v1036
        %v1421 = vpack.c.b16 %v1045, %v1041
        %v1422 = vpack.c.b16 %v1046, %v1042
        %v1423 = vpack.c.b16 %v1047, %v1043
        %v1424 = vpack.c.b16 %v1048, %v1044
        %v1425 = vpack.c.b16 %v1053, %v1049
        %v1426 = vpack.c.b16 %v1054, %v1050
        %v1427 = vpack.c.b16 %v1055, %v1051
        %v1428 = vpack.c.b16 %v1056, %v1052
        %v1429 = vpack.c.b16 %v1061, %v1057
        %v1430 = vpack.c.b16 %v1062, %v1058
        %v1431 = vpack.c.b16 %v1063, %v1059
        %v1432 = vpack.c.b16 %v1064, %v1060
        %v1433 = vpack.c.b16 %v1069, %v1065
        %v1434 = vpack.c.b16 %v1070, %v1066
        %v1435 = vpack.c.b16 %v1071, %v1067
        %v1436 = vpack.c.b16 %v1072, %v1068
        %v1437 = vpack.c.b16 %v1077, %v1073
        %v1438 = vpack.c.b16 %v1078, %v1074
        %v1439 = vpack.c.b16 %v1079, %v1075
        %v1440 = vpack.c.b16 %v1080, %v1076
        %v1441 = vpack.c.b16 %v1085, %v1081
        %v1442 = vpack.c.b16 %v1086, %v1082
        %v1443 = vpack.c.b16 %v1087, %v1083
        %v1444 = vpack.c.b16 %v1088, %v1084
        %v1445 = vpack.c.b16 %v1093, %v1089
        %v1446 = vpack.c.b16 %v1094, %v1090
        %v1447 = vpack.c.b16 %v1095, %v1091
        %v1448 = vpack.c.b16 %v1096, %v1092
        %v1449 = vpack.c.b16 %v1101, %v1097
        %v1450 = vpack.c.b16 %v1102, %v1098
        %v1451 = vpack.c.b16 %v1103, %v1099
        %v1452 = vpack.c.b16 %v1104, %v1100
        %v1453 = vpack.c.b16 %v1109, %v1105
        %v1454 = vpack.c.b16 %v1110, %v1106
        %v1455 = vpack.c.b16 %v1111, %v1107
        %v1456 = vpack.c.b16 %v1112, %v1108
        %v1457 = vpack.c.b16 %v1117, %v1113
        %v1458 = vpack.c.b16 %v1118, %v1114
        %v1459 = vpack.c.b16 %v1119, %v1115
        %v1460 = vpack.c.b16 %v1120, %v1116
        %v1461 = vpack.c.b16 %v1125, %v1121
        %v1462 = vpack.c.b16 %v1126, %v1122
        %v1463 = vpack.c.b16 %v1127, %v1123
        %v1464 = vpack.c.b16 %v1128, %v1124
        %v1465 = vpack.c.b16 %v1133, %v1129
        %v1466 = vpack.c.b16 %v1134, %v1130
        %v1467 = vpack.c.b16 %v1135, %v1131
        %v1468 = vpack.c.b16 %v1136, %v1132
        %v1469 = vpack.c.b16 %v1141, %v1137
        %v1470 = vpack.c.b16 %v1142, %v1138
        %v1471 = vpack.c.b16 %v1143, %v1139
        %v1472 = vpack.c.b16 %v1144, %v1140
        %v1473 = vpack.c.b16 %v1149, %v1145
        %v1474 = vpack.c.b16 %v1150, %v1146
        %v1475 = vpack.c.b16 %v1151, %v1147
        %v1476 = vpack.c.b16 %v1152, %v1148
        %v1477 = vpack.c.b16 %v1157, %v1153
        %v1478 = vpack.c.b16 %v1158, %v1154
        %v1479 = vpack.c.b16 %v1159, %v1155
        %v1480 = vpack.c.b16 %v1160, %v1156
        %v1481 = vpack.c.b16 %v1165, %v1161
        %v1482 = vpack.c.b16 %v1166, %v1162
        %v1483 = vpack.c.b16 %v1167, %v1163
        %v1484 = vpack.c.b16 %v1168, %v1164
        %v1485 = vpack.c.b16 %v1173, %v1169
        %v1486 = vpack.c.b16 %v1174, %v1170
        %v1487 = vpack.c.b16 %v1175, %v1171
        %v1488 = vpack.c.b16 %v1176, %v1172
        %v1489 = vpack.c.b16 %v1181, %v1177
        %v1490 = vpack.c.b16 %v1182, %v1178
        %v1491 = vpack.c.b16 %v1183, %v1179
        %v1492 = vpack.c.b16 %v1184, %v1180
        %v1493 = vpack.c.b16 %v1189, %v1185
        %v1494 = vpack.c.b16 %v1190, %v1186
        %v1495 = vpack.c.b16 %v1191, %v1187
        %v1496 = vpack.c.b16 %v1192, %v1188
        %v1497 = vpack.c.b16 %v1197, %v1193
        %v1498 = vpack.c.b16 %v1198, %v1194
        %v1499 = vpack.c.b16 %v1199, %v1195
        %v1500 = vpack.c.b16 %v1200, %v1196
        %v1501 = vpack.c.b16 %v1205, %v1201
        %v1502 = vpack.c.b16 %v1206, %v1202
        %v1503 = vpack.c.b16 %v1207, %v1203
        %v1504 = vpack.c.b16 %v1208, %v1204
        %v1505 = vpack.c.b16 %v1213, %v1209
        %v1506 = vpack.c.b16 %v1214, %v1210
        %v1507 = vpack.c.b16 %v1215, %v1211
        %v1508 = vpack.c.b16 %v1216, %v1212
        %v1509 = vpack.c.b16 %v1221, %v1217
        %v1510 = vpack.c.b16 %v1222, %v1218
        %v1511 = vpack.c.b16 %v1223, %v1219
        %v1512 = vpack.c.b16 %v1224, %v1220
        %v1513 = vpack.c.b16 %v1229, %v1225
        %v1514 = vpack.c.b16 %v1230, %v1226
        %v1515 = vpack.c.b16 %v1231, %v1227
        %v1516 = vpack.c.b16 %v1232, %v1228
        %v1517 = vpack.c.b16 %v1237, %v1233
        %v1518 = vpack.c.b16 %v1238, %v1234
        %v1519 = vpack.c.b16 %v1239, %v1235
        %v1520 = vpack.c.b16 %v1240, %v1236
        %v1521 = vpack.c.b16 %v1245, %v1241
        %v1522 = vpack.c.b16 %v1246, %v1242
        %v1523 = vpack.c.b16 %v1247, %v1243
        %v1524 = vpack.c.b16 %v1248, %v1244
        %v1525 = vpack.c.b16 %v1253, %v1249
        %v1526 = vpack.c.b16 %v1254, %v1250
        %v1527 = vpack.c.b16 %v1255, %v1251
        %v1528 = vpack.c.b16 %v1256, %v1252
        %v1529 = vpack.c.b16 %v1261, %v1257
        %v1530 = vpack.c.b16 %v1262, %v1258
        %v1531 = vpack.c.b16 %v1263, %v1259
        %v1532 = vpack.c.b16 %v1264, %v1260
        %v1533 = vpack.c.b16 %v1269, %v1265
        %v1534 = vpack.c.b16 %v1270, %v1266
        %v1535 = vpack.c.b16 %v1271, %v1267
        %v1536 = vpack.c.b16 %v1272, %v1268
        %v1537 = vpack.c.b16 %v1277, %v1273
        %v1538 = vpack.c.b16 %v1278, %v1274
        %v1539 = vpack.c.b16 %v1279, %v1275
        %v1540 = vpack.c.b16 %v1280, %v1276
        %v1541 = vpack.c.b16 %v1285, %v1281
        %v1542 = vpack.c.b16 %v1286, %v1282
        %v1543 = vpack.c.b16 %v1287, %v1283
        %v1544 = vpack.c.b16 %v1288, %v1284
        %v1545 = vpack.c.b16 %v1293, %v1289
        %v1546 = vpack.c.b16 %v1294, %v1290
        %v1547 = vpack.c.b16 %v1295, %v1291
        %v1548 = vpack.c.b16 %v1296, %v1292
        %v1549 = vpack.c.b16 %v1301, %v1297
        %v1550 = vpack.c.b16 %v1302, %v1298
        %v1551 = vpack.c.b16 %v1303, %v1299
        %v1552 = vpack.c.b16 %v1304, %v1300
        %v1553 = vpack.c.b16 %v1309, %v1305
        %v1554 = vpack.c.b16 %v1310, %v1306
        %v1555 = vpack.c.b16 %v1311, %v1307
        %v1556 = vpack.c.b16 %v1312, %v1308
        %v1557 = vpack.c.b16 %v1317, %v1313
        %v1558 = vpack.c.b16 %v1318, %v1314
        %v1559 = vpack.c.b16 %v1319, %v1315
        %v1560 = vpack.c.b16 %v1320, %v1316
        %v1561 = vpack.c.b16 %v1325, %v1321
        %v1562 = vpack.c.b16 %v1326, %v1322
        %v1563 = vpack.c.b16 %v1327, %v1323
        %v1564 = vpack.c.b16 %v1328, %v1324
        %v1565 = vpack.c.b16 %v1333, %v1329
        %v1566 = vpack.c.b16 %v1334, %v1330
        %v1567 = vpack.c.b16 %v1335, %v1331
        %v1568 = vpack.c.b16 %v1336, %v1332
        %v1569 = vpack.c.b16 %v1341, %v1337
        %v1570 = vpack.c.b16 %v1342, %v1338
        %v1571 = vpack.c.b16 %v1343, %v1339
        %v1572 = vpack.c.b16 %v1344, %v1340
        %v1573 = vpack.c.b16 %v1349, %v1345
        %v1574 = vpack.c.b16 %v1350, %v1346
        %v1575 = vpack.c.b16 %v1351, %v1347
        %v1576 = vpack.c.b16 %v1352, %v1348
        %1801 = vmatprep.subr.bf16.mxu0 %v1354
        %1802 = vmatpush1.bf16.msra.mxu0 %v1353
        %1803 = vmatprep.subr.bf16.mxu0 %v1358
        %1804 = vmatpush1.bf16.msra.mxu0 %v1357
        %1805 = vmatprep.subr.bf16.mxu0 %v1362
        %1806 = vmatpush1.bf16.msra.mxu0 %v1361
        %1807 = vmatprep.subr.bf16.mxu0 %v1366
        %1808 = vmatpush1.bf16.msra.mxu0 %v1365
        %1809 = vmatprep.subr.bf16.mxu0 %v1370
        %1810 = vmatpush1.bf16.msra.mxu0 %v1369
        %1811 = vmatprep.subr.bf16.mxu0 %v1374
        %1812 = vmatpush1.bf16.msra.mxu0 %v1373
        %1813 = vmatprep.subr.bf16.mxu0 %v1378
        %1814 = vmatpush1.bf16.msra.mxu0 %v1377
        %1815 = vmatprep.subr.bf16.mxu0 %v1382
        %1816 = vmatpush1.bf16.msra.mxu0 %v1381
        %1817 = vmatprep.subr.bf16.mxu0 %v1386
        %1818 = vmatpush1.bf16.msra.mxu0 %v1385
        %1819 = vmatprep.subr.bf16.mxu0 %v1390
        %1820 = vmatpush1.bf16.msra.mxu0 %v1389
        %1821 = vmatprep.subr.bf16.mxu0 %v1394
        %1822 = vmatpush1.bf16.msra.mxu0 %v1393
        %1823 = vmatprep.subr.bf16.mxu0 %v1398
        %1824 = vmatpush1.bf16.msra.mxu0 %v1397
        %1825 = vmatprep.subr.bf16.mxu0 %v1402
        %1826 = vmatpush1.bf16.msra.mxu0 %v1401
        %1827 = vmatprep.subr.bf16.mxu0 %v1406
        %1828 = vmatpush1.bf16.msra.mxu0 %v1405
        %1829 = vmatprep.subr.bf16.mxu0 %v1410
        %1830 = vmatpush1.bf16.msra.mxu0 %v1409
        %1831 = vmatprep.subr.bf16.mxu0 %v1414
        %1832 = vmatpush1.bf16.msra.mxu0 %v1413
        %1833 = vmatprep.mubr.bf16.mxu0 %v668
        %1834 = vmatmul.mubr.bf16.gmra.mrb[0].mxu0 %v667
        %v1835 = vpop.f32.mrb[0].mxu0
        %v1836 = vadd.f32 %v639, %v1835
        %v1837 = vpop.f32.mrb[0].mxu0
        %v1838 = vadd.f32 %v643, %v1837
        %v1839 = vpop.f32.mrb[0].mxu0
        %v1840 = vpop.f32.mrb[0].mxu0
        %1841 = vdwg.mxu0
        %1842 = vmatprep.subr.bf16.mxu0 %v1418
        %1843 = vmatpush1.bf16.msra.mxu0 %v1417
        %1844 = vmatprep.subr.bf16.mxu0 %v1422
        %1845 = vmatpush1.bf16.msra.mxu0 %v1421
        %1846 = vmatprep.subr.bf16.mxu0 %v1426
        %1847 = vmatpush1.bf16.msra.mxu0 %v1425
        %1848 = vmatprep.subr.bf16.mxu0 %v1430
        %1849 = vmatpush1.bf16.msra.mxu0 %v1429
        %1850 = vmatprep.subr.bf16.mxu0 %v1434
        %1851 = vmatpush1.bf16.msra.mxu0 %v1433
        %1852 = vmatprep.subr.bf16.mxu0 %v1438
        %1853 = vmatpush1.bf16.msra.mxu0 %v1437
        %1854 = vmatprep.subr.bf16.mxu0 %v1442
        %1855 = vmatpush1.bf16.msra.mxu0 %v1441
        %1856 = vmatprep.subr.bf16.mxu0 %v1446
        %1857 = vmatpush1.bf16.msra.mxu0 %v1445
        %1858 = vmatprep.subr.bf16.mxu0 %v1450
        %1859 = vmatpush1.bf16.msra.mxu0 %v1449
        %1860 = vmatprep.subr.bf16.mxu0 %v1454
        %1861 = vmatpush1.bf16.msra.mxu0 %v1453
        %1862 = vmatprep.subr.bf16.mxu0 %v1458
        %1863 = vmatpush1.bf16.msra.mxu0 %v1457
        %1864 = vmatprep.subr.bf16.mxu0 %v1462
        %1865 = vmatpush1.bf16.msra.mxu0 %v1461
        %1866 = vmatprep.subr.bf16.mxu0 %v1466
        %1867 = vmatpush1.bf16.msra.mxu0 %v1465
        %1868 = vmatprep.subr.bf16.mxu0 %v1470
        %1869 = vmatpush1.bf16.msra.mxu0 %v1469
        %1870 = vmatprep.subr.bf16.mxu0 %v1474
        %1871 = vmatpush1.bf16.msra.mxu0 %v1473
        %1872 = vmatprep.subr.bf16.mxu0 %v1478
        %1873 = vmatpush1.bf16.msra.mxu0 %v1477
        %1874 = vmatprep.mubr.bf16.mxu0 %v670
        %1875 = vmatmul.mubr.bf16.gmra.mrb[0].mxu0 %v669
        %v1876 = vpop.f32.mrb[0].mxu0
        %v1877 = vadd.f32 %v1836, %v1876
        %v1878 = vpop.f32.mrb[0].mxu0
        %v1879 = vadd.f32 %v1838, %v1878
        %v1880 = vpop.f32.mrb[0].mxu0
        %v1881 = vpop.f32.mrb[0].mxu0
        %1882 = vdwg.mxu0
        %1883 = vmatprep.subr.bf16.mxu0 %v1482
        %1884 = vmatpush1.bf16.msra.mxu0 %v1481
        %1885 = vmatprep.subr.bf16.mxu0 %v1486
        %1886 = vmatpush1.bf16.msra.mxu0 %v1485
        %1887 = vmatprep.subr.bf16.mxu0 %v1490
        %1888 = vmatpush1.bf16.msra.mxu0 %v1489
        %1889 = vmatprep.subr.bf16.mxu0 %v1494
        %1890 = vmatpush1.bf16.msra.mxu0 %v1493
        %1891 = vmatprep.subr.bf16.mxu0 %v1498
        %1892 = vmatpush1.bf16.msra.mxu0 %v1497
        %1893 = vmatprep.subr.bf16.mxu0 %v1502
        %1894 = vmatpush1.bf16.msra.mxu0 %v1501
        %1895 = vmatprep.subr.bf16.mxu0 %v1506
        %1896 = vmatpush1.bf16.msra.mxu0 %v1505
        %1897 = vmatprep.subr.bf16.mxu0 %v1510
        %1898 = vmatpush1.bf16.msra.mxu0 %v1509
        %1899 = vmatprep.subr.bf16.mxu0 %v1514
        %1900 = vmatpush1.bf16.msra.mxu0 %v1513
        %1901 = vmatprep.subr.bf16.mxu0 %v1518
        %1902 = vmatpush1.bf16.msra.mxu0 %v1517
        %1903 = vmatprep.subr.bf16.mxu0 %v1522
        %1904 = vmatpush1.bf16.msra.mxu0 %v1521
        %1905 = vmatprep.subr.bf16.mxu0 %v1526
        %1906 = vmatpush1.bf16.msra.mxu0 %v1525
        %1907 = vmatprep.subr.bf16.mxu0 %v1530
        %1908 = vmatpush1.bf16.msra.mxu0 %v1529
        %1909 = vmatprep.subr.bf16.mxu0 %v1534
        %1910 = vmatpush1.bf16.msra.mxu0 %v1533
        %1911 = vmatprep.subr.bf16.mxu0 %v1538
        %1912 = vmatpush1.bf16.msra.mxu0 %v1537
        %1913 = vmatprep.subr.bf16.mxu0 %v1542
        %1914 = vmatpush1.bf16.msra.mxu0 %v1541
        %1915 = vmatprep.mubr.bf16.mxu0 %v672
        %1916 = vmatmul.mubr.bf16.gmra.mrb[0].mxu0 %v671
        %v1917 = vpop.f32.mrb[0].mxu0
        %v1918 = vadd.f32 %v1877, %v1917
        %v1919 = vpop.f32.mrb[0].mxu0
        %v1920 = vadd.f32 %v1879, %v1919
        %v1921 = vpop.f32.mrb[0].mxu0
        %v1922 = vpop.f32.mrb[0].mxu0
        %1923 = vdwg.mxu0
        %1924 = vmatprep.subr.bf16.mxu0 %v1546
        %1925 = vmatpush1.bf16.msra.mxu0 %v1545
        %1926 = vmatprep.subr.bf16.mxu0 %v1550
        %1927 = vmatpush1.bf16.msra.mxu0 %v1549
        %1928 = vmatprep.subr.bf16.mxu0 %v1554
        %1929 = vmatpush1.bf16.msra.mxu0 %v1553
        %1930 = vmatprep.subr.bf16.mxu0 %v1558
        %1931 = vmatpush1.bf16.msra.mxu0 %v1557
        %1932 = vmatprep.subr.bf16.mxu0 %v1562
        %1933 = vmatpush1.bf16.msra.mxu0 %v1561
        %1934 = vmatprep.subr.bf16.mxu0 %v1566
        %1935 = vmatpush1.bf16.msra.mxu0 %v1565
        %1936 = vmatprep.subr.bf16.mxu0 %v1570
        %1937 = vmatpush1.bf16.msra.mxu0 %v1569
        %1938 = vmatprep.subr.bf16.mxu0 %v1574
        %1939 = vmatpush1.bf16.msra.mxu0 %v1573
        %1940 = vmatprep.subr.bf16.mxu0 0
        %1941 = vmatpush1.bf16.msra.mxu0 0
        %1942 = vmatprep.subr.bf16.mxu0 0
        %1943 = vmatpush1.bf16.msra.mxu0 0
        %1944 = vmatprep.subr.bf16.mxu0 0
        %1945 = vmatpush1.bf16.msra.mxu0 0
        %1946 = vmatprep.subr.bf16.mxu0 0
        %1947 = vmatpush1.bf16.msra.mxu0 0
        %1948 = vmatprep.subr.bf16.mxu0 0
        %1949 = vmatpush1.bf16.msra.mxu0 0
        %1950 = vmatprep.subr.bf16.mxu0 0
        %1951 = vmatpush1.bf16.msra.mxu0 0
        %1952 = vmatprep.subr.bf16.mxu0 0
        %1953 = vmatpush1.bf16.msra.mxu0 0
        %1954 = vmatprep.subr.bf16.mxu0 0
        %1955 = vmatpush1.bf16.msra.mxu0 0
        %1956 = vmatprep.mubr.bf16.mxu0 0
        %1957 = vmatmul.mubr.bf16.gmra.mrb[0].mxu0 %v673
        %v1958 = vpop.f32.mrb[0].mxu0
        %v1959 = vadd.f32 %v1918, %v1958
        %v1960 = vpop.f32.mrb[0].mxu0
        %v1961 = vadd.f32 %v1920, %v1960
        %v1962 = vpop.f32.mrb[0].mxu0
        %v1963 = vpop.f32.mrb[0].mxu0
        %1964 = vdwg.mxu0
        %1965 = vmatprep.subr.bf16.mxu0 %v1356
        %1966 = vmatpush1.bf16.msra.mxu0 %v1355
        %1967 = vmatprep.subr.bf16.mxu0 %v1360
        %1968 = vmatpush1.bf16.msra.mxu0 %v1359
        %1969 = vmatprep.subr.bf16.mxu0 %v1364
        %1970 = vmatpush1.bf16.msra.mxu0 %v1363
        %1971 = vmatprep.subr.bf16.mxu0 %v1368
        %1972 = vmatpush1.bf16.msra.mxu0 %v1367
        %1973 = vmatprep.subr.bf16.mxu0 %v1372
        %1974 = vmatpush1.bf16.msra.mxu0 %v1371
        %1975 = vmatprep.subr.bf16.mxu0 %v1376
        %1976 = vmatpush1.bf16.msra.mxu0 %v1375
        %1977 = vmatprep.subr.bf16.mxu0 %v1380
        %1978 = vmatpush1.bf16.msra.mxu0 %v1379
        %1979 = vmatprep.subr.bf16.mxu0 %v1384
        %1980 = vmatpush1.bf16.msra.mxu0 %v1383
        %1981 = vmatprep.subr.bf16.mxu0 %v1388
        %1982 = vmatpush1.bf16.msra.mxu0 %v1387
        %1983 = vmatprep.subr.bf16.mxu0 %v1392
        %1984 = vmatpush1.bf16.msra.mxu0 %v1391
        %1985 = vmatprep.subr.bf16.mxu0 %v1396
        %1986 = vmatpush1.bf16.msra.mxu0 %v1395
        %1987 = vmatprep.subr.bf16.mxu0 %v1400
        %1988 = vmatpush1.bf16.msra.mxu0 %v1399
        %1989 = vmatprep.subr.bf16.mxu0 %v1404
        %1990 = vmatpush1.bf16.msra.mxu0 %v1403
        %1991 = vmatprep.subr.bf16.mxu0 %v1408
        %1992 = vmatpush1.bf16.msra.mxu0 %v1407
        %1993 = vmatprep.subr.bf16.mxu0 %v1412
        %1994 = vmatpush1.bf16.msra.mxu0 %v1411
        %1995 = vmatprep.subr.bf16.mxu0 %v1416
        %1996 = vmatpush1.bf16.msra.mxu0 %v1415
        %1997 = vmatprep.mubr.bf16.mxu0 %v668
        %1998 = vmatmul.mubr.bf16.gmra.mrb[0].mxu0 %v667
        %v1999 = vpop.f32.mrb[0].mxu0
        %v2000 = vadd.f32 %v647, %v1999
        %v2001 = vpop.f32.mrb[0].mxu0
        %v2002 = vadd.f32 %v651, %v2001
        %v2003 = vpop.f32.mrb[0].mxu0
        %v2004 = vpop.f32.mrb[0].mxu0
        %2005 = vdwg.mxu0
        %2006 = vmatprep.subr.bf16.mxu0 %v1420
        %2007 = vmatpush1.bf16.msra.mxu0 %v1419
        %2008 = vmatprep.subr.bf16.mxu0 %v1424
        %2009 = vmatpush1.bf16.msra.mxu0 %v1423
        %2010 = vmatprep.subr.bf16.mxu0 %v1428
        %2011 = vmatpush1.bf16.msra.mxu0 %v1427
        %2012 = vmatprep.subr.bf16.mxu0 %v1432
        %2013 = vmatpush1.bf16.msra.mxu0 %v1431
        %2014 = vmatprep.subr.bf16.mxu0 %v1436
        %2015 = vmatpush1.bf16.msra.mxu0 %v1435
        %2016 = vmatprep.subr.bf16.mxu0 %v1440
        %2017 = vmatpush1.bf16.msra.mxu0 %v1439
        %2018 = vmatprep.subr.bf16.mxu0 %v1444
        %2019 = vmatpush1.bf16.msra.mxu0 %v1443
        %2020 = vmatprep.subr.bf16.mxu0 %v1448
        %2021 = vmatpush1.bf16.msra.mxu0 %v1447
        %2022 = vmatprep.subr.bf16.mxu0 %v1452
        %2023 = vmatpush1.bf16.msra.mxu0 %v1451
        %2024 = vmatprep.subr.bf16.mxu0 %v1456
        %2025 = vmatpush1.bf16.msra.mxu0 %v1455
        %2026 = vmatprep.subr.bf16.mxu0 %v1460
        %2027 = vmatpush1.bf16.msra.mxu0 %v1459
        %2028 = vmatprep.subr.bf16.mxu0 %v1464
        %2029 = vmatpush1.bf16.msra.mxu0 %v1463
        %2030 = vmatprep.subr.bf16.mxu0 %v1468
        %2031 = vmatpush1.bf16.msra.mxu0 %v1467
        %2032 = vmatprep.subr.bf16.mxu0 %v1472
        %2033 = vmatpush1.bf16.msra.mxu0 %v1471
        %2034 = vmatprep.subr.bf16.mxu0 %v1476
        %2035 = vmatpush1.bf16.msra.mxu0 %v1475
        %2036 = vmatprep.subr.bf16.mxu0 %v1480
        %2037 = vmatpush1.bf16.msra.mxu0 %v1479
        %2038 = vmatprep.mubr.bf16.mxu0 %v670
        %2039 = vmatmul.mubr.bf16.gmra.mrb[0].mxu0 %v669
        %v2040 = vpop.f32.mrb[0].mxu0
        %v2041 = vadd.f32 %v2000, %v2040
        %v2042 = vpop.f32.mrb[0].mxu0
        %v2043 = vadd.f32 %v2002, %v2042
        %v2044 = vpop.f32.mrb[0].mxu0
        %v2045 = vpop.f32.mrb[0].mxu0
        %2046 = vdwg.mxu0
        %2047 = vmatprep.subr.bf16.mxu0 %v1484
        %2048 = vmatpush1.bf16.msra.mxu0 %v1483
        %2049 = vmatprep.subr.bf16.mxu0 %v1488
        %2050 = vmatpush1.bf16.msra.mxu0 %v1487
        %2051 = vmatprep.subr.bf16.mxu0 %v1492
        %2052 = vmatpush1.bf16.msra.mxu0 %v1491
        %2053 = vmatprep.subr.bf16.mxu0 %v1496
        %2054 = vmatpush1.bf16.msra.mxu0 %v1495
        %2055 = vmatprep.subr.bf16.mxu0 %v1500
        %2056 = vmatpush1.bf16.msra.mxu0 %v1499
        %2057 = vmatprep.subr.bf16.mxu0 %v1504
        %2058 = vmatpush1.bf16.msra.mxu0 %v1503
        %2059 = vmatprep.subr.bf16.mxu0 %v1508
        %2060 = vmatpush1.bf16.msra.mxu0 %v1507
        %2061 = vmatprep.subr.bf16.mxu0 %v1512
        %2062 = vmatpush1.bf16.msra.mxu0 %v1511
        %2063 = vmatprep.subr.bf16.mxu0 %v1516
        %2064 = vmatpush1.bf16.msra.mxu0 %v1515
        %2065 = vmatprep.subr.bf16.mxu0 %v1520
        %2066 = vmatpush1.bf16.msra.mxu0 %v1519
        %2067 = vmatprep.subr.bf16.mxu0 %v1524
        %2068 = vmatpush1.bf16.msra.mxu0 %v1523
        %2069 = vmatprep.subr.bf16.mxu0 %v1528
        %2070 = vmatpush1.bf16.msra.mxu0 %v1527
        %2071 = vmatprep.subr.bf16.mxu0 %v1532
        %2072 = vmatpush1.bf16.msra.mxu0 %v1531
        %2073 = vmatprep.subr.bf16.mxu0 %v1536
        %2074 = vmatpush1.bf16.msra.mxu0 %v1535
        %2075 = vmatprep.subr.bf16.mxu0 %v1540
        %2076 = vmatpush1.bf16.msra.mxu0 %v1539
        %2077 = vmatprep.subr.bf16.mxu0 %v1544
        %2078 = vmatpush1.bf16.msra.mxu0 %v1543
        %2079 = vmatprep.mubr.bf16.mxu0 %v672
        %2080 = vmatmul.mubr.bf16.gmra.mrb[0].mxu0 %v671
        %v2081 = vpop.f32.mrb[0].mxu0
        %v2082 = vadd.f32 %v2041, %v2081
        %v2083 = vpop.f32.mrb[0].mxu0
        %v2084 = vadd.f32 %v2043, %v2083
        %v2085 = vpop.f32.mrb[0].mxu0
        %v2086 = vpop.f32.mrb[0].mxu0
        %2087 = vdwg.mxu0
        %2088 = vmatprep.subr.bf16.mxu0 %v1548
        %2089 = vmatpush1.bf16.msra.mxu0 %v1547
        %2090 = vmatprep.subr.bf16.mxu0 %v1552
        %2091 = vmatpush1.bf16.msra.mxu0 %v1551
        %2092 = vmatprep.subr.bf16.mxu0 %v1556
        %2093 = vmatpush1.bf16.msra.mxu0 %v1555
        %2094 = vmatprep.subr.bf16.mxu0 %v1560
        %2095 = vmatpush1.bf16.msra.mxu0 %v1559
        %2096 = vmatprep.subr.bf16.mxu0 %v1564
        %2097 = vmatpush1.bf16.msra.mxu0 %v1563
        %2098 = vmatprep.subr.bf16.mxu0 %v1568
        %2099 = vmatpush1.bf16.msra.mxu0 %v1567
        %2100 = vmatprep.subr.bf16.mxu0 %v1572
        %2101 = vmatpush1.bf16.msra.mxu0 %v1571
        %2102 = vmatprep.subr.bf16.mxu0 %v1576
        %2103 = vmatpush1.bf16.msra.mxu0 %v1575
        %2104 = vmatprep.subr.bf16.mxu0 0
        %2105 = vmatpush1.bf16.msra.mxu0 0
        %2106 = vmatprep.subr.bf16.mxu0 0
        %2107 = vmatpush1.bf16.msra.mxu0 0
        %2108 = vmatprep.subr.bf16.mxu0 0
        %2109 = vmatpush1.bf16.msra.mxu0 0
        %2110 = vmatprep.subr.bf16.mxu0 0
        %2111 = vmatpush1.bf16.msra.mxu0 0
        %2112 = vmatprep.subr.bf16.mxu0 0
        %2113 = vmatpush1.bf16.msra.mxu0 0
        %2114 = vmatprep.subr.bf16.mxu0 0
        %2115 = vmatpush1.bf16.msra.mxu0 0
        %2116 = vmatprep.subr.bf16.mxu0 0
        %2117 = vmatpush1.bf16.msra.mxu0 0
        %2118 = vmatprep.subr.bf16.mxu0 0
        %2119 = vmatpush1.bf16.msra.mxu0 0
        %2120 = vmatprep.mubr.bf16.mxu0 0
        %2121 = vmatmul.mubr.bf16.gmra.mrb[0].mxu0 %v673
        %v2122 = vpop.f32.mrb[0].mxu0
        %v2123 = vadd.f32 %v2082, %v2122
        %v2124 = vpop.f32.mrb[0].mxu0
        %v2125 = vadd.f32 %v2084, %v2124
        %v2126 = vpop.f32.mrb[0].mxu0
        %v2127 = vpop.f32.mrb[0].mxu0
        %2128 = vdwg.mxu0
        %v2129 = vmax.f32 %v1959, 0.0
        %v2130 = vmax.f32 %v1961, 0.0
        %v2131 = vmax.f32 %v2123, 0.0
        %v2132 = vmax.f32 %v2125, 0.0
        %v2133 = vpack.c.bf16 %v2129, %v2129
        %v2134 = vpack.c.bf16 %v2130, %v2130
        %v2135 = vpack.c.bf16 %v2131, %v2131
        %v2136 = vpack.c.bf16 %v2132, %v2132
        %v2137 = vld [vmem:[%s3] sm:$0xf]
        %v2138 = vld [vmem:[%s3 + $0x4] sm:$0xf]
        %v2139 = vld [vmem:[%s3 + $0x8] sm:$0xf]
        %v2140 = vld [vmem:[%s3 + $0xc] sm:$0xf]
        %v2141 = vld [vmem:[%s3 + $0x10] sm:$0xf]
        %v2142 = vld [vmem:[%s3 + $0x14] sm:$0xf]
        %v2143 = vld [vmem:[%s3 + $0x18] sm:$0xf]
        %v2144 = vld [vmem:[%s3 + $0x1c] sm:$0xf]
        %v2145 = vld [vmem:[%s3 + $0x20] sm:$0xf]
        %v2146 = vld [vmem:[%s3 + $0x24] sm:$0xf]
        %v2147 = vld [vmem:[%s3 + $0x28] sm:$0xf]
        %v2148 = vld [vmem:[%s3 + $0x2c] sm:$0xf]
        %v2149 = vld [vmem:[%s3 + $0x30] sm:$0xf]
        %v2150 = vld [vmem:[%s3 + $0x34] sm:$0xf]
        %v2151 = vld [vmem:[%s3 + $0x38] sm:$0xf]
        %v2152 = vld [vmem:[%s3 + $0x3c] sm:$0xf]
        %v2153 = vld [vmem:[%s3 + $0x40] sm:$0xf]
        %v2154 = vld [vmem:[%s3 + $0x44] sm:$0xf]
        %v2155 = vld [vmem:[%s3 + $0x48] sm:$0xf]
        %v2156 = vld [vmem:[%s3 + $0x4c] sm:$0xf]
        %v2157 = vld [vmem:[%s3 + $0x50] sm:$0xf]
        %v2158 = vld [vmem:[%s3 + $0x54] sm:$0xf]
        %v2159 = vld [vmem:[%s3 + $0x58] sm:$0xf]
        %v2160 = vld [vmem:[%s3 + $0x5c] sm:$0xf]
        %v2161 = vld [vmem:[%s3 + $0x60] sm:$0xf]
        %v2162 = vld [vmem:[%s3 + $0x64] sm:$0xf]
        %v2163 = vld [vmem:[%s3 + $0x68] sm:$0xf]
        %v2164 = vld [vmem:[%s3 + $0x6c] sm:$0xf]
        %v2165 = vld [vmem:[%s3 + $0x70] sm:$0xf]
        %v2166 = vld [vmem:[%s3 + $0x74] sm:$0xf]
        %v2167 = vld [vmem:[%s3 + $0x78] sm:$0xf]
        %v2168 = vld [vmem:[%s3 + $0x7c] sm:$0xf]
        %v2169 = vld [vmem:[%s3 + $0x80] sm:$0xf]
        %v2170 = vld [vmem:[%s3 + $0x84] sm:$0xf]
        %v2171 = vld [vmem:[%s3 + $0x88] sm:$0xf]
        %v2172 = vld [vmem:[%s3 + $0x8c] sm:$0xf]
        %v2173 = vld [vmem:[%s3 + $0x90] sm:$0xf]
        %v2174 = vld [vmem:[%s3 + $0x94] sm:$0xf]
        %v2175 = vld [vmem:[%s3 + $0x98] sm:$0xf]
        %v2176 = vld [vmem:[%s3 + $0x9c] sm:$0xf]
        %v2177 = vld [vmem:[%s3 + $0xa0] sm:$0xf]
        %v2178 = vld [vmem:[%s3 + $0xa4] sm:$0xf]
        %v2179 = vld [vmem:[%s3 + $0xa8] sm:$0xf]
        %v2180 = vld [vmem:[%s3 + $0xac] sm:$0xf]
        %v2181 = vld [vmem:[%s3 + $0xb0] sm:$0xf]
        %v2182 = vld [vmem:[%s3 + $0xb4] sm:$0xf]
        %v2183 = vld [vmem:[%s3 + $0xb8] sm:$0xf]
        %v2184 = vld [vmem:[%s3 + $0xbc] sm:$0xf]
        %v2185 = vld [vmem:[%s3 + $0xc0] sm:$0xf]
        %v2186 = vld [vmem:[%s3 + $0xc4] sm:$0xf]
        %v2187 = vld [vmem:[%s3 + $0xc8] sm:$0xf]
        %v2188 = vld [vmem:[%s3 + $0xcc] sm:$0xf]
        %v2189 = vld [vmem:[%s3 + $0xd0] sm:$0xf]
        %v2190 = vld [vmem:[%s3 + $0xd4] sm:$0xf]
        %v2191 = vld [vmem:[%s3 + $0xd8] sm:$0xf]
        %v2192 = vld [vmem:[%s3 + $0xdc] sm:$0xf]
        %v2193 = vld [vmem:[%s3 + $0xe0] sm:$0xf]
        %v2194 = vld [vmem:[%s3 + $0xe4] sm:$0xf]
        %v2195 = vld [vmem:[%s3 + $0xe8] sm:$0xf]
        %v2196 = vld [vmem:[%s3 + $0xec] sm:$0xf]
        %v2197 = vld [vmem:[%s3 + $0xf0] sm:$0xf]
        %v2198 = vld [vmem:[%s3 + $0xf4] sm:$0xf]
        %v2199 = vld [vmem:[%s3 + $0xf8] sm:$0xf]
        %v2200 = vld [vmem:[%s3 + $0xfc] sm:$0xf]
        %v2201 = vld [vmem:[%s4] sm:$0x1]
        %v2203 = vlaneseq
        %v2204 = vshrl.u32 %v2203, 7
        %v2205 = vsub.s32 0, %v2204
        %v2206 = vrot.slane %v2201, %v2205
        %v2272 = vunpack.c.l.b16 %v2137
        %v2273 = vunpack.c.l.b16 %v2138
        %v2274 = vunpack.c.l.b16 %v2139
        %v2275 = vunpack.c.l.b16 %v2140
        %v2276 = vunpack.c.l.b16 %v2141
        %v2277 = vunpack.c.l.b16 %v2142
        %v2278 = vunpack.c.l.b16 %v2143
        %v2279 = vunpack.c.l.b16 %v2144
        %v2280 = vunpack.c.l.b16 %v2145
        %v2281 = vunpack.c.l.b16 %v2146
        %v2282 = vunpack.c.l.b16 %v2147
        %v2283 = vunpack.c.l.b16 %v2148
        %v2284 = vunpack.c.l.b16 %v2149
        %v2285 = vunpack.c.l.b16 %v2150
        %v2286 = vunpack.c.l.b16 %v2151
        %v2287 = vunpack.c.l.b16 %v2152
        %v2288 = vunpack.c.l.b16 %v2153
        %v2289 = vunpack.c.l.b16 %v2154
        %v2290 = vunpack.c.l.b16 %v2155
        %v2291 = vunpack.c.l.b16 %v2156
        %v2292 = vunpack.c.l.b16 %v2157
        %v2293 = vunpack.c.l.b16 %v2158
        %v2294 = vunpack.c.l.b16 %v2159
        %v2295 = vunpack.c.l.b16 %v2160
        %v2296 = vunpack.c.l.b16 %v2161
        %v2297 = vunpack.c.l.b16 %v2162
        %v2298 = vunpack.c.l.b16 %v2163
        %v2299 = vunpack.c.l.b16 %v2164
        %v2300 = vunpack.c.l.b16 %v2165
        %v2301 = vunpack.c.l.b16 %v2166
        %v2302 = vunpack.c.l.b16 %v2167
        %v2303 = vunpack.c.l.b16 %v2168
        %v2304 = vunpack.c.l.b16 %v2169
        %v2305 = vunpack.c.l.b16 %v2170
        %v2306 = vunpack.c.l.b16 %v2171
        %v2307 = vunpack.c.l.b16 %v2172
        %v2308 = vunpack.c.l.b16 %v2173
        %v2309 = vunpack.c.l.b16 %v2174
        %v2310 = vunpack.c.l.b16 %v2175
        %v2311 = vunpack.c.l.b16 %v2176
        %v2312 = vunpack.c.l.b16 %v2177
        %v2313 = vunpack.c.l.b16 %v2178
        %v2314 = vunpack.c.l.b16 %v2179
        %v2315 = vunpack.c.l.b16 %v2180
        %v2316 = vunpack.c.l.b16 %v2181
        %v2317 = vunpack.c.l.b16 %v2182
        %v2318 = vunpack.c.l.b16 %v2183
        %v2319 = vunpack.c.l.b16 %v2184
        %v2320 = vunpack.c.l.b16 %v2185
        %v2321 = vunpack.c.l.b16 %v2186
        %v2322 = vunpack.c.l.b16 %v2187
        %v2323 = vunpack.c.l.b16 %v2188
        %v2324 = vunpack.c.l.b16 %v2189
        %v2325 = vunpack.c.l.b16 %v2190
        %v2326 = vunpack.c.l.b16 %v2191
        %v2327 = vunpack.c.l.b16 %v2192
        %v2328 = vunpack.c.l.b16 %v2193
        %v2329 = vunpack.c.l.b16 %v2194
        %v2330 = vunpack.c.l.b16 %v2195
        %v2331 = vunpack.c.l.b16 %v2196
        %v2332 = vunpack.c.l.b16 %v2197
        %v2333 = vunpack.c.l.b16 %v2198
        %v2334 = vunpack.c.l.b16 %v2199
        %v2335 = vunpack.c.l.b16 %v2200
        %v2336 = vpack.c.b16 %v2273, %v2272
        %v2337 = vpack.c.b16 %v2275, %v2274
        %v2338 = vpack.c.b16 %v2277, %v2276
        %v2339 = vpack.c.b16 %v2279, %v2278
        %v2340 = vpack.c.b16 %v2281, %v2280
        %v2341 = vpack.c.b16 %v2283, %v2282
        %v2342 = vpack.c.b16 %v2285, %v2284
        %v2343 = vpack.c.b16 %v2287, %v2286
        %v2344 = vpack.c.b16 %v2289, %v2288
        %v2345 = vpack.c.b16 %v2291, %v2290
        %v2346 = vpack.c.b16 %v2293, %v2292
        %v2347 = vpack.c.b16 %v2295, %v2294
        %v2348 = vpack.c.b16 %v2297, %v2296
        %v2349 = vpack.c.b16 %v2299, %v2298
        %v2350 = vpack.c.b16 %v2301, %v2300
        %v2351 = vpack.c.b16 %v2303, %v2302
        %v2352 = vpack.c.b16 %v2305, %v2304
        %v2353 = vpack.c.b16 %v2307, %v2306
        %v2354 = vpack.c.b16 %v2309, %v2308
        %v2355 = vpack.c.b16 %v2311, %v2310
        %v2356 = vpack.c.b16 %v2313, %v2312
        %v2357 = vpack.c.b16 %v2315, %v2314
        %v2358 = vpack.c.b16 %v2317, %v2316
        %v2359 = vpack.c.b16 %v2319, %v2318
        %v2360 = vpack.c.b16 %v2321, %v2320
        %v2361 = vpack.c.b16 %v2323, %v2322
        %v2362 = vpack.c.b16 %v2325, %v2324
        %v2363 = vpack.c.b16 %v2327, %v2326
        %v2364 = vpack.c.b16 %v2329, %v2328
        %v2365 = vpack.c.b16 %v2331, %v2330
        %v2366 = vpack.c.b16 %v2333, %v2332
        %v2367 = vpack.c.b16 %v2335, %v2334
        %2400 = vmatprep.subr.bf16.mxu0 0
        %2401 = vmatpush1.bf16.msra.mxu0 %v2336
        %2402 = vmatprep.subr.bf16.mxu0 0
        %2403 = vmatpush1.bf16.msra.mxu0 %v2337
        %2404 = vmatprep.subr.bf16.mxu0 0
        %2405 = vmatpush1.bf16.msra.mxu0 %v2338
        %2406 = vmatprep.subr.bf16.mxu0 0
        %2407 = vmatpush1.bf16.msra.mxu0 %v2339
        %2408 = vmatprep.subr.bf16.mxu0 0
        %2409 = vmatpush1.bf16.msra.mxu0 %v2340
        %2410 = vmatprep.subr.bf16.mxu0 0
        %2411 = vmatpush1.bf16.msra.mxu0 %v2341
        %2412 = vmatprep.subr.bf16.mxu0 0
        %2413 = vmatpush1.bf16.msra.mxu0 %v2342
        %2414 = vmatprep.subr.bf16.mxu0 0
        %2415 = vmatpush1.bf16.msra.mxu0 %v2343
        %2416 = vmatprep.subr.bf16.mxu0 0
        %2417 = vmatpush1.bf16.msra.mxu0 %v2344
        %2418 = vmatprep.subr.bf16.mxu0 0
        %2419 = vmatpush1.bf16.msra.mxu0 %v2345
        %2420 = vmatprep.subr.bf16.mxu0 0
        %2421 = vmatpush1.bf16.msra.mxu0 %v2346
        %2422 = vmatprep.subr.bf16.mxu0 0
        %2423 = vmatpush1.bf16.msra.mxu0 %v2347
        %2424 = vmatprep.subr.bf16.mxu0 0
        %2425 = vmatpush1.bf16.msra.mxu0 %v2348
        %2426 = vmatprep.subr.bf16.mxu0 0
        %2427 = vmatpush1.bf16.msra.mxu0 %v2349
        %2428 = vmatprep.subr.bf16.mxu0 0
        %2429 = vmatpush1.bf16.msra.mxu0 %v2350
        %2430 = vmatprep.subr.bf16.mxu0 0
        %2431 = vmatpush1.bf16.msra.mxu0 %v2351
        %2432 = vmatprep.mubr.bf16.mxu0 %v2134
        %2433 = vmatmul.mubr.bf16.gmra.mrb[0].mxu0 %v2133
        %v2434 = vpop.f32.mrb[0].mxu0
        %v2435 = vadd.f32 %v2206, %v2434
        %v2436 = vpop.f32.mrb[0].mxu0
        %v2437 = vpop.f32.mrb[0].mxu0
        %v2438 = vpop.f32.mrb[0].mxu0
        %2439 = vdwg.mxu0
        %2440 = vmatprep.subr.bf16.mxu0 0
        %2441 = vmatpush1.bf16.msra.mxu0 %v2352
        %2442 = vmatprep.subr.bf16.mxu0 0
        %2443 = vmatpush1.bf16.msra.mxu0 %v2353
        %2444 = vmatprep.subr.bf16.mxu0 0
        %2445 = vmatpush1.bf16.msra.mxu0 %v2354
        %2446 = vmatprep.subr.bf16.mxu0 0
        %2447 = vmatpush1.bf16.msra.mxu0 %v2355
        %2448 = vmatprep.subr.bf16.mxu0 0
        %2449 = vmatpush1.bf16.msra.mxu0 %v2356
        %2450 = vmatprep.subr.bf16.mxu0 0
        %2451 = vmatpush1.bf16.msra.mxu0 %v2357
        %2452 = vmatprep.subr.bf16.mxu0 0
        %2453 = vmatpush1.bf16.msra.mxu0 %v2358
        %2454 = vmatprep.subr.bf16.mxu0 0
        %2455 = vmatpush1.bf16.msra.mxu0 %v2359
        %2456 = vmatprep.subr.bf16.mxu0 0
        %2457 = vmatpush1.bf16.msra.mxu0 %v2360
        %2458 = vmatprep.subr.bf16.mxu0 0
        %2459 = vmatpush1.bf16.msra.mxu0 %v2361
        %2460 = vmatprep.subr.bf16.mxu0 0
        %2461 = vmatpush1.bf16.msra.mxu0 %v2362
        %2462 = vmatprep.subr.bf16.mxu0 0
        %2463 = vmatpush1.bf16.msra.mxu0 %v2363
        %2464 = vmatprep.subr.bf16.mxu0 0
        %2465 = vmatpush1.bf16.msra.mxu0 %v2364
        %2466 = vmatprep.subr.bf16.mxu0 0
        %2467 = vmatpush1.bf16.msra.mxu0 %v2365
        %2468 = vmatprep.subr.bf16.mxu0 0
        %2469 = vmatpush1.bf16.msra.mxu0 %v2366
        %2470 = vmatprep.subr.bf16.mxu0 0
        %2471 = vmatpush1.bf16.msra.mxu0 %v2367
        %2472 = vmatprep.mubr.bf16.mxu0 %v2136
        %2473 = vmatmul.mubr.bf16.gmra.mrb[0].mxu0 %v2135
        %v2474 = vpop.f32.mrb[0].mxu0
        %v2475 = vadd.f32 %v2435, %v2474
        %v2476 = vpop.f32.mrb[0].mxu0
        %v2477 = vpop.f32.mrb[0].mxu0
        %v2478 = vpop.f32.mrb[0].mxu0
        %2479 = vdwg.mxu0
        %v2480 = vmul.f32 %v2475, 1.442695
        %v2481 = vpow.pop %v2480
        %v2482 = vld [vmem:[%s404] sm:$0xff]
        %2484 = vrot.lane.b32.xlu0 %v2482, 8
        %v2485 = vpop.permute.xlu0 %2484
        %v2487 = vmul.f32 %v2481, %v2485
        %2489 = vrot.lane.b32.xlu0 %v2487, 120
        %v2490 = vpop.permute.xlu0 %2489
        %v2492 = vadd.f32 %v2475, %v2490
        %v2493 = vpack.c.bf16 %v2492, %v2492
        %v2494 = vld [vmem:[%s6] sm:$0xff]
        %v2495 = vld [vmem:[%s6 + $0x8] sm:$0xff]
        %v2496 = vld [vmem:[%s7] sm:$0xf]
        %v2498 = vlaneseq
        %v2499 = vshrl.u32 %v2498, 7
        %v2500 = vsub.s32 0, %v2499
        %v2501 = vrot.slane %v2496, %v2500
        %v2502 = vlaneseq
        %v2503 = vshrl.u32 %v2502, 7
        %v2504 = vsub.s32 1, %v2503
        %v2505 = vrot.slane %v2496, %v2504
        %v2506 = vlaneseq
        %v2507 = vshrl.u32 %v2506, 7
        %v2508 = vsub.s32 2, %v2507
        %v2509 = vrot.slane %v2496, %v2508
        %v2510 = vlaneseq
        %v2511 = vshrl.u32 %v2510, 7
        %v2512 = vsub.s32 3, %v2511
        %v2513 = vrot.slane %v2496, %v2512
        %v2520 = vunpack.c.l.b16 %v2494
        %v2521 = vunpack.c.h.b16 %v2494
        %v2522 = vunpack.c.l.b16 %v2495
        %v2523 = vunpack.c.h.b16 %v2495
        %v2524 = vpack.c.b16 %v2520, %v2520
        %v2525 = vpack.c.b16 %v2521, %v2521
        %v2526 = vpack.c.b16 %v2522, %v2522
        %v2527 = vpack.c.b16 %v2523, %v2523
        %vm2528 = vcmask 64512
        %v2530 = vsel %vm2528, %v2493, 0
        %vm2532 = vcmask 1043456
        %v2534 = vsel %vm2532, %v2524, 0
        %v2537 = vsel %vm2532, %v2525, 0
        %v2540 = vsel %vm2532, %v2526, 0
        %v2543 = vsel %vm2532, %v2527, 0
        %2545 = vmatprep.subr.bf16.mxu0 %v2537
        %2546 = vmatpush1.bf16.msra.mxu0 %v2534
        %2547 = vmatprep.subr.bf16.mxu0 0
        %2548 = vmatpush1.bf16.msra.mxu0 0
        %2549 = vmatprep.subr.bf16.mxu0 0
        %2550 = vmatpush1.bf16.msra.mxu0 0
        %2551 = vmatprep.subr.bf16.mxu0 0
        %2552 = vmatpush1.bf16.msra.mxu0 0
        %2553 = vmatprep.subr.bf16.mxu0 0
        %2554 = vmatpush1.bf16.msra.mxu0 0
        %2555 = vmatprep.subr.bf16.mxu0 0
        %2556 = vmatpush1.bf16.msra.mxu0 0
        %2557 = vmatprep.subr.bf16.mxu0 0
        %2558 = vmatpush1.bf16.msra.mxu0 0
        %2559 = vmatprep.subr.bf16.mxu0 0
        %2560 = vmatpush1.bf16.msra.mxu0 0
        %2561 = vmatprep.subr.bf16.mxu0 0
        %2562 = vmatpush1.bf16.msra.mxu0 0
        %2563 = vmatprep.subr.bf16.mxu0 0
        %2564 = vmatpush1.bf16.msra.mxu0 0
        %2565 = vmatprep.subr.bf16.mxu0 0
        %2566 = vmatpush1.bf16.msra.mxu0 0
        %2567 = vmatprep.subr.bf16.mxu0 0
        %2568 = vmatpush1.bf16.msra.mxu0 0
        %2569 = vmatprep.subr.bf16.mxu0 0
        %2570 = vmatpush1.bf16.msra.mxu0 0
        %2571 = vmatprep.subr.bf16.mxu0 0
        %2572 = vmatpush1.bf16.msra.mxu0 0
        %2573 = vmatprep.subr.bf16.mxu0 0
        %2574 = vmatpush1.bf16.msra.mxu0 0
        %2575 = vmatprep.subr.bf16.mxu0 0
        %2576 = vmatpush1.bf16.msra.mxu0 0
        %2577 = vmatprep.mubr.bf16.mxu0 0
        %2578 = vmatmul.mubr.bf16.gmra.mrb[0].mxu0 %v2530
        %v2579 = vpop.f32.mrb[0].mxu0
        %v2580 = vadd.f32 %v2501, %v2579
        %v2581 = vpop.f32.mrb[0].mxu0
        %v2582 = vadd.f32 %v2505, %v2581
        %v2583 = vpop.f32.mrb[0].mxu0
        %v2584 = vpop.f32.mrb[0].mxu0
        %2585 = vdwg.mxu0
        %2586 = vmatprep.subr.bf16.mxu0 %v2543
        %2587 = vmatpush1.bf16.msra.mxu0 %v2540
        %2588 = vmatprep.subr.bf16.mxu0 0
        %2589 = vmatpush1.bf16.msra.mxu0 0
        %2590 = vmatprep.subr.bf16.mxu0 0
        %2591 = vmatpush1.bf16.msra.mxu0 0
        %2592 = vmatprep.subr.bf16.mxu0 0
        %2593 = vmatpush1.bf16.msra.mxu0 0
        %2594 = vmatprep.subr.bf16.mxu0 0
        %2595 = vmatpush1.bf16.msra.mxu0 0
        %2596 = vmatprep.subr.bf16.mxu0 0
        %2597 = vmatpush1.bf16.msra.mxu0 0
        %2598 = vmatprep.subr.bf16.mxu0 0
        %2599 = vmatpush1.bf16.msra.mxu0 0
        %2600 = vmatprep.subr.bf16.mxu0 0
        %2601 = vmatpush1.bf16.msra.mxu0 0
        %2602 = vmatprep.subr.bf16.mxu0 0
        %2603 = vmatpush1.bf16.msra.mxu0 0
        %2604 = vmatprep.subr.bf16.mxu0 0
        %2605 = vmatpush1.bf16.msra.mxu0 0
        %2606 = vmatprep.subr.bf16.mxu0 0
        %2607 = vmatpush1.bf16.msra.mxu0 0
        %2608 = vmatprep.subr.bf16.mxu0 0
        %2609 = vmatpush1.bf16.msra.mxu0 0
        %2610 = vmatprep.subr.bf16.mxu0 0
        %2611 = vmatpush1.bf16.msra.mxu0 0
        %2612 = vmatprep.subr.bf16.mxu0 0
        %2613 = vmatpush1.bf16.msra.mxu0 0
        %2614 = vmatprep.subr.bf16.mxu0 0
        %2615 = vmatpush1.bf16.msra.mxu0 0
        %2616 = vmatprep.subr.bf16.mxu0 0
        %2617 = vmatpush1.bf16.msra.mxu0 0
        %2618 = vmatprep.mubr.bf16.mxu0 0
        %2619 = vmatmul.mubr.bf16.gmra.mrb[0].mxu0 %v2530
        %v2620 = vpop.f32.mrb[0].mxu0
        %v2621 = vadd.f32 %v2509, %v2620
        %v2622 = vpop.f32.mrb[0].mxu0
        %v2623 = vadd.f32 %v2513, %v2622
        %v2624 = vpop.f32.mrb[0].mxu0
        %v2625 = vpop.f32.mrb[0].mxu0
        %2626 = vdwg.mxu0
        %v2627 = vmax.f32 %v2580, 0.0
        %v2628 = vmax.f32 %v2582, 0.0
        %v2629 = vmax.f32 %v2621, 0.0
        %v2630 = vmax.f32 %v2623, 0.0
        %v2631 = vpack.c.bf16 %v2627, %v2627
        %v2632 = vpack.c.bf16 %v2628, %v2628
        %v2633 = vpack.c.bf16 %v2629, %v2629
        %v2634 = vpack.c.bf16 %v2630, %v2630
        %v2635 = vld [vmem:[#allocation5] sm:$0xff]
        %v2636 = vld [vmem:[#allocation5 + $0x8] sm:$0xff]
        %v2637 = vld [vmem:[#allocation5 + $0x10] sm:$0xff]
        %v2638 = vld [vmem:[#allocation5 + $0x18] sm:$0xf]
        %v2639 = vld [vmem:[#allocation5 + $0x1c] sm:$0xff]
        %v2640 = vld [vmem:[#allocation5 + $0x24] sm:$0xff]
        %v2641 = vld [vmem:[#allocation5 + $0x2c] sm:$0xff]
        %v2642 = vld [vmem:[#allocation5 + $0x34] sm:$0xf]
        %v2643 = vld [vmem:[#allocation5 + $0x38] sm:$0xff]
        %v2644 = vld [vmem:[#allocation5 + $0x40] sm:$0xff]
        %v2645 = vld [vmem:[#allocation5 + $0x48] sm:$0xff]
        %v2646 = vld [vmem:[#allocation5 + $0x50] sm:$0xf]
        %v2647 = vld [vmem:[#allocation5 + $0x54] sm:$0xff]
        %v2648 = vld [vmem:[#allocation5 + $0x5c] sm:$0xff]
        %v2649 = vld [vmem:[#allocation5 + $0x64] sm:$0xff]
        %v2650 = vld [vmem:[#allocation5 + $0x6c] sm:$0xf]
        %v2651 = vld [vmem:[#allocation5 + $0x70] sm:$0xff]
        %v2652 = vld [vmem:[#allocation5 + $0x78] sm:$0xff]
        %v2653 = vld [vmem:[#allocation5 + $0x80] sm:$0xff]
        %v2654 = vld [vmem:[#allocation5 + $0x88] sm:$0xf]
        %v2655 = vld [vmem:[#allocation5 + $0x8c] sm:$0xff]
        %v2656 = vld [vmem:[#allocation5 + $0x94] sm:$0xff]
        %v2657 = vld [vmem:[#allocation5 + $0x9c] sm:$0xff]
        %v2658 = vld [vmem:[#allocation5 + $0xa4] sm:$0xf]
        %v2659 = vld [vmem:[#allocation5 + $0xa8] sm:$0xff]
        %v2660 = vld [vmem:[#allocation5 + $0xb0] sm:$0xff]
        %v2661 = vld [vmem:[#allocation5 + $0xb8] sm:$0xff]
        %v2662 = vld [vmem:[#allocation5 + $0xc0] sm:$0xf]
        %v2663 = vld [vmem:[#allocation5 + $0xc4] sm:$0xff]
        %v2664 = vld [vmem:[#allocation5 + $0xcc] sm:$0xff]
        %v2665 = vld [vmem:[#allocation5 + $0xd4] sm:$0xff]
        %v2666 = vld [vmem:[#allocation5 + $0xdc] sm:$0xf]
        %v2667 = vld [vmem:[#allocation5 + $0xe0] sm:$0xff]
        %v2668 = vld [vmem:[#allocation5 + $0xe8] sm:$0xff]
        %v2669 = vld [vmem:[#allocation5 + $0xf0] sm:$0xff]
        %v2670 = vld [vmem:[#allocation5 + $0xf8] sm:$0xf]
        %v2671 = vld [vmem:[#allocation5 + $0xfc] sm:$0xff]
        %v2672 = vld [vmem:[#allocation5 + $0x104] sm:$0xff]
        %v2673 = vld [vmem:[#allocation5 + $0x10c] sm:$0xff]
        %v2674 = vld [vmem:[#allocation5 + $0x114] sm:$0xf]
        %v2675 = vld [vmem:[#allocation5 + $0x118] sm:$0xff]
        %v2676 = vld [vmem:[#allocation5 + $0x120] sm:$0xff]
        %v2677 = vld [vmem:[#allocation5 + $0x128] sm:$0xff]
        %v2678 = vld [vmem:[#allocation5 + $0x130] sm:$0xf]
        %v2679 = vld [vmem:[#allocation5 + $0x134] sm:$0xff]
        %v2680 = vld [vmem:[#allocation5 + $0x13c] sm:$0xff]
        %v2681 = vld [vmem:[#allocation5 + $0x144] sm:$0xff]
        %v2682 = vld [vmem:[#allocation5 + $0x14c] sm:$0xf]
        %v2683 = vld [vmem:[#allocation5 + $0x150] sm:$0xff]
        %v2684 = vld [vmem:[#allocation5 + $0x158] sm:$0xff]
        %v2685 = vld [vmem:[#allocation5 + $0x160] sm:$0xff]
        %v2686 = vld [vmem:[#allocation5 + $0x168] sm:$0xf]
        %v2687 = vld [vmem:[#allocation5 + $0x16c] sm:$0xff]
        %v2688 = vld [vmem:[#allocation5 + $0x174] sm:$0xff]
        %v2689 = vld [vmem:[#allocation5 + $0x17c] sm:$0xff]
        %v2690 = vld [vmem:[#allocation5 + $0x184] sm:$0xf]
        %v2691 = vld [vmem:[#allocation5 + $0x188] sm:$0xff]
        %v2692 = vld [vmem:[#allocation5 + $0x190] sm:$0xff]
        %v2693 = vld [vmem:[#allocation5 + $0x198] sm:$0xff]
        %v2694 = vld [vmem:[#allocation5 + $0x1a0] sm:$0xf]
        %v2695 = vld [vmem:[#allocation5 + $0x1a4] sm:$0xff]
        %v2696 = vld [vmem:[#allocation5 + $0x1ac] sm:$0xff]
        %v2697 = vld [vmem:[#allocation5 + $0x1b4] sm:$0xff]
        %v2698 = vld [vmem:[#allocation5 + $0x1bc] sm:$0xf]
        %v2699 = vld [vmem:[#allocation5 + $0x1c0] sm:$0xff]
        %v2700 = vld [vmem:[#allocation5 + $0x1c8] sm:$0xff]
        %v2701 = vld [vmem:[#allocation5 + $0x1d0] sm:$0xff]
        %v2702 = vld [vmem:[#allocation5 + $0x1d8] sm:$0xf]
        %v2703 = vld [vmem:[#allocation5 + $0x1dc] sm:$0xff]
        %v2704 = vld [vmem:[#allocation5 + $0x1e4] sm:$0xff]
        %v2705 = vld [vmem:[#allocation5 + $0x1ec] sm:$0xff]
        %v2706 = vld [vmem:[#allocation5 + $0x1f4] sm:$0xf]
        %v2707 = vld [vmem:[#allocation5 + $0x1f8] sm:$0xff]
        %v2708 = vld [vmem:[#allocation5 + $0x200] sm:$0xff]
        %v2709 = vld [vmem:[#allocation5 + $0x208] sm:$0xff]
        %v2710 = vld [vmem:[#allocation5 + $0x210] sm:$0xf]
        %v2711 = vld [vmem:[#allocation5 + $0x214] sm:$0xff]
        %v2712 = vld [vmem:[#allocation5 + $0x21c] sm:$0xff]
        %v2713 = vld [vmem:[#allocation5 + $0x224] sm:$0xff]
        %v2714 = vld [vmem:[#allocation5 + $0x22c] sm:$0xf]
        %v2715 = vld [vmem:[#allocation5 + $0x230] sm:$0xff]
        %v2716 = vld [vmem:[#allocation5 + $0x238] sm:$0xff]
        %v2717 = vld [vmem:[#allocation5 + $0x240] sm:$0xff]
        %v2718 = vld [vmem:[#allocation5 + $0x248] sm:$0xf]
        %v2719 = vld [vmem:[#allocation5 + $0x24c] sm:$0xff]
        %v2720 = vld [vmem:[#allocation5 + $0x254] sm:$0xff]
        %v2721 = vld [vmem:[#allocation5 + $0x25c] sm:$0xff]
        %v2722 = vld [vmem:[#allocation5 + $0x264] sm:$0xf]
        %v2723 = vld [vmem:[#allocation5 + $0x268] sm:$0xff]
        %v2724 = vld [vmem:[#allocation5 + $0x270] sm:$0xff]
        %v2725 = vld [vmem:[#allocation5 + $0x278] sm:$0xff]
        %v2726 = vld [vmem:[#allocation5 + $0x280] sm:$0xf]
        %v2727 = vld [vmem:[#allocation5 + $0x284] sm:$0xff]
        %v2728 = vld [vmem:[#allocation5 + $0x28c] sm:$0xff]
        %v2729 = vld [vmem:[#allocation5 + $0x294] sm:$0xff]
        %v2730 = vld [vmem:[#allocation5 + $0x29c] sm:$0xf]
        %v2731 = vld [vmem:[#allocation5 + $0x2a0] sm:$0xff]
        %v2732 = vld [vmem:[#allocation5 + $0x2a8] sm:$0xff]
        %v2733 = vld [vmem:[#allocation5 + $0x2b0] sm:$0xff]
        %v2734 = vld [vmem:[#allocation5 + $0x2b8] sm:$0xf]
        %v2735 = vld [vmem:[#allocation5 + $0x2bc] sm:$0xff]
        %v2736 = vld [vmem:[#allocation5 + $0x2c4] sm:$0xff]
        %v2737 = vld [vmem:[#allocation5 + $0x2cc] sm:$0xff]
        %v2738 = vld [vmem:[#allocation5 + $0x2d4] sm:$0xf]
        %v2739 = vld [vmem:[#allocation5 + $0x2d8] sm:$0xff]
        %v2740 = vld [vmem:[#allocation5 + $0x2e0] sm:$0xff]
        %v2741 = vld [vmem:[#allocation5 + $0x2e8] sm:$0xff]
        %v2742 = vld [vmem:[#allocation5 + $0x2f0] sm:$0xf]
        %v2743 = vld [vmem:[#allocation5 + $0x2f4] sm:$0xff]
        %v2744 = vld [vmem:[#allocation5 + $0x2fc] sm:$0xff]
        %v2745 = vld [vmem:[#allocation5 + $0x304] sm:$0xff]
        %v2746 = vld [vmem:[#allocation5 + $0x30c] sm:$0xf]
        %v2747 = vld [vmem:[#allocation5 + $0x310] sm:$0xff]
        %v2748 = vld [vmem:[#allocation5 + $0x318] sm:$0xff]
        %v2749 = vld [vmem:[#allocation5 + $0x320] sm:$0xff]
        %v2750 = vld [vmem:[#allocation5 + $0x328] sm:$0xf]
        %v2751 = vld [vmem:[#allocation5 + $0x32c] sm:$0xff]
        %v2752 = vld [vmem:[#allocation5 + $0x334] sm:$0xff]
        %v2753 = vld [vmem:[#allocation5 + $0x33c] sm:$0xff]
        %v2754 = vld [vmem:[#allocation5 + $0x344] sm:$0xf]
        %v2755 = vld [vmem:[#allocation5 + $0x348] sm:$0xff]
        %v2756 = vld [vmem:[#allocation5 + $0x350] sm:$0xff]
        %v2757 = vld [vmem:[#allocation5 + $0x358] sm:$0xff]
        %v2758 = vld [vmem:[#allocation5 + $0x360] sm:$0xf]
        %v2759 = vld [vmem:[#allocation5 + $0x364] sm:$0xff]
        %v2760 = vld [vmem:[#allocation5 + $0x36c] sm:$0xff]
        %v2761 = vld [vmem:[#allocation5 + $0x374] sm:$0xff]
        %v2762 = vld [vmem:[#allocation5 + $0x37c] sm:$0xf]
        %v2763 = vld [vmem:[#allocation5 + $0x380] sm:$0xff]
        %v2764 = vld [vmem:[#allocation5 + $0x388] sm:$0xff]
        %v2765 = vld [vmem:[#allocation5 + $0x390] sm:$0xff]
        %v2766 = vld [vmem:[#allocation5 + $0x398] sm:$0xf]
        %v2767 = vld [vmem:[#allocation5 + $0x39c] sm:$0xff]
        %v2768 = vld [vmem:[#allocation5 + $0x3a4] sm:$0xff]
        %v2769 = vld [vmem:[#allocation5 + $0x3ac] sm:$0xff]
        %v2770 = vld [vmem:[#allocation5 + $0x3b4] sm:$0xf]
        %v2771 = vld [vmem:[#allocation5 + $0x3b8] sm:$0xff]
        %v2772 = vld [vmem:[#allocation5 + $0x3c0] sm:$0xff]
        %v2773 = vld [vmem:[#allocation5 + $0x3c8] sm:$0xff]
        %v2774 = vld [vmem:[#allocation5 + $0x3d0] sm:$0xf]
        %v2775 = vld [vmem:[#allocation5 + $0x3d4] sm:$0xff]
        %v2776 = vld [vmem:[#allocation5 + $0x3dc] sm:$0xff]
        %v2777 = vld [vmem:[#allocation5 + $0x3e4] sm:$0xff]
        %v2778 = vld [vmem:[#allocation5 + $0x3ec] sm:$0xf]
        %v2779 = vld [vmem:[#allocation5 + $0x3f0] sm:$0xff]
        %v2780 = vld [vmem:[#allocation5 + $0x3f8] sm:$0xff]
        %v2781 = vld [vmem:[#allocation5 + $0x400] sm:$0xff]
        %v2782 = vld [vmem:[#allocation5 + $0x408] sm:$0xf]
        %v2783 = vld [vmem:[#allocation5 + $0x40c] sm:$0xff]
        %v2784 = vld [vmem:[#allocation5 + $0x414] sm:$0xff]
        %v2785 = vld [vmem:[#allocation5 + $0x41c] sm:$0xff]
        %v2786 = vld [vmem:[#allocation5 + $0x424] sm:$0xf]
        %v2787 = vld [vmem:[#allocation5 + $0x428] sm:$0xff]
        %v2788 = vld [vmem:[#allocation5 + $0x430] sm:$0xff]
        %v2789 = vld [vmem:[#allocation5 + $0x438] sm:$0xff]
        %v2790 = vld [vmem:[#allocation5 + $0x440] sm:$0xf]
        %v2791 = vld [vmem:[#allocation5 + $0x444] sm:$0xff]
        %v2792 = vld [vmem:[#allocation5 + $0x44c] sm:$0xff]
        %v2793 = vld [vmem:[#allocation5 + $0x454] sm:$0xff]
        %v2794 = vld [vmem:[#allocation5 + $0x45c] sm:$0xf]
        %v2795 = vld [vmem:[#allocation5 + $0x460] sm:$0xff]
        %v2796 = vld [vmem:[#allocation5 + $0x468] sm:$0xff]
        %v2797 = vld [vmem:[#allocation5 + $0x470] sm:$0xff]
        %v2798 = vld [vmem:[#allocation5 + $0x478] sm:$0xf]
        %v2799 = vld [vmem:[#allocation5 + $0x47c] sm:$0xff]
        %v2800 = vld [vmem:[#allocation5 + $0x484] sm:$0xff]
        %v2801 = vld [vmem:[#allocation5 + $0x48c] sm:$0xff]
        %v2802 = vld [vmem:[#allocation5 + $0x494] sm:$0xf]
        %v2803 = vld [vmem:[#allocation5 + $0x498] sm:$0xff]
        %v2804 = vld [vmem:[#allocation5 + $0x4a0] sm:$0xff]
        %v2805 = vld [vmem:[#allocation5 + $0x4a8] sm:$0xff]
        %v2806 = vld [vmem:[#allocation5 + $0x4b0] sm:$0xf]
        %v2807 = vld [vmem:[#allocation5 + $0x4b4] sm:$0xff]
        %v2808 = vld [vmem:[#allocation5 + $0x4bc] sm:$0xff]
        %v2809 = vld [vmem:[#allocation5 + $0x4c4] sm:$0xff]
        %v2810 = vld [vmem:[#allocation5 + $0x4cc] sm:$0xf]
        %v2811 = vld [vmem:[#allocation5 + $0x4d0] sm:$0xff]
        %v2812 = vld [vmem:[#allocation5 + $0x4d8] sm:$0xff]
        %v2813 = vld [vmem:[#allocation5 + $0x4e0] sm:$0xff]
        %v2814 = vld [vmem:[#allocation5 + $0x4e8] sm:$0xf]
        %v2815 = vld [vmem:[#allocation5 + $0x4ec] sm:$0xff]
        %v2816 = vld [vmem:[#allocation5 + $0x4f4] sm:$0xff]
        %v2817 = vld [vmem:[#allocation5 + $0x4fc] sm:$0xff]
        %v2818 = vld [vmem:[#allocation5 + $0x504] sm:$0xf]
        %v2819 = vld [vmem:[#allocation5 + $0x508] sm:$0xff]
        %v2820 = vld [vmem:[#allocation5 + $0x510] sm:$0xff]
        %v2821 = vld [vmem:[#allocation5 + $0x518] sm:$0xff]
        %v2822 = vld [vmem:[#allocation5 + $0x520] sm:$0xf]
        %v2823 = vld [vmem:[#allocation5 + $0x524] sm:$0xff]
        %v2824 = vld [vmem:[#allocation5 + $0x52c] sm:$0xff]
        %v2825 = vld [vmem:[#allocation5 + $0x534] sm:$0xff]
        %v2826 = vld [vmem:[#allocation5 + $0x53c] sm:$0xf]
        %v2827 = vld [vmem:[#allocation5 + $0x540] sm:$0xff]
        %v2828 = vld [vmem:[#allocation5 + $0x548] sm:$0xff]
        %v2829 = vld [vmem:[#allocation5 + $0x550] sm:$0xff]
        %v2830 = vld [vmem:[#allocation5 + $0x558] sm:$0xf]
        %v2831 = vld [vmem:[#allocation5 + $0x55c] sm:$0xff]
        %v2832 = vld [vmem:[#allocation5 + $0x564] sm:$0xff]
        %v2833 = vld [vmem:[#allocation5 + $0x56c] sm:$0xff]
        %v2834 = vld [vmem:[#allocation5 + $0x574] sm:$0xf]
        %v2835 = vld [vmem:[#allocation5 + $0x578] sm:$0xff]
        %v2836 = vld [vmem:[#allocation5 + $0x580] sm:$0xff]
        %v2837 = vld [vmem:[#allocation5 + $0x588] sm:$0xff]
        %v2838 = vld [vmem:[#allocation5 + $0x590] sm:$0xf]
        %v2839 = vld [vmem:[#allocation5 + $0x594] sm:$0xff]
        %v2840 = vld [vmem:[#allocation5 + $0x59c] sm:$0xff]
        %v2841 = vld [vmem:[#allocation5 + $0x5a4] sm:$0xff]
        %v2842 = vld [vmem:[#allocation5 + $0x5ac] sm:$0xf]
        %v2843 = vld [vmem:[#allocation5 + $0x5b0] sm:$0xff]
        %v2844 = vld [vmem:[#allocation5 + $0x5b8] sm:$0xff]
        %v2845 = vld [vmem:[#allocation5 + $0x5c0] sm:$0xff]
        %v2846 = vld [vmem:[#allocation5 + $0x5c8] sm:$0xf]
        %v2847 = vld [vmem:[#allocation5 + $0x5cc] sm:$0xff]
        %v2848 = vld [vmem:[#allocation5 + $0x5d4] sm:$0xff]
        %v2849 = vld [vmem:[#allocation5 + $0x5dc] sm:$0xff]
        %v2850 = vld [vmem:[#allocation5 + $0x5e4] sm:$0xf]
        %v2851 = vld [vmem:[#allocation5 + $0x5e8] sm:$0xff]
        %v2852 = vld [vmem:[#allocation5 + $0x5f0] sm:$0xff]
        %v2853 = vld [vmem:[#allocation5 + $0x5f8] sm:$0xff]
        %v2854 = vld [vmem:[#allocation5 + $0x600] sm:$0xf]
        %v2855 = vld [vmem:[#allocation5 + $0x604] sm:$0xff]
        %v2856 = vld [vmem:[#allocation5 + $0x60c] sm:$0xff]
        %v2857 = vld [vmem:[#allocation5 + $0x614] sm:$0xff]
        %v2858 = vld [vmem:[#allocation5 + $0x61c] sm:$0xf]
        %v2859 = vld [vmem:[#allocation5 + $0x620] sm:$0xff]
        %v2860 = vld [vmem:[#allocation5 + $0x628] sm:$0xff]
        %v2861 = vld [vmem:[#allocation5 + $0x630] sm:$0xff]
        %v2862 = vld [vmem:[#allocation5 + $0x638] sm:$0xf]
        %v2863 = vld [vmem:[#allocation5 + $0x63c] sm:$0xff]
        %v2864 = vld [vmem:[#allocation5 + $0x644] sm:$0xff]
        %v2865 = vld [vmem:[#allocation5 + $0x64c] sm:$0xff]
        %v2866 = vld [vmem:[#allocation5 + $0x654] sm:$0xf]
        %v2867 = vld [vmem:[#allocation5 + $0x658] sm:$0xff]
        %v2868 = vld [vmem:[#allocation5 + $0x660] sm:$0xff]
        %v2869 = vld [vmem:[#allocation5 + $0x668] sm:$0xff]
        %v2870 = vld [vmem:[#allocation5 + $0x670] sm:$0xf]
        %v2871 = vld [vmem:[#allocation5 + $0x674] sm:$0xff]
        %v2872 = vld [vmem:[#allocation5 + $0x67c] sm:$0xff]
        %v2873 = vld [vmem:[#allocation5 + $0x684] sm:$0xff]
        %v2874 = vld [vmem:[#allocation5 + $0x68c] sm:$0xf]
        %v2875 = vld [vmem:[#allocation5 + $0x690] sm:$0xff]
        %v2876 = vld [vmem:[#allocation5 + $0x698] sm:$0xff]
        %v2877 = vld [vmem:[#allocation5 + $0x6a0] sm:$0xff]
        %v2878 = vld [vmem:[#allocation5 + $0x6a8] sm:$0xf]
        %v2879 = vld [vmem:[#allocation5 + $0x6ac] sm:$0xff]
        %v2880 = vld [vmem:[#allocation5 + $0x6b4] sm:$0xff]
        %v2881 = vld [vmem:[#allocation5 + $0x6bc] sm:$0xff]
        %v2882 = vld [vmem:[#allocation5 + $0x6c4] sm:$0xf]
        %v2883 = vld [vmem:[#allocation5 + $0x6c8] sm:$0xff]
        %v2884 = vld [vmem:[#allocation5 + $0x6d0] sm:$0xff]
        %v2885 = vld [vmem:[#allocation5 + $0x6d8] sm:$0xff]
        %v2886 = vld [vmem:[#allocation5 + $0x6e0] sm:$0xf]
        %v2887 = vld [vmem:[#allocation5 + $0x6e4] sm:$0xff]
        %v2888 = vld [vmem:[#allocation5 + $0x6ec] sm:$0xff]
        %v2889 = vld [vmem:[#allocation5 + $0x6f4] sm:$0xff]
        %v2890 = vld [vmem:[#allocation5 + $0x6fc] sm:$0xf]
        %v2891 = vld [vmem:[%s9] sm:$0xff]
        %v2893 = vlaneseq
        %v2894 = vshrl.u32 %v2893, 7
        %v2895 = vsub.s32 0, %v2894
        %v2896 = vrot.slane %v2891, %v2895
        %v2897 = vlaneseq
        %v2898 = vshrl.u32 %v2897, 7
        %v2899 = vsub.s32 1, %v2898
        %v2900 = vrot.slane %v2891, %v2899
        %v2901 = vlaneseq
        %v2902 = vshrl.u32 %v2901, 7
        %v2903 = vsub.s32 2, %v2902
        %v2904 = vrot.slane %v2891, %v2903
        %v2905 = vlaneseq
        %v2906 = vshrl.u32 %v2905, 7
        %v2907 = vsub.s32 3, %v2906
        %v2908 = vrot.slane %v2891, %v2907
        %v2909 = vlaneseq
        %v2910 = vshrl.u32 %v2909, 7
        %v2911 = vsub.s32 4, %v2910
        %v2912 = vrot.slane %v2891, %v2911
        %v2913 = vlaneseq
        %v2914 = vshrl.u32 %v2913, 7
        %v2915 = vsub.s32 5, %v2914
        %v2916 = vrot.slane %v2891, %v2915
        %v2917 = vlaneseq
        %v2918 = vshrl.u32 %v2917, 7
        %v2919 = vsub.s32 6, %v2918
        %v2920 = vrot.slane %v2891, %v2919
        %v3184 = vunpack.c.l.b16 %v2635
        %v3185 = vunpack.c.h.b16 %v2635
        %v3186 = vunpack.c.l.b16 %v2636
        %v3187 = vunpack.c.h.b16 %v2636
        %v3188 = vunpack.c.l.b16 %v2637
        %v3189 = vunpack.c.h.b16 %v2637
        %v3190 = vunpack.c.l.b16 %v2638
        %v3191 = vunpack.c.l.b16 %v2639
        %v3192 = vunpack.c.h.b16 %v2639
        %v3193 = vunpack.c.l.b16 %v2640
        %v3194 = vunpack.c.h.b16 %v2640
        %v3195 = vunpack.c.l.b16 %v2641
        %v3196 = vunpack.c.h.b16 %v2641
        %v3197 = vunpack.c.l.b16 %v2642
        %v3198 = vunpack.c.l.b16 %v2643
        %v3199 = vunpack.c.h.b16 %v2643
        %v3200 = vunpack.c.l.b16 %v2644
        %v3201 = vunpack.c.h.b16 %v2644
        %v3202 = vunpack.c.l.b16 %v2645
        %v3203 = vunpack.c.h.b16 %v2645
        %v3204 = vunpack.c.l.b16 %v2646
        %v3205 = vunpack.c.l.b16 %v2647
        %v3206 = vunpack.c.h.b16 %v2647
        %v3207 = vunpack.c.l.b16 %v2648
        %v3208 = vunpack.c.h.b16 %v2648
        %v3209 = vunpack.c.l.b16 %v2649
        %v3210 = vunpack.c.h.b16 %v2649
        %v3211 = vunpack.c.l.b16 %v2650
        %v3212 = vunpack.c.l.b16 %v2651
        %v3213 = vunpack.c.h.b16 %v2651
        %v3214 = vunpack.c.l.b16 %v2652
        %v3215 = vunpack.c.h.b16 %v2652
        %v3216 = vunpack.c.l.b16 %v2653
        %v3217 = vunpack.c.h.b16 %v2653
        %v3218 = vunpack.c.l.b16 %v2654
        %v3219 = vunpack.c.l.b16 %v2655
        %v3220 = vunpack.c.h.b16 %v2655
        %v3221 = vunpack.c.l.b16 %v2656
        %v3222 = vunpack.c.h.b16 %v2656
        %v3223 = vunpack.c.l.b16 %v2657
        %v3224 = vunpack.c.h.b16 %v2657
        %v3225 = vunpack.c.l.b16 %v2658
        %v3226 = vunpack.c.l.b16 %v2659
        %v3227 = vunpack.c.h.b16 %v2659
        %v3228 = vunpack.c.l.b16 %v2660
        %v3229 = vunpack.c.h.b16 %v2660
        %v3230 = vunpack.c.l.b16 %v2661
        %v3231 = vunpack.c.h.b16 %v2661
        %v3232 = vunpack.c.l.b16 %v2662
        %v3233 = vunpack.c.l.b16 %v2663
        %v3234 = vunpack.c.h.b16 %v2663
        %v3235 = vunpack.c.l.b16 %v2664
        %v3236 = vunpack.c.h.b16 %v2664
        %v3237 = vunpack.c.l.b16 %v2665
        %v3238 = vunpack.c.h.b16 %v2665
        %v3239 = vunpack.c.l.b16 %v2666
        %v3240 = vunpack.c.l.b16 %v2667
        %v3241 = vunpack.c.h.b16 %v2667
        %v3242 = vunpack.c.l.b16 %v2668
        %v3243 = vunpack.c.h.b16 %v2668
        %v3244 = vunpack.c.l.b16 %v2669
        %v3245 = vunpack.c.h.b16 %v2669
        %v3246 = vunpack.c.l.b16 %v2670
        %v3247 = vunpack.c.l.b16 %v2671
        %v3248 = vunpack.c.h.b16 %v2671
        %v3249 = vunpack.c.l.b16 %v2672
        %v3250 = vunpack.c.h.b16 %v2672
        %v3251 = vunpack.c.l.b16 %v2673
        %v3252 = vunpack.c.h.b16 %v2673
        %v3253 = vunpack.c.l.b16 %v2674
        %v3254 = vunpack.c.l.b16 %v2675
        %v3255 = vunpack.c.h.b16 %v2675
        %v3256 = vunpack.c.l.b16 %v2676
        %v3257 = vunpack.c.h.b16 %v2676
        %v3258 = vunpack.c.l.b16 %v2677
        %v3259 = vunpack.c.h.b16 %v2677
        %v3260 = vunpack.c.l.b16 %v2678
        %v3261 = vunpack.c.l.b16 %v2679
        %v3262 = vunpack.c.h.b16 %v2679
        %v3263 = vunpack.c.l.b16 %v2680
        %v3264 = vunpack.c.h.b16 %v2680
        %v3265 = vunpack.c.l.b16 %v2681
        %v3266 = vunpack.c.h.b16 %v2681
        %v3267 = vunpack.c.l.b16 %v2682
        %v3268 = vunpack.c.l.b16 %v2683
        %v3269 = vunpack.c.h.b16 %v2683
        %v3270 = vunpack.c.l.b16 %v2684
        %v3271 = vunpack.c.h.b16 %v2684
        %v3272 = vunpack.c.l.b16 %v2685
        %v3273 = vunpack.c.h.b16 %v2685
        %v3274 = vunpack.c.l.b16 %v2686
        %v3275 = vunpack.c.l.b16 %v2687
        %v3276 = vunpack.c.h.b16 %v2687
        %v3277 = vunpack.c.l.b16 %v2688
        %v3278 = vunpack.c.h.b16 %v2688
        %v3279 = vunpack.c.l.b16 %v2689
        %v3280 = vunpack.c.h.b16 %v2689
        %v3281 = vunpack.c.l.b16 %v2690
        %v3282 = vunpack.c.l.b16 %v2691
        %v3283 = vunpack.c.h.b16 %v2691
        %v3284 = vunpack.c.l.b16 %v2692
        %v3285 = vunpack.c.h.b16 %v2692
        %v3286 = vunpack.c.l.b16 %v2693
        %v3287 = vunpack.c.h.b16 %v2693
        %v3288 = vunpack.c.l.b16 %v2694
        %v3289 = vunpack.c.l.b16 %v2695
        %v3290 = vunpack.c.h.b16 %v2695
        %v3291 = vunpack.c.l.b16 %v2696
        %v3292 = vunpack.c.h.b16 %v2696
        %v3293 = vunpack.c.l.b16 %v2697
        %v3294 = vunpack.c.h.b16 %v2697
        %v3295 = vunpack.c.l.b16 %v2698
        %v3296 = vunpack.c.l.b16 %v2699
        %v3297 = vunpack.c.h.b16 %v2699
        %v3298 = vunpack.c.l.b16 %v2700
        %v3299 = vunpack.c.h.b16 %v2700
        %v3300 = vunpack.c.l.b16 %v2701
        %v3301 = vunpack.c.h.b16 %v2701
        %v3302 = vunpack.c.l.b16 %v2702
        %v3303 = vunpack.c.l.b16 %v2703
        %v3304 = vunpack.c.h.b16 %v2703
        %v3305 = vunpack.c.l.b16 %v2704
        %v3306 = vunpack.c.h.b16 %v2704
        %v3307 = vunpack.c.l.b16 %v2705
        %v3308 = vunpack.c.h.b16 %v2705
        %v3309 = vunpack.c.l.b16 %v2706
        %v3310 = vunpack.c.l.b16 %v2707
        %v3311 = vunpack.c.h.b16 %v2707
        %v3312 = vunpack.c.l.b16 %v2708
        %v3313 = vunpack.c.h.b16 %v2708
        %v3314 = vunpack.c.l.b16 %v2709
        %v3315 = vunpack.c.h.b16 %v2709
        %v3316 = vunpack.c.l.b16 %v2710
        %v3317 = vunpack.c.l.b16 %v2711
        %v3318 = vunpack.c.h.b16 %v2711
        %v3319 = vunpack.c.l.b16 %v2712
        %v3320 = vunpack.c.h.b16 %v2712
        %v3321 = vunpack.c.l.b16 %v2713
        %v3322 = vunpack.c.h.b16 %v2713
        %v3323 = vunpack.c.l.b16 %v2714
        %v3324 = vunpack.c.l.b16 %v2715
        %v3325 = vunpack.c.h.b16 %v2715
        %v3326 = vunpack.c.l.b16 %v2716
        %v3327 = vunpack.c.h.b16 %v2716
        %v3328 = vunpack.c.l.b16 %v2717
        %v3329 = vunpack.c.h.b16 %v2717
        %v3330 = vunpack.c.l.b16 %v2718
        %v3331 = vunpack.c.l.b16 %v2719
        %v3332 = vunpack.c.h.b16 %v2719
        %v3333 = vunpack.c.l.b16 %v2720
        %v3334 = vunpack.c.h.b16 %v2720
        %v3335 = vunpack.c.l.b16 %v2721
        %v3336 = vunpack.c.h.b16 %v2721
        %v3337 = vunpack.c.l.b16 %v2722
        %v3338 = vunpack.c.l.b16 %v2723
        %v3339 = vunpack.c.h.b16 %v2723
        %v3340 = vunpack.c.l.b16 %v2724
        %v3341 = vunpack.c.h.b16 %v2724
        %v3342 = vunpack.c.l.b16 %v2725
        %v3343 = vunpack.c.h.b16 %v2725
        %v3344 = vunpack.c.l.b16 %v2726
        %v3345 = vunpack.c.l.b16 %v2727
        %v3346 = vunpack.c.h.b16 %v2727
        %v3347 = vunpack.c.l.b16 %v2728
        %v3348 = vunpack.c.h.b16 %v2728
        %v3349 = vunpack.c.l.b16 %v2729
        %v3350 = vunpack.c.h.b16 %v2729
        %v3351 = vunpack.c.l.b16 %v2730
        %v3352 = vunpack.c.l.b16 %v2731
        %v3353 = vunpack.c.h.b16 %v2731
        %v3354 = vunpack.c.l.b16 %v2732
        %v3355 = vunpack.c.h.b16 %v2732
        %v3356 = vunpack.c.l.b16 %v2733
        %v3357 = vunpack.c.h.b16 %v2733
        %v3358 = vunpack.c.l.b16 %v2734
        %v3359 = vunpack.c.l.b16 %v2735
        %v3360 = vunpack.c.h.b16 %v2735
        %v3361 = vunpack.c.l.b16 %v2736
        %v3362 = vunpack.c.h.b16 %v2736
        %v3363 = vunpack.c.l.b16 %v2737
        %v3364 = vunpack.c.h.b16 %v2737
        %v3365 = vunpack.c.l.b16 %v2738
        %v3366 = vunpack.c.l.b16 %v2739
        %v3367 = vunpack.c.h.b16 %v2739
        %v3368 = vunpack.c.l.b16 %v2740
        %v3369 = vunpack.c.h.b16 %v2740
        %v3370 = vunpack.c.l.b16 %v2741
        %v3371 = vunpack.c.h.b16 %v2741
        %v3372 = vunpack.c.l.b16 %v2742
        %v3373 = vunpack.c.l.b16 %v2743
        %v3374 = vunpack.c.h.b16 %v2743
        %v3375 = vunpack.c.l.b16 %v2744
        %v3376 = vunpack.c.h.b16 %v2744
        %v3377 = vunpack.c.l.b16 %v2745
        %v3378 = vunpack.c.h.b16 %v2745
        %v3379 = vunpack.c.l.b16 %v2746
        %v3380 = vunpack.c.l.b16 %v2747
        %v3381 = vunpack.c.h.b16 %v2747
        %v3382 = vunpack.c.l.b16 %v2748
        %v3383 = vunpack.c.h.b16 %v2748
        %v3384 = vunpack.c.l.b16 %v2749
        %v3385 = vunpack.c.h.b16 %v2749
        %v3386 = vunpack.c.l.b16 %v2750
        %v3387 = vunpack.c.l.b16 %v2751
        %v3388 = vunpack.c.h.b16 %v2751
        %v3389 = vunpack.c.l.b16 %v2752
        %v3390 = vunpack.c.h.b16 %v2752
        %v3391 = vunpack.c.l.b16 %v2753
        %v3392 = vunpack.c.h.b16 %v2753
        %v3393 = vunpack.c.l.b16 %v2754
        %v3394 = vunpack.c.l.b16 %v2755
        %v3395 = vunpack.c.h.b16 %v2755
        %v3396 = vunpack.c.l.b16 %v2756
        %v3397 = vunpack.c.h.b16 %v2756
        %v3398 = vunpack.c.l.b16 %v2757
        %v3399 = vunpack.c.h.b16 %v2757
        %v3400 = vunpack.c.l.b16 %v2758
        %v3401 = vunpack.c.l.b16 %v2759
        %v3402 = vunpack.c.h.b16 %v2759
        %v3403 = vunpack.c.l.b16 %v2760
        %v3404 = vunpack.c.h.b16 %v2760
        %v3405 = vunpack.c.l.b16 %v2761
        %v3406 = vunpack.c.h.b16 %v2761
        %v3407 = vunpack.c.l.b16 %v2762
        %v3408 = vunpack.c.l.b16 %v2763
        %v3409 = vunpack.c.h.b16 %v2763
        %v3410 = vunpack.c.l.b16 %v2764
        %v3411 = vunpack.c.h.b16 %v2764
        %v3412 = vunpack.c.l.b16 %v2765
        %v3413 = vunpack.c.h.b16 %v2765
        %v3414 = vunpack.c.l.b16 %v2766
        %v3415 = vunpack.c.l.b16 %v2767
        %v3416 = vunpack.c.h.b16 %v2767
        %v3417 = vunpack.c.l.b16 %v2768
        %v3418 = vunpack.c.h.b16 %v2768
        %v3419 = vunpack.c.l.b16 %v2769
        %v3420 = vunpack.c.h.b16 %v2769
        %v3421 = vunpack.c.l.b16 %v2770
        %v3422 = vunpack.c.l.b16 %v2771
        %v3423 = vunpack.c.h.b16 %v2771
        %v3424 = vunpack.c.l.b16 %v2772
        %v3425 = vunpack.c.h.b16 %v2772
        %v3426 = vunpack.c.l.b16 %v2773
        %v3427 = vunpack.c.h.b16 %v2773
        %v3428 = vunpack.c.l.b16 %v2774
        %v3429 = vunpack.c.l.b16 %v2775
        %v3430 = vunpack.c.h.b16 %v2775
        %v3431 = vunpack.c.l.b16 %v2776
        %v3432 = vunpack.c.h.b16 %v2776
        %v3433 = vunpack.c.l.b16 %v2777
        %v3434 = vunpack.c.h.b16 %v2777
        %v3435 = vunpack.c.l.b16 %v2778
        %v3436 = vunpack.c.l.b16 %v2779
        %v3437 = vunpack.c.h.b16 %v2779
        %v3438 = vunpack.c.l.b16 %v2780
        %v3439 = vunpack.c.h.b16 %v2780
        %v3440 = vunpack.c.l.b16 %v2781
        %v3441 = vunpack.c.h.b16 %v2781
        %v3442 = vunpack.c.l.b16 %v2782
        %v3443 = vunpack.c.l.b16 %v2783
        %v3444 = vunpack.c.h.b16 %v2783
        %v3445 = vunpack.c.l.b16 %v2784
        %v3446 = vunpack.c.h.b16 %v2784
        %v3447 = vunpack.c.l.b16 %v2785
        %v3448 = vunpack.c.h.b16 %v2785
        %v3449 = vunpack.c.l.b16 %v2786
        %v3450 = vunpack.c.l.b16 %v2787
        %v3451 = vunpack.c.h.b16 %v2787
        %v3452 = vunpack.c.l.b16 %v2788
        %v3453 = vunpack.c.h.b16 %v2788
        %v3454 = vunpack.c.l.b16 %v2789
        %v3455 = vunpack.c.h.b16 %v2789
        %v3456 = vunpack.c.l.b16 %v2790
        %v3457 = vunpack.c.l.b16 %v2791
        %v3458 = vunpack.c.h.b16 %v2791
        %v3459 = vunpack.c.l.b16 %v2792
        %v3460 = vunpack.c.h.b16 %v2792
        %v3461 = vunpack.c.l.b16 %v2793
        %v3462 = vunpack.c.h.b16 %v2793
        %v3463 = vunpack.c.l.b16 %v2794
        %v3464 = vunpack.c.l.b16 %v2795
        %v3465 = vunpack.c.h.b16 %v2795
        %v3466 = vunpack.c.l.b16 %v2796
        %v3467 = vunpack.c.h.b16 %v2796
        %v3468 = vunpack.c.l.b16 %v2797
        %v3469 = vunpack.c.h.b16 %v2797
        %v3470 = vunpack.c.l.b16 %v2798
        %v3471 = vunpack.c.l.b16 %v2799
        %v3472 = vunpack.c.h.b16 %v2799
        %v3473 = vunpack.c.l.b16 %v2800
        %v3474 = vunpack.c.h.b16 %v2800
        %v3475 = vunpack.c.l.b16 %v2801
        %v3476 = vunpack.c.h.b16 %v2801
        %v3477 = vunpack.c.l.b16 %v2802
        %v3478 = vunpack.c.l.b16 %v2803
        %v3479 = vunpack.c.h.b16 %v2803
        %v3480 = vunpack.c.l.b16 %v2804
        %v3481 = vunpack.c.h.b16 %v2804
        %v3482 = vunpack.c.l.b16 %v2805
        %v3483 = vunpack.c.h.b16 %v2805
        %v3484 = vunpack.c.l.b16 %v2806
        %v3485 = vunpack.c.l.b16 %v2807
        %v3486 = vunpack.c.h.b16 %v2807
        %v3487 = vunpack.c.l.b16 %v2808
        %v3488 = vunpack.c.h.b16 %v2808
        %v3489 = vunpack.c.l.b16 %v2809
        %v3490 = vunpack.c.h.b16 %v2809
        %v3491 = vunpack.c.l.b16 %v2810
        %v3492 = vunpack.c.l.b16 %v2811
        %v3493 = vunpack.c.h.b16 %v2811
        %v3494 = vunpack.c.l.b16 %v2812
        %v3495 = vunpack.c.h.b16 %v2812
        %v3496 = vunpack.c.l.b16 %v2813
        %v3497 = vunpack.c.h.b16 %v2813
        %v3498 = vunpack.c.l.b16 %v2814
        %v3499 = vunpack.c.l.b16 %v2815
        %v3500 = vunpack.c.h.b16 %v2815
        %v3501 = vunpack.c.l.b16 %v2816
        %v3502 = vunpack.c.h.b16 %v2816
        %v3503 = vunpack.c.l.b16 %v2817
        %v3504 = vunpack.c.h.b16 %v2817
        %v3505 = vunpack.c.l.b16 %v2818
        %v3506 = vunpack.c.l.b16 %v2819
        %v3507 = vunpack.c.h.b16 %v2819
        %v3508 = vunpack.c.l.b16 %v2820
        %v3509 = vunpack.c.h.b16 %v2820
        %v3510 = vunpack.c.l.b16 %v2821
        %v3511 = vunpack.c.h.b16 %v2821
        %v3512 = vunpack.c.l.b16 %v2822
        %v3513 = vunpack.c.l.b16 %v2823
        %v3514 = vunpack.c.h.b16 %v2823
        %v3515 = vunpack.c.l.b16 %v2824
        %v3516 = vunpack.c.h.b16 %v2824
        %v3517 = vunpack.c.l.b16 %v2825
        %v3518 = vunpack.c.h.b16 %v2825
        %v3519 = vunpack.c.l.b16 %v2826
        %v3520 = vunpack.c.l.b16 %v2827
        %v3521 = vunpack.c.h.b16 %v2827
        %v3522 = vunpack.c.l.b16 %v2828
        %v3523 = vunpack.c.h.b16 %v2828
        %v3524 = vunpack.c.l.b16 %v2829
        %v3525 = vunpack.c.h.b16 %v2829
        %v3526 = vunpack.c.l.b16 %v2830
        %v3527 = vunpack.c.l.b16 %v2831
        %v3528 = vunpack.c.h.b16 %v2831
        %v3529 = vunpack.c.l.b16 %v2832
        %v3530 = vunpack.c.h.b16 %v2832
        %v3531 = vunpack.c.l.b16 %v2833
        %v3532 = vunpack.c.h.b16 %v2833
        %v3533 = vunpack.c.l.b16 %v2834
        %v3534 = vunpack.c.l.b16 %v2835
        %v3535 = vunpack.c.h.b16 %v2835
        %v3536 = vunpack.c.l.b16 %v2836
        %v3537 = vunpack.c.h.b16 %v2836
        %v3538 = vunpack.c.l.b16 %v2837
        %v3539 = vunpack.c.h.b16 %v2837
        %v3540 = vunpack.c.l.b16 %v2838
        %v3541 = vunpack.c.l.b16 %v2839
        %v3542 = vunpack.c.h.b16 %v2839
        %v3543 = vunpack.c.l.b16 %v2840
        %v3544 = vunpack.c.h.b16 %v2840
        %v3545 = vunpack.c.l.b16 %v2841
        %v3546 = vunpack.c.h.b16 %v2841
        %v3547 = vunpack.c.l.b16 %v2842
        %v3548 = vunpack.c.l.b16 %v2843
        %v3549 = vunpack.c.h.b16 %v2843
        %v3550 = vunpack.c.l.b16 %v2844
        %v3551 = vunpack.c.h.b16 %v2844
        %v3552 = vunpack.c.l.b16 %v2845
        %v3553 = vunpack.c.h.b16 %v2845
        %v3554 = vunpack.c.l.b16 %v2846
        %v3555 = vunpack.c.l.b16 %v2847
        %v3556 = vunpack.c.h.b16 %v2847
        %v3557 = vunpack.c.l.b16 %v2848
        %v3558 = vunpack.c.h.b16 %v2848
        %v3559 = vunpack.c.l.b16 %v2849
        %v3560 = vunpack.c.h.b16 %v2849
        %v3561 = vunpack.c.l.b16 %v2850
        %v3562 = vunpack.c.l.b16 %v2851
        %v3563 = vunpack.c.h.b16 %v2851
        %v3564 = vunpack.c.l.b16 %v2852
        %v3565 = vunpack.c.h.b16 %v2852
        %v3566 = vunpack.c.l.b16 %v2853
        %v3567 = vunpack.c.h.b16 %v2853
        %v3568 = vunpack.c.l.b16 %v2854
        %v3569 = vunpack.c.l.b16 %v2855
        %v3570 = vunpack.c.h.b16 %v2855
        %v3571 = vunpack.c.l.b16 %v2856
        %v3572 = vunpack.c.h.b16 %v2856
        %v3573 = vunpack.c.l.b16 %v2857
        %v3574 = vunpack.c.h.b16 %v2857
        %v3575 = vunpack.c.l.b16 %v2858
        %v3576 = vunpack.c.l.b16 %v2859
        %v3577 = vunpack.c.h.b16 %v2859
        %v3578 = vunpack.c.l.b16 %v2860
        %v3579 = vunpack.c.h.b16 %v2860
        %v3580 = vunpack.c.l.b16 %v2861
        %v3581 = vunpack.c.h.b16 %v2861
        %v3582 = vunpack.c.l.b16 %v2862
        %v3583 = vunpack.c.l.b16 %v2863
        %v3584 = vunpack.c.h.b16 %v2863
        %v3585 = vunpack.c.l.b16 %v2864
        %v3586 = vunpack.c.h.b16 %v2864
        %v3587 = vunpack.c.l.b16 %v2865
        %v3588 = vunpack.c.h.b16 %v2865
        %v3589 = vunpack.c.l.b16 %v2866
        %v3590 = vunpack.c.l.b16 %v2867
        %v3591 = vunpack.c.h.b16 %v2867
        %v3592 = vunpack.c.l.b16 %v2868
        %v3593 = vunpack.c.h.b16 %v2868
        %v3594 = vunpack.c.l.b16 %v2869
        %v3595 = vunpack.c.h.b16 %v2869
        %v3596 = vunpack.c.l.b16 %v2870
        %v3597 = vunpack.c.l.b16 %v2871
        %v3598 = vunpack.c.h.b16 %v2871
        %v3599 = vunpack.c.l.b16 %v2872
        %v3600 = vunpack.c.h.b16 %v2872
        %v3601 = vunpack.c.l.b16 %v2873
        %v3602 = vunpack.c.h.b16 %v2873
        %v3603 = vunpack.c.l.b16 %v2874
        %v3604 = vunpack.c.l.b16 %v2875
        %v3605 = vunpack.c.h.b16 %v2875
        %v3606 = vunpack.c.l.b16 %v2876
        %v3607 = vunpack.c.h.b16 %v2876
        %v3608 = vunpack.c.l.b16 %v2877
        %v3609 = vunpack.c.h.b16 %v2877
        %v3610 = vunpack.c.l.b16 %v2878
        %v3611 = vunpack.c.l.b16 %v2879
        %v3612 = vunpack.c.h.b16 %v2879
        %v3613 = vunpack.c.l.b16 %v2880
        %v3614 = vunpack.c.h.b16 %v2880
        %v3615 = vunpack.c.l.b16 %v2881
        %v3616 = vunpack.c.h.b16 %v2881
        %v3617 = vunpack.c.l.b16 %v2882
        %v3618 = vunpack.c.l.b16 %v2883
        %v3619 = vunpack.c.h.b16 %v2883
        %v3620 = vunpack.c.l.b16 %v2884
        %v3621 = vunpack.c.h.b16 %v2884
        %v3622 = vunpack.c.l.b16 %v2885
        %v3623 = vunpack.c.h.b16 %v2885
        %v3624 = vunpack.c.l.b16 %v2886
        %v3625 = vunpack.c.l.b16 %v2887
        %v3626 = vunpack.c.h.b16 %v2887
        %v3627 = vunpack.c.l.b16 %v2888
        %v3628 = vunpack.c.h.b16 %v2888
        %v3629 = vunpack.c.l.b16 %v2889
        %v3630 = vunpack.c.h.b16 %v2889
        %v3631 = vunpack.c.l.b16 %v2890
        %v3632 = vpack.c.b16 %v3191, %v3184
        %v3633 = vpack.c.b16 %v3192, %v3185
        %v3634 = vpack.c.b16 %v3193, %v3186
        %v3635 = vpack.c.b16 %v3194, %v3187
        %v3636 = vpack.c.b16 %v3195, %v3188
        %v3637 = vpack.c.b16 %v3196, %v3189
        %v3638 = vpack.c.b16 %v3197, %v3190
        %v3639 = vpack.c.b16 %v3205, %v3198
        %v3640 = vpack.c.b16 %v3206, %v3199
        %v3641 = vpack.c.b16 %v3207, %v3200
        %v3642 = vpack.c.b16 %v3208, %v3201
        %v3643 = vpack.c.b16 %v3209, %v3202
        %v3644 = vpack.c.b16 %v3210, %v3203
        %v3645 = vpack.c.b16 %v3211, %v3204
        %v3646 = vpack.c.b16 %v3219, %v3212
        %v3647 = vpack.c.b16 %v3220, %v3213
        %v3648 = vpack.c.b16 %v3221, %v3214
        %v3649 = vpack.c.b16 %v3222, %v3215
        %v3650 = vpack.c.b16 %v3223, %v3216
        %v3651 = vpack.c.b16 %v3224, %v3217
        %v3652 = vpack.c.b16 %v3225, %v3218
        %v3653 = vpack.c.b16 %v3233, %v3226
        %v3654 = vpack.c.b16 %v3234, %v3227
        %v3655 = vpack.c.b16 %v3235, %v3228
        %v3656 = vpack.c.b16 %v3236, %v3229
        %v3657 = vpack.c.b16 %v3237, %v3230
        %v3658 = vpack.c.b16 %v3238, %v3231
        %v3659 = vpack.c.b16 %v3239, %v3232
        %v3660 = vpack.c.b16 %v3247, %v3240
        %v3661 = vpack.c.b16 %v3248, %v3241
        %v3662 = vpack.c.b16 %v3249, %v3242
        %v3663 = vpack.c.b16 %v3250, %v3243
        %v3664 = vpack.c.b16 %v3251, %v3244
        %v3665 = vpack.c.b16 %v3252, %v3245
        %v3666 = vpack.c.b16 %v3253, %v3246
        %v3667 = vpack.c.b16 %v3261, %v3254
        %v3668 = vpack.c.b16 %v3262, %v3255
        %v3669 = vpack.c.b16 %v3263, %v3256
        %v3670 = vpack.c.b16 %v3264, %v3257
        %v3671 = vpack.c.b16 %v3265, %v3258
        %v3672 = vpack.c.b16 %v3266, %v3259
        %v3673 = vpack.c.b16 %v3267, %v3260
        %v3674 = vpack.c.b16 %v3275, %v3268
        %v3675 = vpack.c.b16 %v3276, %v3269
        %v3676 = vpack.c.b16 %v3277, %v3270
        %v3677 = vpack.c.b16 %v3278, %v3271
        %v3678 = vpack.c.b16 %v3279, %v3272
        %v3679 = vpack.c.b16 %v3280, %v3273
        %v3680 = vpack.c.b16 %v3281, %v3274
        %v3681 = vpack.c.b16 %v3289, %v3282
        %v3682 = vpack.c.b16 %v3290, %v3283
        %v3683 = vpack.c.b16 %v3291, %v3284
        %v3684 = vpack.c.b16 %v3292, %v3285
        %v3685 = vpack.c.b16 %v3293, %v3286
        %v3686 = vpack.c.b16 %v3294, %v3287
        %v3687 = vpack.c.b16 %v3295, %v3288
        %v3688 = vpack.c.b16 %v3303, %v3296
        %v3689 = vpack.c.b16 %v3304, %v3297
        %v3690 = vpack.c.b16 %v3305, %v3298
        %v3691 = vpack.c.b16 %v3306, %v3299
        %v3692 = vpack.c.b16 %v3307, %v3300
        %v3693 = vpack.c.b16 %v3308, %v3301
        %v3694 = vpack.c.b16 %v3309, %v3302
        %v3695 = vpack.c.b16 %v3317, %v3310
        %v3696 = vpack.c.b16 %v3318, %v3311
        %v3697 = vpack.c.b16 %v3319, %v3312
        %v3698 = vpack.c.b16 %v3320, %v3313
        %v3699 = vpack.c.b16 %v3321, %v3314
        %v3700 = vpack.c.b16 %v3322, %v3315
        %v3701 = vpack.c.b16 %v3323, %v3316
        %v3702 = vpack.c.b16 %v3331, %v3324
        %v3703 = vpack.c.b16 %v3332, %v3325
        %v3704 = vpack.c.b16 %v3333, %v3326
        %v3705 = vpack.c.b16 %v3334, %v3327
        %v3706 = vpack.c.b16 %v3335, %v3328
        %v3707 = vpack.c.b16 %v3336, %v3329
        %v3708 = vpack.c.b16 %v3337, %v3330
        %v3709 = vpack.c.b16 %v3345, %v3338
        %v3710 = vpack.c.b16 %v3346, %v3339
        %v3711 = vpack.c.b16 %v3347, %v3340
        %v3712 = vpack.c.b16 %v3348, %v3341
        %v3713 = vpack.c.b16 %v3349, %v3342
        %v3714 = vpack.c.b16 %v3350, %v3343
        %v3715 = vpack.c.b16 %v3351, %v3344
        %v3716 = vpack.c.b16 %v3359, %v3352
        %v3717 = vpack.c.b16 %v3360, %v3353
        %v3718 = vpack.c.b16 %v3361, %v3354
        %v3719 = vpack.c.b16 %v3362, %v3355
        %v3720 = vpack.c.b16 %v3363, %v3356
        %v3721 = vpack.c.b16 %v3364, %v3357
        %v3722 = vpack.c.b16 %v3365, %v3358
        %v3723 = vpack.c.b16 %v3373, %v3366
        %v3724 = vpack.c.b16 %v3374, %v3367
        %v3725 = vpack.c.b16 %v3375, %v3368
        %v3726 = vpack.c.b16 %v3376, %v3369
        %v3727 = vpack.c.b16 %v3377, %v3370
        %v3728 = vpack.c.b16 %v3378, %v3371
        %v3729 = vpack.c.b16 %v3379, %v3372
        %v3730 = vpack.c.b16 %v3387, %v3380
        %v3731 = vpack.c.b16 %v3388, %v3381
        %v3732 = vpack.c.b16 %v3389, %v3382
        %v3733 = vpack.c.b16 %v3390, %v3383
        %v3734 = vpack.c.b16 %v3391, %v3384
        %v3735 = vpack.c.b16 %v3392, %v3385
        %v3736 = vpack.c.b16 %v3393, %v3386
        %v3737 = vpack.c.b16 %v3401, %v3394
        %v3738 = vpack.c.b16 %v3402, %v3395
        %v3739 = vpack.c.b16 %v3403, %v3396
        %v3740 = vpack.c.b16 %v3404, %v3397
        %v3741 = vpack.c.b16 %v3405, %v3398
        %v3742 = vpack.c.b16 %v3406, %v3399
        %v3743 = vpack.c.b16 %v3407, %v3400
        %v3744 = vpack.c.b16 %v3415, %v3408
        %v3745 = vpack.c.b16 %v3416, %v3409
        %v3746 = vpack.c.b16 %v3417, %v3410
        %v3747 = vpack.c.b16 %v3418, %v3411
        %v3748 = vpack.c.b16 %v3419, %v3412
        %v3749 = vpack.c.b16 %v3420, %v3413
        %v3750 = vpack.c.b16 %v3421, %v3414
        %v3751 = vpack.c.b16 %v3429, %v3422
        %v3752 = vpack.c.b16 %v3430, %v3423
        %v3753 = vpack.c.b16 %v3431, %v3424
        %v3754 = vpack.c.b16 %v3432, %v3425
        %v3755 = vpack.c.b16 %v3433, %v3426
        %v3756 = vpack.c.b16 %v3434, %v3427
        %v3757 = vpack.c.b16 %v3435, %v3428
        %v3758 = vpack.c.b16 %v3443, %v3436
        %v3759 = vpack.c.b16 %v3444, %v3437
        %v3760 = vpack.c.b16 %v3445, %v3438
        %v3761 = vpack.c.b16 %v3446, %v3439
        %v3762 = vpack.c.b16 %v3447, %v3440
        %v3763 = vpack.c.b16 %v3448, %v3441
        %v3764 = vpack.c.b16 %v3449, %v3442
        %v3765 = vpack.c.b16 %v3457, %v3450
        %v3766 = vpack.c.b16 %v3458, %v3451
        %v3767 = vpack.c.b16 %v3459, %v3452
        %v3768 = vpack.c.b16 %v3460, %v3453
        %v3769 = vpack.c.b16 %v3461, %v3454
        %v3770 = vpack.c.b16 %v3462, %v3455
        %v3771 = vpack.c.b16 %v3463, %v3456
        %v3772 = vpack.c.b16 %v3471, %v3464
        %v3773 = vpack.c.b16 %v3472, %v3465
        %v3774 = vpack.c.b16 %v3473, %v3466
        %v3775 = vpack.c.b16 %v3474, %v3467
        %v3776 = vpack.c.b16 %v3475, %v3468
        %v3777 = vpack.c.b16 %v3476, %v3469
        %v3778 = vpack.c.b16 %v3477, %v3470
        %v3779 = vpack.c.b16 %v3485, %v3478
        %v3780 = vpack.c.b16 %v3486, %v3479
        %v3781 = vpack.c.b16 %v3487, %v3480
        %v3782 = vpack.c.b16 %v3488, %v3481
        %v3783 = vpack.c.b16 %v3489, %v3482
        %v3784 = vpack.c.b16 %v3490, %v3483
        %v3785 = vpack.c.b16 %v3491, %v3484
        %v3786 = vpack.c.b16 %v3499, %v3492
        %v3787 = vpack.c.b16 %v3500, %v3493
        %v3788 = vpack.c.b16 %v3501, %v3494
        %v3789 = vpack.c.b16 %v3502, %v3495
        %v3790 = vpack.c.b16 %v3503, %v3496
        %v3791 = vpack.c.b16 %v3504, %v3497
        %v3792 = vpack.c.b16 %v3505, %v3498
        %v3793 = vpack.c.b16 %v3513, %v3506
        %v3794 = vpack.c.b16 %v3514, %v3507
        %v3795 = vpack.c.b16 %v3515, %v3508
        %v3796 = vpack.c.b16 %v3516, %v3509
        %v3797 = vpack.c.b16 %v3517, %v3510
        %v3798 = vpack.c.b16 %v3518, %v3511
        %v3799 = vpack.c.b16 %v3519, %v3512
        %v3800 = vpack.c.b16 %v3527, %v3520
        %v3801 = vpack.c.b16 %v3528, %v3521
        %v3802 = vpack.c.b16 %v3529, %v3522
        %v3803 = vpack.c.b16 %v3530, %v3523
        %v3804 = vpack.c.b16 %v3531, %v3524
        %v3805 = vpack.c.b16 %v3532, %v3525
        %v3806 = vpack.c.b16 %v3533, %v3526
        %v3807 = vpack.c.b16 %v3541, %v3534
        %v3808 = vpack.c.b16 %v3542, %v3535
        %v3809 = vpack.c.b16 %v3543, %v3536
        %v3810 = vpack.c.b16 %v3544, %v3537
        %v3811 = vpack.c.b16 %v3545, %v3538
        %v3812 = vpack.c.b16 %v3546, %v3539
        %v3813 = vpack.c.b16 %v3547, %v3540
        %v3814 = vpack.c.b16 %v3555, %v3548
        %v3815 = vpack.c.b16 %v3556, %v3549
        %v3816 = vpack.c.b16 %v3557, %v3550
        %v3817 = vpack.c.b16 %v3558, %v3551
        %v3818 = vpack.c.b16 %v3559, %v3552
        %v3819 = vpack.c.b16 %v3560, %v3553
        %v3820 = vpack.c.b16 %v3561, %v3554
        %v3821 = vpack.c.b16 %v3569, %v3562
        %v3822 = vpack.c.b16 %v3570, %v3563
        %v3823 = vpack.c.b16 %v3571, %v3564
        %v3824 = vpack.c.b16 %v3572, %v3565
        %v3825 = vpack.c.b16 %v3573, %v3566
        %v3826 = vpack.c.b16 %v3574, %v3567
        %v3827 = vpack.c.b16 %v3575, %v3568
        %v3828 = vpack.c.b16 %v3583, %v3576
        %v3829 = vpack.c.b16 %v3584, %v3577
        %v3830 = vpack.c.b16 %v3585, %v3578
        %v3831 = vpack.c.b16 %v3586, %v3579
        %v3832 = vpack.c.b16 %v3587, %v3580
        %v3833 = vpack.c.b16 %v3588, %v3581
        %v3834 = vpack.c.b16 %v3589, %v3582
        %v3835 = vpack.c.b16 %v3597, %v3590
        %v3836 = vpack.c.b16 %v3598, %v3591
        %v3837 = vpack.c.b16 %v3599, %v3592
        %v3838 = vpack.c.b16 %v3600, %v3593
        %v3839 = vpack.c.b16 %v3601, %v3594
        %v3840 = vpack.c.b16 %v3602, %v3595
        %v3841 = vpack.c.b16 %v3603, %v3596
        %v3842 = vpack.c.b16 %v3611, %v3604
        %v3843 = vpack.c.b16 %v3612, %v3605
        %v3844 = vpack.c.b16 %v3613, %v3606
        %v3845 = vpack.c.b16 %v3614, %v3607
        %v3846 = vpack.c.b16 %v3615, %v3608
        %v3847 = vpack.c.b16 %v3616, %v3609
        %v3848 = vpack.c.b16 %v3617, %v3610
        %v3849 = vpack.c.b16 %v3625, %v3618
        %v3850 = vpack.c.b16 %v3626, %v3619
        %v3851 = vpack.c.b16 %v3627, %v3620
        %v3852 = vpack.c.b16 %v3628, %v3621
        %v3853 = vpack.c.b16 %v3629, %v3622
        %v3854 = vpack.c.b16 %v3630, %v3623
        %v3855 = vpack.c.b16 %v3631, %v3624
        %4080 = vmatprep.subr.bf16.mxu0 %v3633
        %4081 = vmatpush1.bf16.msra.mxu0 %v3632
        %4082 = vmatprep.subr.bf16.mxu0 %v3640
        %4083 = vmatpush1.bf16.msra.mxu0 %v3639
        %4084 = vmatprep.subr.bf16.mxu0 %v3647
        %4085 = vmatpush1.bf16.msra.mxu0 %v3646
        %4086 = vmatprep.subr.bf16.mxu0 %v3654
        %4087 = vmatpush1.bf16.msra.mxu0 %v3653
        %4088 = vmatprep.subr.bf16.mxu0 %v3661
        %4089 = vmatpush1.bf16.msra.mxu0 %v3660
        %4090 = vmatprep.subr.bf16.mxu0 %v3668
        %4091 = vmatpush1.bf16.msra.mxu0 %v3667
        %4092 = vmatprep.subr.bf16.mxu0 %v3675
        %4093 = vmatpush1.bf16.msra.mxu0 %v3674
        %4094 = vmatprep.subr.bf16.mxu0 %v3682
        %4095 = vmatpush1.bf16.msra.mxu0 %v3681
        %4096 = vmatprep.subr.bf16.mxu0 %v3689
        %4097 = vmatpush1.bf16.msra.mxu0 %v3688
        %4098 = vmatprep.subr.bf16.mxu0 %v3696
        %4099 = vmatpush1.bf16.msra.mxu0 %v3695
        %4100 = vmatprep.subr.bf16.mxu0 %v3703
        %4101 = vmatpush1.bf16.msra.mxu0 %v3702
        %4102 = vmatprep.subr.bf16.mxu0 %v3710
        %4103 = vmatpush1.bf16.msra.mxu0 %v3709
        %4104 = vmatprep.subr.bf16.mxu0 %v3717
        %4105 = vmatpush1.bf16.msra.mxu0 %v3716
        %4106 = vmatprep.subr.bf16.mxu0 %v3724
        %4107 = vmatpush1.bf16.msra.mxu0 %v3723
        %4108 = vmatprep.subr.bf16.mxu0 %v3731
        %4109 = vmatpush1.bf16.msra.mxu0 %v3730
        %4110 = vmatprep.subr.bf16.mxu0 %v3738
        %4111 = vmatpush1.bf16.msra.mxu0 %v3737
        %4112 = vmatprep.mubr.bf16.mxu0 %v2632
        %4113 = vmatmul.mubr.bf16.gmra.mrb[0].mxu0 %v2631
        %v4114 = vpop.f32.mrb[0].mxu0
        %v4115 = vadd.f32 %v2896, %v4114
        %v4116 = vpop.f32.mrb[0].mxu0
        %v4117 = vadd.f32 %v2900, %v4116
        %v4118 = vpop.f32.mrb[0].mxu0
        %v4119 = vpop.f32.mrb[0].mxu0
        %4120 = vdwg.mxu0
        %4121 = vmatprep.subr.bf16.mxu0 %v3745
        %4122 = vmatpush1.bf16.msra.mxu0 %v3744
        %4123 = vmatprep.subr.bf16.mxu0 %v3752
        %4124 = vmatpush1.bf16.msra.mxu0 %v3751
        %4125 = vmatprep.subr.bf16.mxu0 %v3759
        %4126 = vmatpush1.bf16.msra.mxu0 %v3758
        %4127 = vmatprep.subr.bf16.mxu0 %v3766
        %4128 = vmatpush1.bf16.msra.mxu0 %v3765
        %4129 = vmatprep.subr.bf16.mxu0 %v3773
        %4130 = vmatpush1.bf16.msra.mxu0 %v3772
        %4131 = vmatprep.subr.bf16.mxu0 %v3780
        %4132 = vmatpush1.bf16.msra.mxu0 %v3779
        %4133 = vmatprep.subr.bf16.mxu0 %v3787
        %4134 = vmatpush1.bf16.msra.mxu0 %v3786
        %4135 = vmatprep.subr.bf16.mxu0 %v3794
        %4136 = vmatpush1.bf16.msra.mxu0 %v3793
        %4137 = vmatprep.subr.bf16.mxu0 %v3801
        %4138 = vmatpush1.bf16.msra.mxu0 %v3800
        %4139 = vmatprep.subr.bf16.mxu0 %v3808
        %4140 = vmatpush1.bf16.msra.mxu0 %v3807
        %4141 = vmatprep.subr.bf16.mxu0 %v3815
        %4142 = vmatpush1.bf16.msra.mxu0 %v3814
        %4143 = vmatprep.subr.bf16.mxu0 %v3822
        %4144 = vmatpush1.bf16.msra.mxu0 %v3821
        %4145 = vmatprep.subr.bf16.mxu0 %v3829
        %4146 = vmatpush1.bf16.msra.mxu0 %v3828
        %4147 = vmatprep.subr.bf16.mxu0 %v3836
        %4148 = vmatpush1.bf16.msra.mxu0 %v3835
        %4149 = vmatprep.subr.bf16.mxu0 %v3843
        %4150 = vmatpush1.bf16.msra.mxu0 %v3842
        %4151 = vmatprep.subr.bf16.mxu0 %v3850
        %4152 = vmatpush1.bf16.msra.mxu0 %v3849
        %4153 = vmatprep.mubr.bf16.mxu0 %v2634
        %4154 = vmatmul.mubr.bf16.gmra.mrb[0].mxu0 %v2633
        %v4155 = vpop.f32.mrb[0].mxu0
        %v4156 = vadd.f32 %v4115, %v4155
        %v4157 = vpop.f32.mrb[0].mxu0
        %v4158 = vadd.f32 %v4117, %v4157
        %v4159 = vpop.f32.mrb[0].mxu0
        %v4160 = vpop.f32.mrb[0].mxu0
        %4161 = vdwg.mxu0
        %4162 = vmatprep.subr.bf16.mxu0 %v3635
        %4163 = vmatpush1.bf16.msra.mxu0 %v3634
        %4164 = vmatprep.subr.bf16.mxu0 %v3642
        %4165 = vmatpush1.bf16.msra.mxu0 %v3641
        %4166 = vmatprep.subr.bf16.mxu0 %v3649
        %4167 = vmatpush1.bf16.msra.mxu0 %v3648
        %4168 = vmatprep.subr.bf16.mxu0 %v3656
        %4169 = vmatpush1.bf16.msra.mxu0 %v3655
        %4170 = vmatprep.subr.bf16.mxu0 %v3663
        %4171 = vmatpush1.bf16.msra.mxu0 %v3662
        %4172 = vmatprep.subr.bf16.mxu0 %v3670
        %4173 = vmatpush1.bf16.msra.mxu0 %v3669
        %4174 = vmatprep.subr.bf16.mxu0 %v3677
        %4175 = vmatpush1.bf16.msra.mxu0 %v3676
        %4176 = vmatprep.subr.bf16.mxu0 %v3684
        %4177 = vmatpush1.bf16.msra.mxu0 %v3683
        %4178 = vmatprep.subr.bf16.mxu0 %v3691
        %4179 = vmatpush1.bf16.msra.mxu0 %v3690
        %4180 = vmatprep.subr.bf16.mxu0 %v3698
        %4181 = vmatpush1.bf16.msra.mxu0 %v3697
        %4182 = vmatprep.subr.bf16.mxu0 %v3705
        %4183 = vmatpush1.bf16.msra.mxu0 %v3704
        %4184 = vmatprep.subr.bf16.mxu0 %v3712
        %4185 = vmatpush1.bf16.msra.mxu0 %v3711
        %4186 = vmatprep.subr.bf16.mxu0 %v3719
        %4187 = vmatpush1.bf16.msra.mxu0 %v3718
        %4188 = vmatprep.subr.bf16.mxu0 %v3726
        %4189 = vmatpush1.bf16.msra.mxu0 %v3725
        %4190 = vmatprep.subr.bf16.mxu0 %v3733
        %4191 = vmatpush1.bf16.msra.mxu0 %v3732
        %4192 = vmatprep.subr.bf16.mxu0 %v3740
        %4193 = vmatpush1.bf16.msra.mxu0 %v3739
        %4194 = vmatprep.mubr.bf16.mxu0 %v2632
        %4195 = vmatmul.mubr.bf16.gmra.mrb[0].mxu0 %v2631
        %v4196 = vpop.f32.mrb[0].mxu0
        %v4197 = vadd.f32 %v2904, %v4196
        %v4198 = vpop.f32.mrb[0].mxu0
        %v4199 = vadd.f32 %v2908, %v4198
        %v4200 = vpop.f32.mrb[0].mxu0
        %v4201 = vpop.f32.mrb[0].mxu0
        %4202 = vdwg.mxu0
        %4203 = vmatprep.subr.bf16.mxu0 %v3747
        %4204 = vmatpush1.bf16.msra.mxu0 %v3746
        %4205 = vmatprep.subr.bf16.mxu0 %v3754
        %4206 = vmatpush1.bf16.msra.mxu0 %v3753
        %4207 = vmatprep.subr.bf16.mxu0 %v3761
        %4208 = vmatpush1.bf16.msra.mxu0 %v3760
        %4209 = vmatprep.subr.bf16.mxu0 %v3768
        %4210 = vmatpush1.bf16.msra.mxu0 %v3767
        %4211 = vmatprep.subr.bf16.mxu0 %v3775
        %4212 = vmatpush1.bf16.msra.mxu0 %v3774
        %4213 = vmatprep.subr.bf16.mxu0 %v3782
        %4214 = vmatpush1.bf16.msra.mxu0 %v3781
        %4215 = vmatprep.subr.bf16.mxu0 %v3789
        %4216 = vmatpush1.bf16.msra.mxu0 %v3788
        %4217 = vmatprep.subr.bf16.mxu0 %v3796
        %4218 = vmatpush1.bf16.msra.mxu0 %v3795
        %4219 = vmatprep.subr.bf16.mxu0 %v3803
        %4220 = vmatpush1.bf16.msra.mxu0 %v3802
        %4221 = vmatprep.subr.bf16.mxu0 %v3810
        %4222 = vmatpush1.bf16.msra.mxu0 %v3809
        %4223 = vmatprep.subr.bf16.mxu0 %v3817
        %4224 = vmatpush1.bf16.msra.mxu0 %v3816
        %4225 = vmatprep.subr.bf16.mxu0 %v3824
        %4226 = vmatpush1.bf16.msra.mxu0 %v3823
        %4227 = vmatprep.subr.bf16.mxu0 %v3831
        %4228 = vmatpush1.bf16.msra.mxu0 %v3830
        %4229 = vmatprep.subr.bf16.mxu0 %v3838
        %4230 = vmatpush1.bf16.msra.mxu0 %v3837
        %4231 = vmatprep.subr.bf16.mxu0 %v3845
        %4232 = vmatpush1.bf16.msra.mxu0 %v3844
        %4233 = vmatprep.subr.bf16.mxu0 %v3852
        %4234 = vmatpush1.bf16.msra.mxu0 %v3851
        %4235 = vmatprep.mubr.bf16.mxu0 %v2634
        %4236 = vmatmul.mubr.bf16.gmra.mrb[0].mxu0 %v2633
        %v4237 = vpop.f32.mrb[0].mxu0
        %v4238 = vadd.f32 %v4197, %v4237
        %v4239 = vpop.f32.mrb[0].mxu0
        %v4240 = vadd.f32 %v4199, %v4239
        %v4241 = vpop.f32.mrb[0].mxu0
        %v4242 = vpop.f32.mrb[0].mxu0
        %4243 = vdwg.mxu0
        %4244 = vmatprep.subr.bf16.mxu0 %v3637
        %4245 = vmatpush1.bf16.msra.mxu0 %v3636
        %4246 = vmatprep.subr.bf16.mxu0 %v3644
        %4247 = vmatpush1.bf16.msra.mxu0 %v3643
        %4248 = vmatprep.subr.bf16.mxu0 %v3651
        %4249 = vmatpush1.bf16.msra.mxu0 %v3650
        %4250 = vmatprep.subr.bf16.mxu0 %v3658
        %4251 = vmatpush1.bf16.msra.mxu0 %v3657
        %4252 = vmatprep.subr.bf16.mxu0 %v3665
        %4253 = vmatpush1.bf16.msra.mxu0 %v3664
        %4254 = vmatprep.subr.bf16.mxu0 %v3672
        %4255 = vmatpush1.bf16.msra.mxu0 %v3671
        %4256 = vmatprep.subr.bf16.mxu0 %v3679
        %4257 = vmatpush1.bf16.msra.mxu0 %v3678
        %4258 = vmatprep.subr.bf16.mxu0 %v3686
        %4259 = vmatpush1.bf16.msra.mxu0 %v3685
        %4260 = vmatprep.subr.bf16.mxu0 %v3693
        %4261 = vmatpush1.bf16.msra.mxu0 %v3692
        %4262 = vmatprep.subr.bf16.mxu0 %v3700
        %4263 = vmatpush1.bf16.msra.mxu0 %v3699
        %4264 = vmatprep.subr.bf16.mxu0 %v3707
        %4265 = vmatpush1.bf16.msra.mxu0 %v3706
        %4266 = vmatprep.subr.bf16.mxu0 %v3714
        %4267 = vmatpush1.bf16.msra.mxu0 %v3713
        %4268 = vmatprep.subr.bf16.mxu0 %v3721
        %4269 = vmatpush1.bf16.msra.mxu0 %v3720
        %4270 = vmatprep.subr.bf16.mxu0 %v3728
        %4271 = vmatpush1.bf16.msra.mxu0 %v3727
        %4272 = vmatprep.subr.bf16.mxu0 %v3735
        %4273 = vmatpush1.bf16.msra.mxu0 %v3734
        %4274 = vmatprep.subr.bf16.mxu0 %v3742
        %4275 = vmatpush1.bf16.msra.mxu0 %v3741
        %4276 = vmatprep.mubr.bf16.mxu0 %v2632
        %4277 = vmatmul.mubr.bf16.gmra.mrb[0].mxu0 %v2631
        %v4278 = vpop.f32.mrb[0].mxu0
        %v4279 = vadd.f32 %v2912, %v4278
        %v4280 = vpop.f32.mrb[0].mxu0
        %v4281 = vadd.f32 %v2916, %v4280
        %v4282 = vpop.f32.mrb[0].mxu0
        %v4283 = vpop.f32.mrb[0].mxu0
        %4284 = vdwg.mxu0
        %4285 = vmatprep.subr.bf16.mxu0 %v3749
        %4286 = vmatpush1.bf16.msra.mxu0 %v3748
        %4287 = vmatprep.subr.bf16.mxu0 %v3756
        %4288 = vmatpush1.bf16.msra.mxu0 %v3755
        %4289 = vmatprep.subr.bf16.mxu0 %v3763
        %4290 = vmatpush1.bf16.msra.mxu0 %v3762
        %4291 = vmatprep.subr.bf16.mxu0 %v3770
        %4292 = vmatpush1.bf16.msra.mxu0 %v3769
        %4293 = vmatprep.subr.bf16.mxu0 %v3777
        %4294 = vmatpush1.bf16.msra.mxu0 %v3776
        %4295 = vmatprep.subr.bf16.mxu0 %v3784
        %4296 = vmatpush1.bf16.msra.mxu0 %v3783
        %4297 = vmatprep.subr.bf16.mxu0 %v3791
        %4298 = vmatpush1.bf16.msra.mxu0 %v3790
        %4299 = vmatprep.subr.bf16.mxu0 %v3798
        %4300 = vmatpush1.bf16.msra.mxu0 %v3797
        %4301 = vmatprep.subr.bf16.mxu0 %v3805
        %4302 = vmatpush1.bf16.msra.mxu0 %v3804
        %4303 = vmatprep.subr.bf16.mxu0 %v3812
        %4304 = vmatpush1.bf16.msra.mxu0 %v3811
        %4305 = vmatprep.subr.bf16.mxu0 %v3819
        %4306 = vmatpush1.bf16.msra.mxu0 %v3818
        %4307 = vmatprep.subr.bf16.mxu0 %v3826
        %4308 = vmatpush1.bf16.msra.mxu0 %v3825
        %4309 = vmatprep.subr.bf16.mxu0 %v3833
        %4310 = vmatpush1.bf16.msra.mxu0 %v3832
        %4311 = vmatprep.subr.bf16.mxu0 %v3840
        %4312 = vmatpush1.bf16.msra.mxu0 %v3839
        %4313 = vmatprep.subr.bf16.mxu0 %v3847
        %4314 = vmatpush1.bf16.msra.mxu0 %v3846
        %4315 = vmatprep.subr.bf16.mxu0 %v3854
        %4316 = vmatpush1.bf16.msra.mxu0 %v3853
        %4317 = vmatprep.mubr.bf16.mxu0 %v2634
        %4318 = vmatmul.mubr.bf16.gmra.mrb[0].mxu0 %v2633
        %v4319 = vpop.f32.mrb[0].mxu0
        %v4320 = vadd.f32 %v4279, %v4319
        %v4321 = vpop.f32.mrb[0].mxu0
        %v4322 = vadd.f32 %v4281, %v4321
        %v4323 = vpop.f32.mrb[0].mxu0
        %v4324 = vpop.f32.mrb[0].mxu0
        %4325 = vdwg.mxu0
        %4326 = vmatprep.subr.bf16.mxu0 0
        %4327 = vmatpush1.bf16.msra.mxu0 %v3638
        %4328 = vmatprep.subr.bf16.mxu0 0
        %4329 = vmatpush1.bf16.msra.mxu0 %v3645
        %4330 = vmatprep.subr.bf16.mxu0 0
        %4331 = vmatpush1.bf16.msra.mxu0 %v3652
        %4332 = vmatprep.subr.bf16.mxu0 0
        %4333 = vmatpush1.bf16.msra.mxu0 %v3659
        %4334 = vmatprep.subr.bf16.mxu0 0
        %4335 = vmatpush1.bf16.msra.mxu0 %v3666
        %4336 = vmatprep.subr.bf16.mxu0 0
        %4337 = vmatpush1.bf16.msra.mxu0 %v3673
        %4338 = vmatprep.subr.bf16.mxu0 0
        %4339 = vmatpush1.bf16.msra.mxu0 %v3680
        %4340 = vmatprep.subr.bf16.mxu0 0
        %4341 = vmatpush1.bf16.msra.mxu0 %v3687
        %4342 = vmatprep.subr.bf16.mxu0 0
        %4343 = vmatpush1.bf16.msra.mxu0 %v3694
        %4344 = vmatprep.subr.bf16.mxu0 0
        %4345 = vmatpush1.bf16.msra.mxu0 %v3701
        %4346 = vmatprep.subr.bf16.mxu0 0
        %4347 = vmatpush1.bf16.msra.mxu0 %v3708
        %4348 = vmatprep.subr.bf16.mxu0 0
        %4349 = vmatpush1.bf16.msra.mxu0 %v3715
        %4350 = vmatprep.subr.bf16.mxu0 0
        %4351 = vmatpush1.bf16.msra.mxu0 %v3722
        %4352 = vmatprep.subr.bf16.mxu0 0
        %4353 = vmatpush1.bf16.msra.mxu0 %v3729
        %4354 = vmatprep.subr.bf16.mxu0 0
        %4355 = vmatpush1.bf16.msra.mxu0 %v3736
        %4356 = vmatprep.subr.bf16.mxu0 0
        %4357 = vmatpush1.bf16.msra.mxu0 %v3743
        %4358 = vmatprep.mubr.bf16.mxu0 %v2632
        %4359 = vmatmul.mubr.bf16.gmra.mrb[0].mxu0 %v2631
        %v4360 = vpop.f32.mrb[0].mxu0
        %v4361 = vadd.f32 %v2920, %v4360
        %v4362 = vpop.f32.mrb[0].mxu0
        %v4363 = vpop.f32.mrb[0].mxu0
        %v4364 = vpop.f32.mrb[0].mxu0
        %4365 = vdwg.mxu0
        %4366 = vmatprep.subr.bf16.mxu0 0
        %4367 = vmatpush1.bf16.msra.mxu0 %v3750
        %4368 = vmatprep.subr.bf16.mxu0 0
        %4369 = vmatpush1.bf16.msra.mxu0 %v3757
        %4370 = vmatprep.subr.bf16.mxu0 0
        %4371 = vmatpush1.bf16.msra.mxu0 %v3764
        %4372 = vmatprep.subr.bf16.mxu0 0
        %4373 = vmatpush1.bf16.msra.mxu0 %v3771
        %4374 = vmatprep.subr.bf16.mxu0 0
        %4375 = vmatpush1.bf16.msra.mxu0 %v3778
        %4376 = vmatprep.subr.bf16.mxu0 0
        %4377 = vmatpush1.bf16.msra.mxu0 %v3785
        %4378 = vmatprep.subr.bf16.mxu0 0
        %4379 = vmatpush1.bf16.msra.mxu0 %v3792
        %4380 = vmatprep.subr.bf16.mxu0 0
        %4381 = vmatpush1.bf16.msra.mxu0 %v3799
        %4382 = vmatprep.subr.bf16.mxu0 0
        %4383 = vmatpush1.bf16.msra.mxu0 %v3806
        %4384 = vmatprep.subr.bf16.mxu0 0
        %4385 = vmatpush1.bf16.msra.mxu0 %v3813
        %4386 = vmatprep.subr.bf16.mxu0 0
        %4387 = vmatpush1.bf16.msra.mxu0 %v3820
        %4388 = vmatprep.subr.bf16.mxu0 0
        %4389 = vmatpush1.bf16.msra.mxu0 %v3827
        %4390 = vmatprep.subr.bf16.mxu0 0
        %4391 = vmatpush1.bf16.msra.mxu0 %v3834
        %4392 = vmatprep.subr.bf16.mxu0 0
        %4393 = vmatpush1.bf16.msra.mxu0 %v3841
        %4394 = vmatprep.subr.bf16.mxu0 0
        %4395 = vmatpush1.bf16.msra.mxu0 %v3848
        %4396 = vmatprep.subr.bf16.mxu0 0
        %4397 = vmatpush1.bf16.msra.mxu0 %v3855
        %4398 = vmatprep.mubr.bf16.mxu0 %v2634
        %4399 = vmatmul.mubr.bf16.gmra.mrb[0].mxu0 %v2633
        %v4400 = vpop.f32.mrb[0].mxu0
        %v4401 = vadd.f32 %v4361, %v4400
        %v4402 = vpop.f32.mrb[0].mxu0
        %v4403 = vpop.f32.mrb[0].mxu0
        %v4404 = vpop.f32.mrb[0].mxu0
        %4405 = vdwg.mxu0
        %v4406 = vxor.u32 %v4156, 2147483648
        %v4407 = vxor.u32 %v4158, 2147483648
        %v4408 = vxor.u32 %v4238, 2147483648
        %v4409 = vxor.u32 %v4240, 2147483648
        %v4410 = vxor.u32 %v4320, 2147483648
        %v4411 = vxor.u32 %v4322, 2147483648
        %v4412 = vxor.u32 %v4401, 2147483648
        %v4413 = vmul.f32 %v4406, 1.442695
        %v4414 = vpow.pop %v4413
        %v4415 = vmul.f32 %v4407, 1.442695
        %v4416 = vpow.pop %v4415
        %v4417 = vmul.f32 %v4408, 1.442695
        %v4418 = vpow.pop %v4417
        %v4419 = vmul.f32 %v4409, 1.442695
        %v4420 = vpow.pop %v4419
        %v4421 = vmul.f32 %v4410, 1.442695
        %v4422 = vpow.pop %v4421
        %v4423 = vmul.f32 %v4411, 1.442695
        %v4424 = vpow.pop %v4423
        %v4425 = vmul.f32 %v4412, 1.442695
        %v4426 = vpow.pop %v4425
        %v4427 = vadd.f32 %v4414, 1.0
        %v4428 = vadd.f32 %v4416, 1.0
        %v4429 = vadd.f32 %v4418, 1.0
        %v4430 = vadd.f32 %v4420, 1.0
        %v4431 = vadd.f32 %v4422, 1.0
        %v4432 = vadd.f32 %v4424, 1.0
        %v4433 = vadd.f32 %v4426, 1.0
        %v4434 = vrcp.pop %v4427
        %v4435 = vmul.f32 1.0, %v4434
        %v4436 = vrcp.pop %v4428
        %v4437 = vmul.f32 1.0, %v4436
        %v4438 = vrcp.pop %v4429
        %v4439 = vmul.f32 1.0, %v4438
        %v4440 = vrcp.pop %v4430
        %v4441 = vmul.f32 1.0, %v4440
        %v4442 = vrcp.pop %v4431
        %v4443 = vmul.f32 1.0, %v4442
        %v4444 = vrcp.pop %v4432
        %v4445 = vmul.f32 1.0, %v4444
        %v4446 = vrcp.pop %v4433
        %v4447 = vmul.f32 1.0, %v4446
        %4448 = vst [vmem:[%s395] sm:$0xff] %v4435
        %4449 = vst [vmem:[%s395 + $0x8] sm:$0xff] %v4437
        %4450 = vst [vmem:[%s395 + $0x10] sm:$0xff] %v4439
        %4451 = vst [vmem:[%s395 + $0x18] sm:$0xff] %v4441
        %4452 = vst [vmem:[%s395 + $0x20] sm:$0xff] %v4443
        %4453 = vst [vmem:[%s395 + $0x28] sm:$0xff] %v4445
        %4454 = vst [vmem:[%s395 + $0x30] sm:$0xff] %v4447
        %s4455 = sand.u32 %s254, 1
        %s4456 = scalar_lea.sflag [#allocation4], %s4455
        %s4457 = sand.u32 %s254, 1
        %s4458 = smul.addr %s4457, 56
        %s4459 = scalar_lea.vmem [#allocation7], %s4458
        // Predicated region
        $region69: #{tpu_custom_call.1} parent=59 // pred_check
          %p4460 = pneg %p264
        $region70: #{tpu_custom_call.1} parent=59 // pred_check_branch
          %4462 = sbr.rel (%p4460) target = $region72
        $region71: #{tpu_custom_call.1} parent=59 // pred_region
          %s4464 = ssub.s32 896, 896
          %4465 = vsyncadd %s4456, %s4464
          %s4466 = smul.addr %s26, 7
          %s4467 = smul.addr %s4466, 128
          %s4468 = scalar_lea.hbm %s10, %s4467
          %s4470 = sshll.u32 %s4459, 4
          %s4471 = int_to_ptr.vmem [resolvable:$true] %s4470
          %4473 = dma.vmem_to_hbm [thread:$0]  %s4471, 896, %s4468, %s4456
        $region72: #{tpu_custom_call.1} parent=59 // pred_fallthru
          _
      $region60: #{tpu_custom_call.1} parent=5 // pred_fallthru
        _
      %p4474 = scmp.le.s32.totalorder 2, %s21
      // Predicated region
      $region73: #{tpu_custom_call.1} parent=5 // pred_check
        %p4475 = pneg %p4474
      $region74: #{tpu_custom_call.1} parent=5 // pred_check_branch
        %4477 = sbr.rel (%p4475) target = $region76
      $region75: #{tpu_custom_call.1} parent=5 // pred_region
        %s4478 = ssub.s32 %s21, 2
        // Predicated region
        $region77: #{tpu_custom_call.1} parent=75 // pred_check
          %p4479 = pneg %p270
        $region78: #{tpu_custom_call.1} parent=75 // pred_check_branch
          %4481 = sbr.rel (%p4479) target = $region80
        $region79: #{tpu_custom_call.1} parent=75 // pred_region
          %s4482 = sand.u32 %s255, 1
          %s4483 = scalar_lea.sflag [#allocation4], %s4482
          %s4484 = sand.u32 %s255, 1
          %s4485 = smul.addr %s4484, 56
          %s4486 = scalar_lea.vmem [#allocation7], %s4485
          %4487 = dma.done %s4483, 896
        $region80: #{tpu_custom_call.1} parent=75 // pred_fallthru
          _
      $region76: #{tpu_custom_call.1} parent=5 // pred_fallthru
        _
    $region6: #{tpu_custom_call.1} parent=1 // loop_footer
      %s25 = sadd.s32 1, %s21
    $region7: #{tpu_custom_call.1} parent=1 // loop_footer_branch
      %20 = sbr.rel target = $region3
    $region8: #{tpu_custom_call.1} parent=1 // loop_exit
      _
    %4488 = vsyncpa [#allocation3], 1
    %s4489 = scalar_lea.sflag [#allocation3], 1
    %4490 = vsyncpa %s4489, 1
    %4491 = vsyncpa [#allocation6], 1
    %4492 = vsyncpa [#allocation4], 1
    %s4493 = scalar_lea.sflag [#allocation4], 1
    %4494 = vsyncpa %s4493, 1

</llo_original>
